<compile_context>
chip_gen: v6e
topology: v6e:2x2x1
jax: 0.10.0
libtpu: 0.0.40
codegen_flags: <defaults>
</compile_context>

<pallas_src>
import jax
import jax.numpy as jnp
from jax.experimental import pallas as pl
from jax.experimental.pallas import tpu as pltpu

LAYER_DRUG = 3                       # number of GIN layers
DIM_DRUG = 32                        # true hidden dim
INPUT_SIZE_DRUG = 32                 # true input node-feature dim
N_GRAPHS = 4                         # graphs in the mini-batch
NODES_PER_GRAPH = 64                 # padded node slots per graph
N_PAD = N_GRAPHS * NODES_PER_GRAPH   # 256 padded nodes -> full v6e/v7x MXU M tile
D_PAD = 128                          # hidden dim padded onto the 128-lane axis
F_IN_PAD = 128                       # input feature dim padded to 128 lanes
G_PAD = 8                            # output sublane padding (full (8,128) store)
BN_EPS = 1e-5
_NEG = -1e30


def gnn_drug_kernel(inv_n_ref, x_ref, adj_ref, valid_ref,
                    w1_0_ref, b1_0_ref, w2_0_ref, b2_0_ref, g0_ref, be0_ref,
                    w1s_ref, b1s_ref, w2s_ref, b2s_ref, gs_ref, bes_ref,
                    out_ref):
    inv_n = inv_n_ref[0]                 # SMEM scalar: 1 / (# real nodes)
    x = x_ref[...]                       # [N_PAD, F_IN_PAD] f32 (pad rows/lanes = 0)
    adj = adj_ref[...]                   # [N_PAD, N_PAD] bf16, (A + I)[dst, src]
    valid = valid_ref[...]               # [N_PAD, 1] f32, 1.0 = real node
    pool_mask = valid > 0.0              # hoisted once, reused by every layer
    neg = jnp.float32(_NEG)

    def gin_bn_layer(h_bf16, w1, b1, w2, b2, gamma, beta):
        # GINConv (eps=0): nn( x_i + sum_{j->i} x_j ); the self-term is folded into
        # the adjacency (A+I) so the whole aggregation is one MXU pass.
        agg = jnp.dot(adj, h_bf16, preferred_element_type=jnp.float32)
        # nn = Linear -> ReLU -> Linear (bf16 MXU operands, f32 accumulation).
        h = jnp.dot(agg.astype(jnp.bfloat16), w1,
                    preferred_element_type=jnp.float32) + b1
        h = jnp.maximum(h, 0.0)
        h = jnp.dot(h.astype(jnp.bfloat16), w2,
                    preferred_element_type=jnp.float32) + b2
        h = jnp.maximum(h, 0.0)          # F.relu applied to the conv output
        # Zero padded rows so they never enter BN statistics or later layers.
        h = h * valid
        # BatchNorm1d (training mode): one-pass masked batch statistics,
        # biased variance (matches PyTorch's normalization).
        s = jnp.sum(h, axis=0, keepdims=True)
        ss = jnp.sum(h * h, axis=0, keepdims=True)
        mean = s * inv_n
        var = jnp.maximum(ss * inv_n - mean * mean, 0.0)
        return (h - mean) * jax.lax.rsqrt(var + BN_EPS) * gamma + beta

    def pool(h):
        # JumpingKnowledge('cat') + global_max_pool commute: per-layer max pool over
        # each graph's contiguous 64-row block.
        masked = jnp.where(pool_mask, h, neg)                        # [N_PAD, D_PAD]
        rows = [jnp.max(masked[g * NODES_PER_GRAPH:(g + 1) * NODES_PER_GRAPH, :],
                        axis=0, keepdims=True)
                for g in range(N_GRAPHS)]
        return jnp.concatenate(rows, axis=0)                         # [N_GRAPHS, D_PAD]

    # Fused layer loop: only one activation stays live; pooling happens per layer.
    pooled = []
    h = gin_bn_layer(x.astype(jnp.bfloat16),
                     w1_0_ref[...], b1_0_ref[...], w2_0_ref[...],
                     b2_0_ref[...], g0_ref[...], be0_ref[...])
    pooled.append(pool(h))
    for i in range(LAYER_DRUG - 1):
        h = gin_bn_layer(h.astype(jnp.bfloat16),
                         w1s_ref[i], b1s_ref[i], w2s_ref[i],
                         b2s_ref[i], gs_ref[i], bes_ref[i])
        pooled.append(pool(h))

    # Single full-tile (8 sublane x 384 lane) unmasked store; pad rows sliced host-side.
    result = jnp.concatenate(pooled, axis=1)                         # [N_GRAPHS, L*D_PAD]
    pad_rows = jnp.zeros((G_PAD - N_GRAPHS, LAYER_DRUG * D_PAD), jnp.float32)
    out_ref[...] = jnp.concatenate([result, pad_rows], axis=0)


def gnn_drug_forward(inv_n, x_pad, adj_bf16, valid, params):
    smem = pl.BlockSpec(memory_space=pltpu.MemorySpace.SMEM)
    vmem = pl.BlockSpec(memory_space=pltpu.MemorySpace.VMEM)
    args = (inv_n, x_pad, adj_bf16, valid,
            params["w1_0"], params["b1_0"], params["w2_0"], params["b2_0"],
            params["gamma_0"], params["beta_0"],
            params["w1s"], params["b1s"], params["w2s"], params["b2s"],
            params["gammas"], params["betas"])
    out_pad = pl.pallas_call(
        gnn_drug_kernel,
        out_shape=jax.ShapeDtypeStruct((G_PAD, LAYER_DRUG * D_PAD), jnp.float32),
        in_specs=[smem] + [vmem] * (len(args) - 1),
        out_specs=vmem,
    )(*args)
    # Strip graph-row and feature-lane padding: real features are the first DIM_DRUG
    # lanes of each layer's 128-wide output slice.
    out = out_pad[:N_GRAPHS].reshape(N_GRAPHS, LAYER_DRUG, D_PAD)[:, :, :DIM_DRUG]
    return out.reshape(N_GRAPHS, LAYER_DRUG * DIM_DRUG)


def _linear_init(key, fan_in, fan_out):
    # PyTorch nn.Linear default: U(-1/sqrt(fan_in), 1/sqrt(fan_in))
    lim = 1.0 / (fan_in ** 0.5)
    kw, kb = jax.random.split(key)
    w = jax.random.uniform(kw, (fan_in, fan_out), jnp.float32, -lim, lim)
    b = jax.random.uniform(kb, (fan_out,), jnp.float32, -lim, lim)
    return w, b


def _pad_w(w, rows, cols):
    return jnp.zeros((rows, cols), jnp.float32).at[:w.shape[0], :w.shape[1]].set(w)


def _pad_b(b, cols):
    return jnp.zeros((1, cols), jnp.float32).at[0, :b.shape[0]].set(b)


def make_params(key):
    keys = jax.random.split(key, 2 * LAYER_DRUG)
    # Layer 0: input_size_drug -> dim_drug -> dim_drug. Zero-padding the extra
    # rows/cols keeps padded channels exactly 0 through Linear/ReLU/BN, so the
    # real-channel results are unchanged by padding.
    w1_0, b1_0 = _linear_init(keys[0], INPUT_SIZE_DRUG, DIM_DRUG)
    w2_0, b2_0 = _linear_init(keys[1], DIM_DRUG, DIM_DRUG)
    params = {
        "w1_0": _pad_w(w1_0, F_IN_PAD, D_PAD).astype(jnp.bfloat16),
        "b1_0": _pad_b(b1_0, D_PAD),
        "w2_0": _pad_w(w2_0, D_PAD, D_PAD).astype(jnp.bfloat16),
        "b2_0": _pad_b(b2_0, D_PAD),
        "gamma_0": jnp.ones((1, D_PAD), jnp.float32),
        "beta_0": jnp.zeros((1, D_PAD), jnp.float32),
    }
    # Layers 1..L-1 (dim_drug -> dim_drug -> dim_drug), stacked on axis 0.
    w1s, b1s, w2s, b2s = [], [], [], []
    for i in range(LAYER_DRUG - 1):
        w1, b1 = _linear_init(keys[2 + 2 * i], DIM_DRUG, DIM_DRUG)
        w2, b2 = _linear_init(keys[3 + 2 * i], DIM_DRUG, DIM_DRUG)
        w1s.append(_pad_w(w1, D_PAD, D_PAD))
        b1s.append(_pad_b(b1, D_PAD))
        w2s.append(_pad_w(w2, D_PAD, D_PAD))
        b2s.append(_pad_b(b2, D_PAD))
    params.update({
        "w1s": jnp.stack(w1s).astype(jnp.bfloat16),
        "b1s": jnp.stack(b1s),
        "w2s": jnp.stack(w2s).astype(jnp.bfloat16),
        "b2s": jnp.stack(b2s),
        "gammas": jnp.ones((LAYER_DRUG - 1, 1, D_PAD), jnp.float32),
        "betas": jnp.zeros((LAYER_DRUG - 1, 1, D_PAD), jnp.float32),
    })
    return params


if __name__ == "__main__":
    key = jax.random.PRNGKey(0)
    k_x, k_e, k_p = jax.random.split(key, 3)

    # Real (unpadded) graph sizes and edge counts; nodes of graph g occupy the
    # padded row block [g*NODES_PER_GRAPH, g*NODES_PER_GRAPH + n_g).
    nodes_per_graph_real = (48, 40, 56, 64)
    edges_per_graph = (144, 120, 160, 192)

    # Node validity mask [N_PAD, 1]: 1.0 for real nodes, 0.0 for padding slots.
    valid_rows = []
    for n_g in nodes_per_graph_real:
        valid_rows.append(jnp.concatenate([
            jnp.ones((n_g,), jnp.float32),
            jnp.zeros((NODES_PER_GRAPH - n_g,), jnp.float32)]))
    valid = jnp.concatenate(valid_rows)[:, None]
    n_real = int(sum(nodes_per_graph_real))
    inv_n = jnp.array([1.0 / n_real], dtype=jnp.float32)   # SMEM scalar input

    # drug.x : node features, zero-padded to [N_PAD, F_IN_PAD].
    x_real = jax.random.normal(k_x, (N_PAD, INPUT_SIZE_DRUG), jnp.float32) * valid
    x_pad = jnp.zeros((N_PAD, F_IN_PAD), jnp.float32).at[:, :INPUT_SIZE_DRUG].set(x_real)

    # drug.edge_index : per-graph random edges -> densified adjacency A[dst, src]
    # (block-diagonal; padded nodes have no edges). GIN self-term folded in as +I on
    # real-node diagonal entries only. Integer counts -> exact in bf16.
    adj = jnp.zeros((N_PAD, N_PAD), jnp.float32)
    ekeys = jax.random.split(k_e, 2 * N_GRAPHS)
    for g, (n_g, e_g) in enumerate(zip(nodes_per_graph_real, edges_per_graph)):
        base = g * NODES_PER_GRAPH
        src = base + jax.random.randint(ekeys[2 * g], (e_g,), 0, n_g)
        dst = base + jax.random.randint(ekeys[2 * g + 1], (e_g,), 0, n_g)
        adj = adj.at[dst, src].add(1.0)
    adj_plus_i = adj + jnp.diag(valid[:, 0])
    adj_bf16 = adj_plus_i.astype(jnp.bfloat16)

    params = make_params(k_p)

    out = gnn_drug_forward(inv_n, x_pad, adj_bf16, valid, params)
    jax.block_until_ready(out)
    assert out.shape == (N_GRAPHS, LAYER_DRUG * DIM_DRUG)
    print("KERNEL_OK")
</pallas_src>

<mosaic_0001>
module attributes {stable_mosaic.version = 11 : i64} {
  func.func @gnn_drug_kernel(%arg0: memref<1xf32, #tpu.memory_space<smem>>, %arg1: memref<256x128xf32, #tpu.memory_space<vmem>>, %arg2: memref<256x256xbf16, #tpu.memory_space<vmem>>, %arg3: memref<256x1xf32, #tpu.memory_space<vmem>>, %arg4: memref<128x128xbf16, #tpu.memory_space<vmem>>, %arg5: memref<1x128xf32, #tpu.memory_space<vmem>>, %arg6: memref<128x128xbf16, #tpu.memory_space<vmem>>, %arg7: memref<1x128xf32, #tpu.memory_space<vmem>>, %arg8: memref<1x128xf32, #tpu.memory_space<vmem>>, %arg9: memref<1x128xf32, #tpu.memory_space<vmem>>, %arg10: memref<2x128x128xbf16, #tpu.memory_space<vmem>>, %arg11: memref<2x1x128xf32, #tpu.memory_space<vmem>>, %arg12: memref<2x128x128xbf16, #tpu.memory_space<vmem>>, %arg13: memref<2x1x128xf32, #tpu.memory_space<vmem>>, %arg14: memref<2x1x128xf32, #tpu.memory_space<vmem>>, %arg15: memref<2x1x128xf32, #tpu.memory_space<vmem>>, %arg16: memref<8x384xf32, #tpu.memory_space<vmem>>) attributes {dimension_semantics = [], scalar_prefetch = 0 : i64, scratch_operands = 0 : i64, tpu.core_type = #tpu.core_type<tc>} {
    %c0 = arith.constant 0 : index
    %0 = memref.load %arg0[%c0] : memref<1xf32, #tpu.memory_space<smem>>
    %c0_0 = arith.constant 0 : index
    %c0_1 = arith.constant 0 : index
    %1 = vector.load %arg1[%c0_0, %c0_1] : memref<256x128xf32, #tpu.memory_space<vmem>>, vector<256x128xf32>
    %c0_2 = arith.constant 0 : index
    %c0_3 = arith.constant 0 : index
    %2 = vector.load %arg2[%c0_2, %c0_3] : memref<256x256xbf16, #tpu.memory_space<vmem>>, vector<256x256xbf16>
    %c0_4 = arith.constant 0 : index
    %c0_5 = arith.constant 0 : index
    %3 = vector.load %arg3[%c0_4, %c0_5] : memref<256x1xf32, #tpu.memory_space<vmem>>, vector<256x1xf32>
    %cst = arith.constant 0.000000e+00 : f32
    %4 = vector.broadcast %cst : f32 to vector<256x1xf32>
    %5 = arith.cmpf ogt, %3, %4 : vector<256x1xf32>
    %6 = arith.truncf %1 : vector<256x128xf32> to vector<256x128xbf16>
    %c0_6 = arith.constant 0 : index
    %c0_7 = arith.constant 0 : index
    %7 = vector.load %arg4[%c0_6, %c0_7] : memref<128x128xbf16, #tpu.memory_space<vmem>>, vector<128x128xbf16>
    %c0_8 = arith.constant 0 : index
    %c0_9 = arith.constant 0 : index
    %8 = vector.load %arg5[%c0_8, %c0_9] : memref<1x128xf32, #tpu.memory_space<vmem>>, vector<1x128xf32>
    %c0_10 = arith.constant 0 : index
    %c0_11 = arith.constant 0 : index
    %9 = vector.load %arg6[%c0_10, %c0_11] : memref<128x128xbf16, #tpu.memory_space<vmem>>, vector<128x128xbf16>
    %c0_12 = arith.constant 0 : index
    %c0_13 = arith.constant 0 : index
    %10 = vector.load %arg7[%c0_12, %c0_13] : memref<1x128xf32, #tpu.memory_space<vmem>>, vector<1x128xf32>
    %c0_14 = arith.constant 0 : index
    %c0_15 = arith.constant 0 : index
    %11 = vector.load %arg8[%c0_14, %c0_15] : memref<1x128xf32, #tpu.memory_space<vmem>>, vector<1x128xf32>
    %c0_16 = arith.constant 0 : index
    %c0_17 = arith.constant 0 : index
    %12 = vector.load %arg9[%c0_16, %c0_17] : memref<1x128xf32, #tpu.memory_space<vmem>>, vector<1x128xf32>
    %cst_18 = arith.constant dense<0.000000e+00> : vector<256x128xf32>
    %13 = tpu.matmul %2, %6, %cst_18 {dimension_numbers = #tpu.dot_dimension_numbers<[1], [0], [0], [1], [0, 0, 1, 1], [], []>} : vector<256x256xbf16>, vector<256x128xbf16>, vector<256x128xf32> -> vector<256x128xf32>
    %14 = arith.truncf %13 : vector<256x128xf32> to vector<256x128xbf16>
    %cst_19 = arith.constant dense<0.000000e+00> : vector<256x128xf32>
    %15 = tpu.matmul %14, %7, %cst_19 {dimension_numbers = #tpu.dot_dimension_numbers<[1], [0], [0], [1], [0, 0, 1, 1], [], []>} : vector<256x128xbf16>, vector<128x128xbf16>, vector<256x128xf32> -> vector<256x128xf32>
    %16 = vector.broadcast %8 : vector<1x128xf32> to vector<256x128xf32>
    %17 = arith.addf %15, %16 : vector<256x128xf32>
    %cst_20 = arith.constant 0.000000e+00 : f32
    %18 = vector.broadcast %cst_20 : f32 to vector<256x128xf32>
    %19 = arith.maximumf %17, %18 : vector<256x128xf32>
    %20 = arith.truncf %19 : vector<256x128xf32> to vector<256x128xbf16>
    %cst_21 = arith.constant dense<0.000000e+00> : vector<256x128xf32>
    %21 = tpu.matmul %20, %9, %cst_21 {dimension_numbers = #tpu.dot_dimension_numbers<[1], [0], [0], [1], [0, 0, 1, 1], [], []>} : vector<256x128xbf16>, vector<128x128xbf16>, vector<256x128xf32> -> vector<256x128xf32>
    %22 = vector.broadcast %10 : vector<1x128xf32> to vector<256x128xf32>
    %23 = arith.addf %21, %22 : vector<256x128xf32>
    %cst_22 = arith.constant 0.000000e+00 : f32
    %24 = vector.broadcast %cst_22 : f32 to vector<256x128xf32>
    %25 = arith.maximumf %23, %24 : vector<256x128xf32>
    %26 = vector.broadcast %3 : vector<256x1xf32> to vector<256x128xf32>
    %27 = arith.mulf %25, %26 : vector<256x128xf32>
    %cst_23 = arith.constant dense<0.000000e+00> : vector<128xf32>
    %28 = vector.multi_reduction <add>, %27, %cst_23 [0] : vector<256x128xf32> to vector<128xf32>
    %29 = vector.shape_cast %28 : vector<128xf32> to vector<1x128xf32>
    %30 = arith.mulf %27, %27 : vector<256x128xf32>
    %cst_24 = arith.constant dense<0.000000e+00> : vector<128xf32>
    %31 = vector.multi_reduction <add>, %30, %cst_24 [0] : vector<256x128xf32> to vector<128xf32>
    %32 = vector.shape_cast %31 : vector<128xf32> to vector<1x128xf32>
    %33 = vector.broadcast %0 : f32 to vector<1x128xf32>
    %34 = arith.mulf %29, %33 : vector<1x128xf32>
    %35 = vector.broadcast %0 : f32 to vector<1x128xf32>
    %36 = arith.mulf %32, %35 : vector<1x128xf32>
    %37 = arith.mulf %34, %34 : vector<1x128xf32>
    %38 = arith.subf %36, %37 : vector<1x128xf32>
    %cst_25 = arith.constant 0.000000e+00 : f32
    %39 = vector.broadcast %cst_25 : f32 to vector<1x128xf32>
    %40 = arith.maximumf %38, %39 : vector<1x128xf32>
    %41 = vector.broadcast %34 : vector<1x128xf32> to vector<256x128xf32>
    %42 = arith.subf %27, %41 : vector<256x128xf32>
    %cst_26 = arith.constant 9.99999974E-6 : f32
    %43 = vector.broadcast %cst_26 : f32 to vector<1x128xf32>
    %44 = arith.addf %40, %43 : vector<1x128xf32>
    %45 = math.rsqrt %44 : vector<1x128xf32>
    %46 = vector.broadcast %45 : vector<1x128xf32> to vector<256x128xf32>
    %47 = arith.mulf %42, %46 : vector<256x128xf32>
    %48 = vector.broadcast %11 : vector<1x128xf32> to vector<256x128xf32>
    %49 = arith.mulf %47, %48 : vector<256x128xf32>
    %50 = vector.broadcast %12 : vector<1x128xf32> to vector<256x128xf32>
    %51 = arith.addf %49, %50 : vector<256x128xf32>
    %cst_27 = arith.constant -1.000000e+30 : f32
    %52 = vector.shape_cast %5 : vector<256x1xi1> to vector<256x1xi1>
    %53 = vector.broadcast %52 : vector<256x1xi1> to vector<256x128xi1>
    %54 = vector.broadcast %cst_27 : f32 to vector<256x128xf32>
    %55 = arith.select %53, %51, %54 : vector<256x128xi1>, vector<256x128xf32>
    %56 = vector.extract_strided_slice %55 {offsets = [0, 0], sizes = [64, 128], strides = [1, 1]} : vector<256x128xf32> to vector<64x128xf32>
    %cst_28 = arith.constant dense<0xFF800000> : vector<128xf32>
    %57 = vector.multi_reduction <maximumf>, %56, %cst_28 [0] : vector<64x128xf32> to vector<128xf32>
    %58 = vector.shape_cast %57 : vector<128xf32> to vector<1x128xf32>
    %59 = vector.extract_strided_slice %55 {offsets = [64, 0], sizes = [64, 128], strides = [1, 1]} : vector<256x128xf32> to vector<64x128xf32>
    %cst_29 = arith.constant dense<0xFF800000> : vector<128xf32>
    %60 = vector.multi_reduction <maximumf>, %59, %cst_29 [0] : vector<64x128xf32> to vector<128xf32>
    %61 = vector.shape_cast %60 : vector<128xf32> to vector<1x128xf32>
    %62 = vector.extract_strided_slice %55 {offsets = [128, 0], sizes = [64, 128], strides = [1, 1]} : vector<256x128xf32> to vector<64x128xf32>
    %cst_30 = arith.constant dense<0xFF800000> : vector<128xf32>
    %63 = vector.multi_reduction <maximumf>, %62, %cst_30 [0] : vector<64x128xf32> to vector<128xf32>
    %64 = vector.shape_cast %63 : vector<128xf32> to vector<1x128xf32>
    %65 = vector.extract_strided_slice %55 {offsets = [192, 0], sizes = [64, 128], strides = [1, 1]} : vector<256x128xf32> to vector<64x128xf32>
    %cst_31 = arith.constant dense<0xFF800000> : vector<128xf32>
    %66 = vector.multi_reduction <maximumf>, %65, %cst_31 [0] : vector<64x128xf32> to vector<128xf32>
    %67 = vector.shape_cast %66 : vector<128xf32> to vector<1x128xf32>
    %68 = tpu.concatenate %58, %61, %64, %67 in 0 : vector<1x128xf32>, vector<1x128xf32>, vector<1x128xf32>, vector<1x128xf32> -> vector<4x128xf32>
    %69 = arith.truncf %51 : vector<256x128xf32> to vector<256x128xbf16>
    %c0_32 = arith.constant 0 : index
    %c0_33 = arith.constant 0 : index
    %c0_34 = arith.constant 0 : index
    %70 = vector.load %arg10[%c0_32, %c0_33, %c0_34] : memref<2x128x128xbf16, #tpu.memory_space<vmem>>, vector<1x128x128xbf16>
    %71 = vector.shape_cast %70 : vector<1x128x128xbf16> to vector<128x128xbf16>
    %c0_35 = arith.constant 0 : index
    %c0_36 = arith.constant 0 : index
    %c0_37 = arith.constant 0 : index
    %72 = vector.load %arg11[%c0_35, %c0_36, %c0_37] : memref<2x1x128xf32, #tpu.memory_space<vmem>>, vector<1x1x128xf32>
    %73 = vector.shape_cast %72 : vector<1x1x128xf32> to vector<1x128xf32>
    %c0_38 = arith.constant 0 : index
    %c0_39 = arith.constant 0 : index
    %c0_40 = arith.constant 0 : index
    %74 = vector.load %arg12[%c0_38, %c0_39, %c0_40] : memref<2x128x128xbf16, #tpu.memory_space<vmem>>, vector<1x128x128xbf16>
    %75 = vector.shape_cast %74 : vector<1x128x128xbf16> to vector<128x128xbf16>
    %c0_41 = arith.constant 0 : index
    %c0_42 = arith.constant 0 : index
    %c0_43 = arith.constant 0 : index
    %76 = vector.load %arg13[%c0_41, %c0_42, %c0_43] : memref<2x1x128xf32, #tpu.memory_space<vmem>>, vector<1x1x128xf32>
    %77 = vector.shape_cast %76 : vector<1x1x128xf32> to vector<1x128xf32>
    %c0_44 = arith.constant 0 : index
    %c0_45 = arith.constant 0 : index
    %c0_46 = arith.constant 0 : index
    %78 = vector.load %arg14[%c0_44, %c0_45, %c0_46] : memref<2x1x128xf32, #tpu.memory_space<vmem>>, vector<1x1x128xf32>
    %79 = vector.shape_cast %78 : vector<1x1x128xf32> to vector<1x128xf32>
    %c0_47 = arith.constant 0 : index
    %c0_48 = arith.constant 0 : index
    %c0_49 = arith.constant 0 : index
    %80 = vector.load %arg15[%c0_47, %c0_48, %c0_49] : memref<2x1x128xf32, #tpu.memory_space<vmem>>, vector<1x1x128xf32>
    %81 = vector.shape_cast %80 : vector<1x1x128xf32> to vector<1x128xf32>
    %cst_50 = arith.constant dense<0.000000e+00> : vector<256x128xf32>
    %82 = tpu.matmul %2, %69, %cst_50 {dimension_numbers = #tpu.dot_dimension_numbers<[1], [0], [0], [1], [0, 0, 1, 1], [], []>} : vector<256x256xbf16>, vector<256x128xbf16>, vector<256x128xf32> -> vector<256x128xf32>
    %83 = arith.truncf %82 : vector<256x128xf32> to vector<256x128xbf16>
    %cst_51 = arith.constant dense<0.000000e+00> : vector<256x128xf32>
    %84 = tpu.matmul %83, %71, %cst_51 {dimension_numbers = #tpu.dot_dimension_numbers<[1], [0], [0], [1], [0, 0, 1, 1], [], []>} : vector<256x128xbf16>, vector<128x128xbf16>, vector<256x128xf32> -> vector<256x128xf32>
    %85 = vector.broadcast %73 : vector<1x128xf32> to vector<256x128xf32>
    %86 = arith.addf %84, %85 : vector<256x128xf32>
    %cst_52 = arith.constant 0.000000e+00 : f32
    %87 = vector.broadcast %cst_52 : f32 to vector<256x128xf32>
    %88 = arith.maximumf %86, %87 : vector<256x128xf32>
    %89 = arith.truncf %88 : vector<256x128xf32> to vector<256x128xbf16>
    %cst_53 = arith.constant dense<0.000000e+00> : vector<256x128xf32>
    %90 = tpu.matmul %89, %75, %cst_53 {dimension_numbers = #tpu.dot_dimension_numbers<[1], [0], [0], [1], [0, 0, 1, 1], [], []>} : vector<256x128xbf16>, vector<128x128xbf16>, vector<256x128xf32> -> vector<256x128xf32>
    %91 = vector.broadcast %77 : vector<1x128xf32> to vector<256x128xf32>
    %92 = arith.addf %90, %91 : vector<256x128xf32>
    %cst_54 = arith.constant 0.000000e+00 : f32
    %93 = vector.broadcast %cst_54 : f32 to vector<256x128xf32>
    %94 = arith.maximumf %92, %93 : vector<256x128xf32>
    %95 = vector.broadcast %3 : vector<256x1xf32> to vector<256x128xf32>
    %96 = arith.mulf %94, %95 : vector<256x128xf32>
    %cst_55 = arith.constant dense<0.000000e+00> : vector<128xf32>
    %97 = vector.multi_reduction <add>, %96, %cst_55 [0] : vector<256x128xf32> to vector<128xf32>
    %98 = vector.shape_cast %97 : vector<128xf32> to vector<1x128xf32>
    %99 = arith.mulf %96, %96 : vector<256x128xf32>
    %cst_56 = arith.constant dense<0.000000e+00> : vector<128xf32>
    %100 = vector.multi_reduction <add>, %99, %cst_56 [0] : vector<256x128xf32> to vector<128xf32>
    %101 = vector.shape_cast %100 : vector<128xf32> to vector<1x128xf32>
    %102 = vector.broadcast %0 : f32 to vector<1x128xf32>
    %103 = arith.mulf %98, %102 : vector<1x128xf32>
    %104 = vector.broadcast %0 : f32 to vector<1x128xf32>
    %105 = arith.mulf %101, %104 : vector<1x128xf32>
    %106 = arith.mulf %103, %103 : vector<1x128xf32>
    %107 = arith.subf %105, %106 : vector<1x128xf32>
    %cst_57 = arith.constant 0.000000e+00 : f32
    %108 = vector.broadcast %cst_57 : f32 to vector<1x128xf32>
    %109 = arith.maximumf %107, %108 : vector<1x128xf32>
    %110 = vector.broadcast %103 : vector<1x128xf32> to vector<256x128xf32>
    %111 = arith.subf %96, %110 : vector<256x128xf32>
    %cst_58 = arith.constant 9.99999974E-6 : f32
    %112 = vector.broadcast %cst_58 : f32 to vector<1x128xf32>
    %113 = arith.addf %109, %112 : vector<1x128xf32>
    %114 = math.rsqrt %113 : vector<1x128xf32>
    %115 = vector.broadcast %114 : vector<1x128xf32> to vector<256x128xf32>
    %116 = arith.mulf %111, %115 : vector<256x128xf32>
    %117 = vector.broadcast %79 : vector<1x128xf32> to vector<256x128xf32>
    %118 = arith.mulf %116, %117 : vector<256x128xf32>
    %119 = vector.broadcast %81 : vector<1x128xf32> to vector<256x128xf32>
    %120 = arith.addf %118, %119 : vector<256x128xf32>
    %cst_59 = arith.constant -1.000000e+30 : f32
    %121 = vector.shape_cast %5 : vector<256x1xi1> to vector<256x1xi1>
    %122 = vector.broadcast %121 : vector<256x1xi1> to vector<256x128xi1>
    %123 = vector.broadcast %cst_59 : f32 to vector<256x128xf32>
    %124 = arith.select %122, %120, %123 : vector<256x128xi1>, vector<256x128xf32>
    %125 = vector.extract_strided_slice %124 {offsets = [0, 0], sizes = [64, 128], strides = [1, 1]} : vector<256x128xf32> to vector<64x128xf32>
    %cst_60 = arith.constant dense<0xFF800000> : vector<128xf32>
    %126 = vector.multi_reduction <maximumf>, %125, %cst_60 [0] : vector<64x128xf32> to vector<128xf32>
    %127 = vector.shape_cast %126 : vector<128xf32> to vector<1x128xf32>
    %128 = vector.extract_strided_slice %124 {offsets = [64, 0], sizes = [64, 128], strides = [1, 1]} : vector<256x128xf32> to vector<64x128xf32>
    %cst_61 = arith.constant dense<0xFF800000> : vector<128xf32>
    %129 = vector.multi_reduction <maximumf>, %128, %cst_61 [0] : vector<64x128xf32> to vector<128xf32>
    %130 = vector.shape_cast %129 : vector<128xf32> to vector<1x128xf32>
    %131 = vector.extract_strided_slice %124 {offsets = [128, 0], sizes = [64, 128], strides = [1, 1]} : vector<256x128xf32> to vector<64x128xf32>
    %cst_62 = arith.constant dense<0xFF800000> : vector<128xf32>
    %132 = vector.multi_reduction <maximumf>, %131, %cst_62 [0] : vector<64x128xf32> to vector<128xf32>
    %133 = vector.shape_cast %132 : vector<128xf32> to vector<1x128xf32>
    %134 = vector.extract_strided_slice %124 {offsets = [192, 0], sizes = [64, 128], strides = [1, 1]} : vector<256x128xf32> to vector<64x128xf32>
    %cst_63 = arith.constant dense<0xFF800000> : vector<128xf32>
    %135 = vector.multi_reduction <maximumf>, %134, %cst_63 [0] : vector<64x128xf32> to vector<128xf32>
    %136 = vector.shape_cast %135 : vector<128xf32> to vector<1x128xf32>
    %137 = tpu.concatenate %127, %130, %133, %136 in 0 : vector<1x128xf32>, vector<1x128xf32>, vector<1x128xf32>, vector<1x128xf32> -> vector<4x128xf32>
    %138 = arith.truncf %120 : vector<256x128xf32> to vector<256x128xbf16>
    %c1 = arith.constant 1 : index
    %c0_64 = arith.constant 0 : index
    %c0_65 = arith.constant 0 : index
    %139 = vector.load %arg10[%c1, %c0_64, %c0_65] : memref<2x128x128xbf16, #tpu.memory_space<vmem>>, vector<1x128x128xbf16>
    %140 = vector.shape_cast %139 : vector<1x128x128xbf16> to vector<128x128xbf16>
    %c1_66 = arith.constant 1 : index
    %c0_67 = arith.constant 0 : index
    %c0_68 = arith.constant 0 : index
    %141 = vector.load %arg11[%c1_66, %c0_67, %c0_68] : memref<2x1x128xf32, #tpu.memory_space<vmem>>, vector<1x1x128xf32>
    %142 = vector.shape_cast %141 : vector<1x1x128xf32> to vector<1x128xf32>
    %c1_69 = arith.constant 1 : index
    %c0_70 = arith.constant 0 : index
    %c0_71 = arith.constant 0 : index
    %143 = vector.load %arg12[%c1_69, %c0_70, %c0_71] : memref<2x128x128xbf16, #tpu.memory_space<vmem>>, vector<1x128x128xbf16>
    %144 = vector.shape_cast %143 : vector<1x128x128xbf16> to vector<128x128xbf16>
    %c1_72 = arith.constant 1 : index
    %c0_73 = arith.constant 0 : index
    %c0_74 = arith.constant 0 : index
    %145 = vector.load %arg13[%c1_72, %c0_73, %c0_74] : memref<2x1x128xf32, #tpu.memory_space<vmem>>, vector<1x1x128xf32>
    %146 = vector.shape_cast %145 : vector<1x1x128xf32> to vector<1x128xf32>
    %c1_75 = arith.constant 1 : index
    %c0_76 = arith.constant 0 : index
    %c0_77 = arith.constant 0 : index
    %147 = vector.load %arg14[%c1_75, %c0_76, %c0_77] : memref<2x1x128xf32, #tpu.memory_space<vmem>>, vector<1x1x128xf32>
    %148 = vector.shape_cast %147 : vector<1x1x128xf32> to vector<1x128xf32>
    %c1_78 = arith.constant 1 : index
    %c0_79 = arith.constant 0 : index
    %c0_80 = arith.constant 0 : index
    %149 = vector.load %arg15[%c1_78, %c0_79, %c0_80] : memref<2x1x128xf32, #tpu.memory_space<vmem>>, vector<1x1x128xf32>
    %150 = vector.shape_cast %149 : vector<1x1x128xf32> to vector<1x128xf32>
    %cst_81 = arith.constant dense<0.000000e+00> : vector<256x128xf32>
    %151 = tpu.matmul %2, %138, %cst_81 {dimension_numbers = #tpu.dot_dimension_numbers<[1], [0], [0], [1], [0, 0, 1, 1], [], []>} : vector<256x256xbf16>, vector<256x128xbf16>, vector<256x128xf32> -> vector<256x128xf32>
    %152 = arith.truncf %151 : vector<256x128xf32> to vector<256x128xbf16>
    %cst_82 = arith.constant dense<0.000000e+00> : vector<256x128xf32>
    %153 = tpu.matmul %152, %140, %cst_82 {dimension_numbers = #tpu.dot_dimension_numbers<[1], [0], [0], [1], [0, 0, 1, 1], [], []>} : vector<256x128xbf16>, vector<128x128xbf16>, vector<256x128xf32> -> vector<256x128xf32>
    %154 = vector.broadcast %142 : vector<1x128xf32> to vector<256x128xf32>
    %155 = arith.addf %153, %154 : vector<256x128xf32>
    %cst_83 = arith.constant 0.000000e+00 : f32
    %156 = vector.broadcast %cst_83 : f32 to vector<256x128xf32>
    %157 = arith.maximumf %155, %156 : vector<256x128xf32>
    %158 = arith.truncf %157 : vector<256x128xf32> to vector<256x128xbf16>
    %cst_84 = arith.constant dense<0.000000e+00> : vector<256x128xf32>
    %159 = tpu.matmul %158, %144, %cst_84 {dimension_numbers = #tpu.dot_dimension_numbers<[1], [0], [0], [1], [0, 0, 1, 1], [], []>} : vector<256x128xbf16>, vector<128x128xbf16>, vector<256x128xf32> -> vector<256x128xf32>
    %160 = vector.broadcast %146 : vector<1x128xf32> to vector<256x128xf32>
    %161 = arith.addf %159, %160 : vector<256x128xf32>
    %cst_85 = arith.constant 0.000000e+00 : f32
    %162 = vector.broadcast %cst_85 : f32 to vector<256x128xf32>
    %163 = arith.maximumf %161, %162 : vector<256x128xf32>
    %164 = vector.broadcast %3 : vector<256x1xf32> to vector<256x128xf32>
    %165 = arith.mulf %163, %164 : vector<256x128xf32>
    %cst_86 = arith.constant dense<0.000000e+00> : vector<128xf32>
    %166 = vector.multi_reduction <add>, %165, %cst_86 [0] : vector<256x128xf32> to vector<128xf32>
    %167 = vector.shape_cast %166 : vector<128xf32> to vector<1x128xf32>
    %168 = arith.mulf %165, %165 : vector<256x128xf32>
    %cst_87 = arith.constant dense<0.000000e+00> : vector<128xf32>
    %169 = vector.multi_reduction <add>, %168, %cst_87 [0] : vector<256x128xf32> to vector<128xf32>
    %170 = vector.shape_cast %169 : vector<128xf32> to vector<1x128xf32>
    %171 = vector.broadcast %0 : f32 to vector<1x128xf32>
    %172 = arith.mulf %167, %171 : vector<1x128xf32>
    %173 = vector.broadcast %0 : f32 to vector<1x128xf32>
    %174 = arith.mulf %170, %173 : vector<1x128xf32>
    %175 = arith.mulf %172, %172 : vector<1x128xf32>
    %176 = arith.subf %174, %175 : vector<1x128xf32>
    %cst_88 = arith.constant 0.000000e+00 : f32
    %177 = vector.broadcast %cst_88 : f32 to vector<1x128xf32>
    %178 = arith.maximumf %176, %177 : vector<1x128xf32>
    %179 = vector.broadcast %172 : vector<1x128xf32> to vector<256x128xf32>
    %180 = arith.subf %165, %179 : vector<256x128xf32>
    %cst_89 = arith.constant 9.99999974E-6 : f32
    %181 = vector.broadcast %cst_89 : f32 to vector<1x128xf32>
    %182 = arith.addf %178, %181 : vector<1x128xf32>
    %183 = math.rsqrt %182 : vector<1x128xf32>
    %184 = vector.broadcast %183 : vector<1x128xf32> to vector<256x128xf32>
    %185 = arith.mulf %180, %184 : vector<256x128xf32>
    %186 = vector.broadcast %148 : vector<1x128xf32> to vector<256x128xf32>
    %187 = arith.mulf %185, %186 : vector<256x128xf32>
    %188 = vector.broadcast %150 : vector<1x128xf32> to vector<256x128xf32>
    %189 = arith.addf %187, %188 : vector<256x128xf32>
    %cst_90 = arith.constant -1.000000e+30 : f32
    %190 = vector.shape_cast %5 : vector<256x1xi1> to vector<256x1xi1>
    %191 = vector.broadcast %190 : vector<256x1xi1> to vector<256x128xi1>
    %192 = vector.broadcast %cst_90 : f32 to vector<256x128xf32>
    %193 = arith.select %191, %189, %192 : vector<256x128xi1>, vector<256x128xf32>
    %194 = vector.extract_strided_slice %193 {offsets = [0, 0], sizes = [64, 128], strides = [1, 1]} : vector<256x128xf32> to vector<64x128xf32>
    %cst_91 = arith.constant dense<0xFF800000> : vector<128xf32>
    %195 = vector.multi_reduction <maximumf>, %194, %cst_91 [0] : vector<64x128xf32> to vector<128xf32>
    %196 = vector.shape_cast %195 : vector<128xf32> to vector<1x128xf32>
    %197 = vector.extract_strided_slice %193 {offsets = [64, 0], sizes = [64, 128], strides = [1, 1]} : vector<256x128xf32> to vector<64x128xf32>
    %cst_92 = arith.constant dense<0xFF800000> : vector<128xf32>
    %198 = vector.multi_reduction <maximumf>, %197, %cst_92 [0] : vector<64x128xf32> to vector<128xf32>
    %199 = vector.shape_cast %198 : vector<128xf32> to vector<1x128xf32>
    %200 = vector.extract_strided_slice %193 {offsets = [128, 0], sizes = [64, 128], strides = [1, 1]} : vector<256x128xf32> to vector<64x128xf32>
    %cst_93 = arith.constant dense<0xFF800000> : vector<128xf32>
    %201 = vector.multi_reduction <maximumf>, %200, %cst_93 [0] : vector<64x128xf32> to vector<128xf32>
    %202 = vector.shape_cast %201 : vector<128xf32> to vector<1x128xf32>
    %203 = vector.extract_strided_slice %193 {offsets = [192, 0], sizes = [64, 128], strides = [1, 1]} : vector<256x128xf32> to vector<64x128xf32>
    %cst_94 = arith.constant dense<0xFF800000> : vector<128xf32>
    %204 = vector.multi_reduction <maximumf>, %203, %cst_94 [0] : vector<64x128xf32> to vector<128xf32>
    %205 = vector.shape_cast %204 : vector<128xf32> to vector<1x128xf32>
    %206 = tpu.concatenate %196, %199, %202, %205 in 0 : vector<1x128xf32>, vector<1x128xf32>, vector<1x128xf32>, vector<1x128xf32> -> vector<4x128xf32>
    %207 = tpu.concatenate %68, %137, %206 in 1 : vector<4x128xf32>, vector<4x128xf32>, vector<4x128xf32> -> vector<4x384xf32>
    %cst_95 = arith.constant 0.000000e+00 : f32
    %208 = vector.broadcast %cst_95 : f32 to vector<4x384xf32>
    %209 = tpu.concatenate %207, %208 in 0 : vector<4x384xf32>, vector<4x384xf32> -> vector<8x384xf32>
    %c0_96 = arith.constant 0 : index
    %c0_97 = arith.constant 0 : index
    %210 = vector.load %arg16[%c0_96, %c0_97] : memref<8x384xf32, #tpu.memory_space<vmem>>, vector<8x384xf32>
    tpu.vector_store %arg16[%c0_96, %c0_97], %209 {strides = array<i32>} : memref<8x384xf32, #tpu.memory_space<vmem>>, vector<8x384xf32>,
    return
  }
}

</mosaic_0001>

<llo_original>
// kernel: tpu_custom_call.1
$region0: #{tpu_custom_call.1}
  #allocation0 [shape = 'u32[]', space=smem, size = 0x4, offset = 0x4, fixed_abs, tag = 'smem constant byte address 0x4 - core index']
  #allocation1 [shape = 'u32[144,128]{1,0:T(1,128)}', space=vmem, size = 0x12000, scoped, tag = 'internal scratch']
  #allocation2 [shape = 'f32[1]{0:T(128)S(6)}', space=smem, size = 0x200, scoped, tag = 'scoped memory for tpu_custom_call.1']
  %s0 = inlined_call_operand.<no memory space> [shape: f32[1], index: 0, kind: input, shape index: {}]
  %s1 = inlined_call_operand.vmem [shape: f32[256,128], index: 1, kind: input, shape index: {}]
  %s2 = inlined_call_operand.hbm [shape: bf16[256,256], index: 2, kind: input, shape index: {}]
  %s3 = inlined_call_operand.vmem [shape: f32[256,1], index: 3, kind: input, shape index: {}]
  %s4 = inlined_call_operand.hbm [shape: bf16[128,128], index: 4, kind: input, shape index: {}]
  %s5 = inlined_call_operand.vmem [shape: f32[1,128], index: 5, kind: input, shape index: {}]
  %s6 = inlined_call_operand.hbm [shape: bf16[128,128], index: 6, kind: input, shape index: {}]
  %s7 = inlined_call_operand.vmem [shape: f32[1,128], index: 7, kind: input, shape index: {}]
  %s8 = inlined_call_operand.vmem [shape: f32[1,128], index: 8, kind: input, shape index: {}]
  %s9 = inlined_call_operand.vmem [shape: f32[1,128], index: 9, kind: input, shape index: {}]
  %s10 = inlined_call_operand.hbm [shape: bf16[2,128,128], index: 10, kind: input, shape index: {}]
  %s11 = inlined_call_operand.vmem [shape: f32[2,1,128], index: 11, kind: input, shape index: {}]
  %s12 = inlined_call_operand.hbm [shape: bf16[2,128,128], index: 12, kind: input, shape index: {}]
  %s13 = inlined_call_operand.vmem [shape: f32[2,1,128], index: 13, kind: input, shape index: {}]
  %s14 = inlined_call_operand.vmem [shape: f32[2,1,128], index: 14, kind: input, shape index: {}]
  %s15 = inlined_call_operand.vmem [shape: f32[2,1,128], index: 15, kind: input, shape index: {}]
  %s16 = inlined_call_operand.hbm [shape: f32[8,384], index: 16, kind: output, shape index: {}]
  %s17 = sld [smem:[#allocation0]]
  $region94: #{tpu_custom_call.1} parent=0
    _
  %s19 = ssub.s32 1, %s17
  %s20 = scalar_select 0, %s19, %s17
  %21 = sst [smem:[#allocation2]] %s0
  $region1: #{tpu_custom_call.1} parent=0
    #allocation3 [shape = 'u8[131072]{0}', space=vmem, size = 0x20000, scoped, tag = 'input window, operand 2, single buffered']
    #allocation4 [shape = 's32[1]{0}', space=sflag, size = 0x4, scoped, tag = 'scoped memory for tpu_custom_call.1']
    #allocation5 [shape = 's32[1]{0}', space=sflag, size = 0x4, scoped, tag = 'scoped memory for tpu_custom_call.1']
    #allocation6 [shape = 'u8[32768]{0}', space=vmem, size = 0x8000, scoped, tag = 'input window, operand 4, single buffered']
    #allocation7 [shape = 's32[1]{0}', space=sflag, size = 0x4, scoped, tag = 'scoped memory for tpu_custom_call.1']
    #allocation8 [shape = 'u8[32768]{0}', space=vmem, size = 0x8000, scoped, tag = 'input window, operand 6, single buffered']
    #allocation9 [shape = 'u8[65536]{0}', space=vmem, size = 0x10000, scoped, tag = 'input window, operand 10, single buffered']
    #allocation10 [shape = 's32[1]{0}', space=sflag, size = 0x4, scoped, tag = 'scoped memory for tpu_custom_call.1']
    #allocation11 [shape = 'u8[65536]{0}', space=vmem, size = 0x10000, scoped, tag = 'input window, operand 12, single buffered']
    #allocation12 [shape = 'u8[12288]{0}', space=vmem, size = 0x3000, scoped, tag = 'output window, operand 0, single buffered']
    %22 = vsyncpa [#allocation4], 0
    %23 = vsyncpa [#allocation7], 0
    %24 = vsyncpa [#allocation10], 0
    %25 = vsyncpa [#allocation5], 0
    // Predicated region
    $region2: #{tpu_custom_call.1} parent=1 // pred_check
      _
    $region3: #{tpu_custom_call.1} parent=1 // pred_check_branch
      %27 = sbr.rel (0) target = $region5
    $region4: #{tpu_custom_call.1} parent=1 // pred_region
      _
    $region5: #{tpu_custom_call.1} parent=1 // pred_fallthru
      _
    // Predicated region
    $region6: #{tpu_custom_call.1} parent=1 // pred_check
      _
    $region7: #{tpu_custom_call.1} parent=1 // pred_check_branch
      %29 = sbr.rel (0) target = $region9
    $region8: #{tpu_custom_call.1} parent=1 // pred_region
      _
    $region9: #{tpu_custom_call.1} parent=1 // pred_fallthru
      _
    // Predicated region
    $region10: #{tpu_custom_call.1} parent=1 // pred_check
      _
    $region11: #{tpu_custom_call.1} parent=1 // pred_check_branch
      %31 = sbr.rel (0) target = $region13
    $region12: #{tpu_custom_call.1} parent=1 // pred_region
      %s33 = ssub.s32 4096, 4096
      %34 = vsyncadd [#allocation4], %s33
      %s35 = sshll.u32 [#allocation3], 4
      %s36 = int_to_ptr.vmem [resolvable:$true] %s35
      %41 = dma.hbm_to_vmem [thread:$0]  %s2, 4096, %s36, [#allocation4], 128, 128, 8
    $region13: #{tpu_custom_call.1} parent=1 // pred_fallthru
      _
    // Predicated region
    $region14: #{tpu_custom_call.1} parent=1 // pred_check
      _
    $region15: #{tpu_custom_call.1} parent=1 // pred_check_branch
      %43 = sbr.rel (0) target = $region17
    $region16: #{tpu_custom_call.1} parent=1 // pred_region
      _
    $region17: #{tpu_custom_call.1} parent=1 // pred_fallthru
      _
    // Predicated region
    $region18: #{tpu_custom_call.1} parent=1 // pred_check
      _
    $region19: #{tpu_custom_call.1} parent=1 // pred_check_branch
      %45 = sbr.rel (0) target = $region21
    $region20: #{tpu_custom_call.1} parent=1 // pred_region
      %s47 = ssub.s32 1024, 1024
      %48 = vsyncadd [#allocation7], %s47
      %s49 = sshll.u32 [#allocation6], 4
      %s50 = int_to_ptr.vmem [resolvable:$true] %s49
      %55 = dma.hbm_to_vmem [thread:$0]  %s4, 1024, %s50, [#allocation7], 64, 64, 4
    $region21: #{tpu_custom_call.1} parent=1 // pred_fallthru
      _
    // Predicated region
    $region22: #{tpu_custom_call.1} parent=1 // pred_check
      _
    $region23: #{tpu_custom_call.1} parent=1 // pred_check_branch
      %57 = sbr.rel (0) target = $region25
    $region24: #{tpu_custom_call.1} parent=1 // pred_region
      _
    $region25: #{tpu_custom_call.1} parent=1 // pred_fallthru
      _
    // Predicated region
    $region26: #{tpu_custom_call.1} parent=1 // pred_check
      _
    $region27: #{tpu_custom_call.1} parent=1 // pred_check_branch
      %59 = sbr.rel (0) target = $region29
    $region28: #{tpu_custom_call.1} parent=1 // pred_region
      %s61 = ssub.s32 1024, 1024
      %62 = vsyncadd [#allocation7], %s61
      %s63 = sshll.u32 [#allocation8], 4
      %s64 = int_to_ptr.vmem [resolvable:$true] %s63
      %69 = dma.hbm_to_vmem [thread:$0]  %s6, 1024, %s64, [#allocation7], 64, 64, 4
    $region29: #{tpu_custom_call.1} parent=1 // pred_fallthru
      _
    // Predicated region
    $region30: #{tpu_custom_call.1} parent=1 // pred_check
      _
    $region31: #{tpu_custom_call.1} parent=1 // pred_check_branch
      %71 = sbr.rel (0) target = $region33
    $region32: #{tpu_custom_call.1} parent=1 // pred_region
      _
    $region33: #{tpu_custom_call.1} parent=1 // pred_fallthru
      _
    // Predicated region
    $region34: #{tpu_custom_call.1} parent=1 // pred_check
      _
    $region35: #{tpu_custom_call.1} parent=1 // pred_check_branch
      %73 = sbr.rel (0) target = $region37
    $region36: #{tpu_custom_call.1} parent=1 // pred_region
      _
    $region37: #{tpu_custom_call.1} parent=1 // pred_fallthru
      _
    // Predicated region
    $region38: #{tpu_custom_call.1} parent=1 // pred_check
      _
    $region39: #{tpu_custom_call.1} parent=1 // pred_check_branch
      %75 = sbr.rel (0) target = $region41
    $region40: #{tpu_custom_call.1} parent=1 // pred_region
      _
    $region41: #{tpu_custom_call.1} parent=1 // pred_fallthru
      _
    // Predicated region
    $region42: #{tpu_custom_call.1} parent=1 // pred_check
      _
    $region43: #{tpu_custom_call.1} parent=1 // pred_check_branch
      %77 = sbr.rel (0) target = $region45
    $region44: #{tpu_custom_call.1} parent=1 // pred_region
      %s79 = ssub.s32 2048, 2048
      %80 = vsyncadd [#allocation10], %s79
      %s81 = sshll.u32 [#allocation9], 4
      %s82 = int_to_ptr.vmem [resolvable:$true] %s81
      %87 = dma.hbm_to_vmem [thread:$0]  %s10, 2048, %s82, [#allocation10], 64, 64, 4
    $region45: #{tpu_custom_call.1} parent=1 // pred_fallthru
      _
    // Predicated region
    $region46: #{tpu_custom_call.1} parent=1 // pred_check
      _
    $region47: #{tpu_custom_call.1} parent=1 // pred_check_branch
      %89 = sbr.rel (0) target = $region49
    $region48: #{tpu_custom_call.1} parent=1 // pred_region
      _
    $region49: #{tpu_custom_call.1} parent=1 // pred_fallthru
      _
    // Predicated region
    $region50: #{tpu_custom_call.1} parent=1 // pred_check
      _
    $region51: #{tpu_custom_call.1} parent=1 // pred_check_branch
      %91 = sbr.rel (0) target = $region53
    $region52: #{tpu_custom_call.1} parent=1 // pred_region
      %s93 = ssub.s32 2048, 2048
      %94 = vsyncadd [#allocation10], %s93
      %s95 = sshll.u32 [#allocation11], 4
      %s96 = int_to_ptr.vmem [resolvable:$true] %s95
      %101 = dma.hbm_to_vmem [thread:$0]  %s12, 2048, %s96, [#allocation10], 64, 64, 4
    $region53: #{tpu_custom_call.1} parent=1 // pred_fallthru
      _
    // Predicated region
    $region54: #{tpu_custom_call.1} parent=1 // pred_check
      _
    $region55: #{tpu_custom_call.1} parent=1 // pred_check_branch
      %103 = sbr.rel (0) target = $region57
    $region56: #{tpu_custom_call.1} parent=1 // pred_region
      _
    $region57: #{tpu_custom_call.1} parent=1 // pred_fallthru
      _
    // Predicated region
    $region58: #{tpu_custom_call.1} parent=1 // pred_check
      _
    $region59: #{tpu_custom_call.1} parent=1 // pred_check_branch
      %105 = sbr.rel (0) target = $region61
    $region60: #{tpu_custom_call.1} parent=1 // pred_region
      _
    $region61: #{tpu_custom_call.1} parent=1 // pred_fallthru
      _
    // Predicated region
    $region62: #{tpu_custom_call.1} parent=1 // pred_check
      _
    $region63: #{tpu_custom_call.1} parent=1 // pred_check_branch
      %107 = sbr.rel (0) target = $region65
    $region64: #{tpu_custom_call.1} parent=1 // pred_region
      _
    $region65: #{tpu_custom_call.1} parent=1 // pred_fallthru
      _
    // Predicated region
    $region66: #{tpu_custom_call.1} parent=1 // pred_check
      _
    $region67: #{tpu_custom_call.1} parent=1 // pred_check_branch
      %109 = sbr.rel (0) target = $region69
    $region68: #{tpu_custom_call.1} parent=1 // pred_region
      %110 = dma.done [#allocation4], 4096
    $region69: #{tpu_custom_call.1} parent=1 // pred_fallthru
      _
    // Predicated region
    $region70: #{tpu_custom_call.1} parent=1 // pred_check
      _
    $region71: #{tpu_custom_call.1} parent=1 // pred_check_branch
      %112 = sbr.rel (0) target = $region73
    $region72: #{tpu_custom_call.1} parent=1 // pred_region
      %113 = dma.done [#allocation7], 1024
    $region73: #{tpu_custom_call.1} parent=1 // pred_fallthru
      _
    // Predicated region
    $region74: #{tpu_custom_call.1} parent=1 // pred_check
      _
    $region75: #{tpu_custom_call.1} parent=1 // pred_check_branch
      %115 = sbr.rel (0) target = $region77
    $region76: #{tpu_custom_call.1} parent=1 // pred_region
      %116 = dma.done [#allocation7], 1024
    $region77: #{tpu_custom_call.1} parent=1 // pred_fallthru
      _
    // Predicated region
    $region78: #{tpu_custom_call.1} parent=1 // pred_check
      _
    $region79: #{tpu_custom_call.1} parent=1 // pred_check_branch
      %118 = sbr.rel (0) target = $region81
    $region80: #{tpu_custom_call.1} parent=1 // pred_region
      %119 = dma.done [#allocation10], 2048
    $region81: #{tpu_custom_call.1} parent=1 // pred_fallthru
      _
    // Predicated region
    $region82: #{tpu_custom_call.1} parent=1 // pred_check
      _
    $region83: #{tpu_custom_call.1} parent=1 // pred_check_branch
      %121 = sbr.rel (0) target = $region85
    $region84: #{tpu_custom_call.1} parent=1 // pred_region
      %122 = dma.done [#allocation10], 2048
    $region85: #{tpu_custom_call.1} parent=1 // pred_fallthru
      _
    %s124 = sld [smem:[#allocation2]]
    %v125 = vld [vmem:[%s1] sm:$0xff]
    %v126 = vld [vmem:[%s1 + $0x8] sm:$0xff]
    %v127 = vld [vmem:[%s1 + $0x10] sm:$0xff]
    %v128 = vld [vmem:[%s1 + $0x18] sm:$0xff]
    %v129 = vld [vmem:[%s1 + $0x20] sm:$0xff]
    %v130 = vld [vmem:[%s1 + $0x28] sm:$0xff]
    %v131 = vld [vmem:[%s1 + $0x30] sm:$0xff]
    %v132 = vld [vmem:[%s1 + $0x38] sm:$0xff]
    %v133 = vld [vmem:[%s1 + $0x40] sm:$0xff]
    %v134 = vld [vmem:[%s1 + $0x48] sm:$0xff]
    %v135 = vld [vmem:[%s1 + $0x50] sm:$0xff]
    %v136 = vld [vmem:[%s1 + $0x58] sm:$0xff]
    %v137 = vld [vmem:[%s1 + $0x60] sm:$0xff]
    %v138 = vld [vmem:[%s1 + $0x68] sm:$0xff]
    %v139 = vld [vmem:[%s1 + $0x70] sm:$0xff]
    %v140 = vld [vmem:[%s1 + $0x78] sm:$0xff]
    %v141 = vld [vmem:[%s1 + $0x80] sm:$0xff]
    %v142 = vld [vmem:[%s1 + $0x88] sm:$0xff]
    %v143 = vld [vmem:[%s1 + $0x90] sm:$0xff]
    %v144 = vld [vmem:[%s1 + $0x98] sm:$0xff]
    %v145 = vld [vmem:[%s1 + $0xa0] sm:$0xff]
    %v146 = vld [vmem:[%s1 + $0xa8] sm:$0xff]
    %v147 = vld [vmem:[%s1 + $0xb0] sm:$0xff]
    %v148 = vld [vmem:[%s1 + $0xb8] sm:$0xff]
    %v149 = vld [vmem:[%s1 + $0xc0] sm:$0xff]
    %v150 = vld [vmem:[%s1 + $0xc8] sm:$0xff]
    %v151 = vld [vmem:[%s1 + $0xd0] sm:$0xff]
    %v152 = vld [vmem:[%s1 + $0xd8] sm:$0xff]
    %v153 = vld [vmem:[%s1 + $0xe0] sm:$0xff]
    %v154 = vld [vmem:[%s1 + $0xe8] sm:$0xff]
    %v155 = vld [vmem:[%s1 + $0xf0] sm:$0xff]
    %v156 = vld [vmem:[%s1 + $0xf8] sm:$0xff]
    %v157 = vld [vmem:[#allocation3] sm:$0xff]
    %v158 = vld [vmem:[#allocation3 + $0x8] sm:$0xff]
    %v159 = vld [vmem:[#allocation3 + $0x10] sm:$0xff]
    %v160 = vld [vmem:[#allocation3 + $0x18] sm:$0xff]
    %v161 = vld [vmem:[#allocation3 + $0x20] sm:$0xff]
    %v162 = vld [vmem:[#allocation3 + $0x28] sm:$0xff]
    %v163 = vld [vmem:[#allocation3 + $0x30] sm:$0xff]
    %v164 = vld [vmem:[#allocation3 + $0x38] sm:$0xff]
    %v165 = vld [vmem:[#allocation3 + $0x40] sm:$0xff]
    %v166 = vld [vmem:[#allocation3 + $0x48] sm:$0xff]
    %v167 = vld [vmem:[#allocation3 + $0x50] sm:$0xff]
    %v168 = vld [vmem:[#allocation3 + $0x58] sm:$0xff]
    %v169 = vld [vmem:[#allocation3 + $0x60] sm:$0xff]
    %v170 = vld [vmem:[#allocation3 + $0x68] sm:$0xff]
    %v171 = vld [vmem:[#allocation3 + $0x70] sm:$0xff]
    %v172 = vld [vmem:[#allocation3 + $0x78] sm:$0xff]
    %v173 = vld [vmem:[#allocation3 + $0x80] sm:$0xff]
    %v174 = vld [vmem:[#allocation3 + $0x88] sm:$0xff]
    %v175 = vld [vmem:[#allocation3 + $0x90] sm:$0xff]
    %v176 = vld [vmem:[#allocation3 + $0x98] sm:$0xff]
    %v177 = vld [vmem:[#allocation3 + $0xa0] sm:$0xff]
    %v178 = vld [vmem:[#allocation3 + $0xa8] sm:$0xff]
    %v179 = vld [vmem:[#allocation3 + $0xb0] sm:$0xff]
    %v180 = vld [vmem:[#allocation3 + $0xb8] sm:$0xff]
    %v181 = vld [vmem:[#allocation3 + $0xc0] sm:$0xff]
    %v182 = vld [vmem:[#allocation3 + $0xc8] sm:$0xff]
    %v183 = vld [vmem:[#allocation3 + $0xd0] sm:$0xff]
    %v184 = vld [vmem:[#allocation3 + $0xd8] sm:$0xff]
    %v185 = vld [vmem:[#allocation3 + $0xe0] sm:$0xff]
    %v186 = vld [vmem:[#allocation3 + $0xe8] sm:$0xff]
    %v187 = vld [vmem:[#allocation3 + $0xf0] sm:$0xff]
    %v188 = vld [vmem:[#allocation3 + $0xf8] sm:$0xff]
    %v189 = vld [vmem:[%s3] sm:$0xff]
    %v190 = vld [vmem:[%s3 + $0x8] sm:$0xff]
    %v191 = vld [vmem:[%s3 + $0x10] sm:$0xff]
    %v192 = vld [vmem:[%s3 + $0x18] sm:$0xff]
    %v193 = vld [vmem:[%s3 + $0x20] sm:$0xff]
    %v194 = vld [vmem:[%s3 + $0x28] sm:$0xff]
    %v195 = vld [vmem:[%s3 + $0x30] sm:$0xff]
    %v196 = vld [vmem:[%s3 + $0x38] sm:$0xff]
    %v197 = vld [vmem:[%s3 + $0x40] sm:$0xff]
    %v198 = vld [vmem:[%s3 + $0x48] sm:$0xff]
    %v199 = vld [vmem:[%s3 + $0x50] sm:$0xff]
    %v200 = vld [vmem:[%s3 + $0x58] sm:$0xff]
    %v201 = vld [vmem:[%s3 + $0x60] sm:$0xff]
    %v202 = vld [vmem:[%s3 + $0x68] sm:$0xff]
    %v203 = vld [vmem:[%s3 + $0x70] sm:$0xff]
    %v204 = vld [vmem:[%s3 + $0x78] sm:$0xff]
    %v205 = vld [vmem:[%s3 + $0x80] sm:$0xff]
    %v206 = vld [vmem:[%s3 + $0x88] sm:$0xff]
    %v207 = vld [vmem:[%s3 + $0x90] sm:$0xff]
    %v208 = vld [vmem:[%s3 + $0x98] sm:$0xff]
    %v209 = vld [vmem:[%s3 + $0xa0] sm:$0xff]
    %v210 = vld [vmem:[%s3 + $0xa8] sm:$0xff]
    %v211 = vld [vmem:[%s3 + $0xb0] sm:$0xff]
    %v212 = vld [vmem:[%s3 + $0xb8] sm:$0xff]
    %v213 = vld [vmem:[%s3 + $0xc0] sm:$0xff]
    %v214 = vld [vmem:[%s3 + $0xc8] sm:$0xff]
    %v215 = vld [vmem:[%s3 + $0xd0] sm:$0xff]
    %v216 = vld [vmem:[%s3 + $0xd8] sm:$0xff]
    %v217 = vld [vmem:[%s3 + $0xe0] sm:$0xff]
    %v218 = vld [vmem:[%s3 + $0xe8] sm:$0xff]
    %v219 = vld [vmem:[%s3 + $0xf0] sm:$0xff]
    %v220 = vld [vmem:[%s3 + $0xf8] sm:$0xff]
    %vm221 = vcmp.gt.f32.partialorder %v189, 0.0
    %vm222 = vcmp.gt.f32.partialorder %v190, 0.0
    %vm223 = vcmp.gt.f32.partialorder %v191, 0.0
    %vm224 = vcmp.gt.f32.partialorder %v192, 0.0
    %vm225 = vcmp.gt.f32.partialorder %v193, 0.0
    %vm226 = vcmp.gt.f32.partialorder %v194, 0.0
    %vm227 = vcmp.gt.f32.partialorder %v195, 0.0
    %vm228 = vcmp.gt.f32.partialorder %v196, 0.0
    %vm229 = vcmp.gt.f32.partialorder %v197, 0.0
    %vm230 = vcmp.gt.f32.partialorder %v198, 0.0
    %vm231 = vcmp.gt.f32.partialorder %v199, 0.0
    %vm232 = vcmp.gt.f32.partialorder %v200, 0.0
    %vm233 = vcmp.gt.f32.partialorder %v201, 0.0
    %vm234 = vcmp.gt.f32.partialorder %v202, 0.0
    %vm235 = vcmp.gt.f32.partialorder %v203, 0.0
    %vm236 = vcmp.gt.f32.partialorder %v204, 0.0
    %vm237 = vcmp.gt.f32.partialorder %v205, 0.0
    %vm238 = vcmp.gt.f32.partialorder %v206, 0.0
    %vm239 = vcmp.gt.f32.partialorder %v207, 0.0
    %vm240 = vcmp.gt.f32.partialorder %v208, 0.0
    %vm241 = vcmp.gt.f32.partialorder %v209, 0.0
    %vm242 = vcmp.gt.f32.partialorder %v210, 0.0
    %vm243 = vcmp.gt.f32.partialorder %v211, 0.0
    %vm244 = vcmp.gt.f32.partialorder %v212, 0.0
    %vm245 = vcmp.gt.f32.partialorder %v213, 0.0
    %vm246 = vcmp.gt.f32.partialorder %v214, 0.0
    %vm247 = vcmp.gt.f32.partialorder %v215, 0.0
    %vm248 = vcmp.gt.f32.partialorder %v216, 0.0
    %vm249 = vcmp.gt.f32.partialorder %v217, 0.0
    %vm250 = vcmp.gt.f32.partialorder %v218, 0.0
    %vm251 = vcmp.gt.f32.partialorder %v219, 0.0
    %vm252 = vcmp.gt.f32.partialorder %v220, 0.0
    %v253 = vpack.c.bf16 %v126, %v125
    %v254 = vpack.c.bf16 %v128, %v127
    %v255 = vpack.c.bf16 %v130, %v129
    %v256 = vpack.c.bf16 %v132, %v131
    %v257 = vpack.c.bf16 %v134, %v133
    %v258 = vpack.c.bf16 %v136, %v135
    %v259 = vpack.c.bf16 %v138, %v137
    %v260 = vpack.c.bf16 %v140, %v139
    %v261 = vpack.c.bf16 %v142, %v141
    %v262 = vpack.c.bf16 %v144, %v143
    %v263 = vpack.c.bf16 %v146, %v145
    %v264 = vpack.c.bf16 %v148, %v147
    %v265 = vpack.c.bf16 %v150, %v149
    %v266 = vpack.c.bf16 %v152, %v151
    %v267 = vpack.c.bf16 %v154, %v153
    %v268 = vpack.c.bf16 %v156, %v155
    %v269 = vld [vmem:[#allocation6] sm:$0xf]
    %v270 = vld [vmem:[#allocation6 + $0x4] sm:$0xf]
    %v271 = vld [vmem:[#allocation6 + $0x8] sm:$0xf]
    %v272 = vld [vmem:[#allocation6 + $0xc] sm:$0xf]
    %v273 = vld [vmem:[#allocation6 + $0x10] sm:$0xf]
    %v274 = vld [vmem:[#allocation6 + $0x14] sm:$0xf]
    %v275 = vld [vmem:[#allocation6 + $0x18] sm:$0xf]
    %v276 = vld [vmem:[#allocation6 + $0x1c] sm:$0xf]
    %v277 = vld [vmem:[#allocation6 + $0x20] sm:$0xf]
    %v278 = vld [vmem:[#allocation6 + $0x24] sm:$0xf]
    %v279 = vld [vmem:[#allocation6 + $0x28] sm:$0xf]
    %v280 = vld [vmem:[#allocation6 + $0x2c] sm:$0xf]
    %v281 = vld [vmem:[#allocation6 + $0x30] sm:$0xf]
    %v282 = vld [vmem:[#allocation6 + $0x34] sm:$0xf]
    %v283 = vld [vmem:[#allocation6 + $0x38] sm:$0xf]
    %v284 = vld [vmem:[#allocation6 + $0x3c] sm:$0xf]
    %v285 = vld [vmem:[%s5] sm:$0x1]
    %v286 = vld [vmem:[#allocation8] sm:$0xf]
    %v287 = vld [vmem:[#allocation8 + $0x4] sm:$0xf]
    %v288 = vld [vmem:[#allocation8 + $0x8] sm:$0xf]
    %v289 = vld [vmem:[#allocation8 + $0xc] sm:$0xf]
    %v290 = vld [vmem:[#allocation8 + $0x10] sm:$0xf]
    %v291 = vld [vmem:[#allocation8 + $0x14] sm:$0xf]
    %v292 = vld [vmem:[#allocation8 + $0x18] sm:$0xf]
    %v293 = vld [vmem:[#allocation8 + $0x1c] sm:$0xf]
    %v294 = vld [vmem:[#allocation8 + $0x20] sm:$0xf]
    %v295 = vld [vmem:[#allocation8 + $0x24] sm:$0xf]
    %v296 = vld [vmem:[#allocation8 + $0x28] sm:$0xf]
    %v297 = vld [vmem:[#allocation8 + $0x2c] sm:$0xf]
    %v298 = vld [vmem:[#allocation8 + $0x30] sm:$0xf]
    %v299 = vld [vmem:[#allocation8 + $0x34] sm:$0xf]
    %v300 = vld [vmem:[#allocation8 + $0x38] sm:$0xf]
    %v301 = vld [vmem:[#allocation8 + $0x3c] sm:$0xf]
    %v302 = vld [vmem:[%s7] sm:$0x1]
    %v303 = vld [vmem:[%s8] sm:$0x1]
    %v304 = vld [vmem:[%s9] sm:$0x1]
    %v337 = vunpack.c.l.b16 %v157
    %v338 = vunpack.c.h.b16 %v157
    %v339 = vunpack.c.l.b16 %v158
    %v340 = vunpack.c.h.b16 %v158
    %v341 = vunpack.c.l.b16 %v159
    %v342 = vunpack.c.h.b16 %v159
    %v343 = vunpack.c.l.b16 %v160
    %v344 = vunpack.c.h.b16 %v160
    %v345 = vunpack.c.l.b16 %v161
    %v346 = vunpack.c.h.b16 %v161
    %v347 = vunpack.c.l.b16 %v162
    %v348 = vunpack.c.h.b16 %v162
    %v349 = vunpack.c.l.b16 %v163
    %v350 = vunpack.c.h.b16 %v163
    %v351 = vunpack.c.l.b16 %v164
    %v352 = vunpack.c.h.b16 %v164
    %v353 = vunpack.c.l.b16 %v165
    %v354 = vunpack.c.h.b16 %v165
    %v355 = vunpack.c.l.b16 %v166
    %v356 = vunpack.c.h.b16 %v166
    %v357 = vunpack.c.l.b16 %v167
    %v358 = vunpack.c.h.b16 %v167
    %v359 = vunpack.c.l.b16 %v168
    %v360 = vunpack.c.h.b16 %v168
    %v361 = vunpack.c.l.b16 %v169
    %v362 = vunpack.c.h.b16 %v169
    %v363 = vunpack.c.l.b16 %v170
    %v364 = vunpack.c.h.b16 %v170
    %v365 = vunpack.c.l.b16 %v171
    %v366 = vunpack.c.h.b16 %v171
    %v367 = vunpack.c.l.b16 %v172
    %v368 = vunpack.c.h.b16 %v172
    %v369 = vunpack.c.l.b16 %v173
    %v370 = vunpack.c.h.b16 %v173
    %v371 = vunpack.c.l.b16 %v174
    %v372 = vunpack.c.h.b16 %v174
    %v373 = vunpack.c.l.b16 %v175
    %v374 = vunpack.c.h.b16 %v175
    %v375 = vunpack.c.l.b16 %v176
    %v376 = vunpack.c.h.b16 %v176
    %v377 = vunpack.c.l.b16 %v177
    %v378 = vunpack.c.h.b16 %v177
    %v379 = vunpack.c.l.b16 %v178
    %v380 = vunpack.c.h.b16 %v178
    %v381 = vunpack.c.l.b16 %v179
    %v382 = vunpack.c.h.b16 %v179
    %v383 = vunpack.c.l.b16 %v180
    %v384 = vunpack.c.h.b16 %v180
    %v385 = vunpack.c.l.b16 %v181
    %v386 = vunpack.c.h.b16 %v181
    %v387 = vunpack.c.l.b16 %v182
    %v388 = vunpack.c.h.b16 %v182
    %v389 = vunpack.c.l.b16 %v183
    %v390 = vunpack.c.h.b16 %v183
    %v391 = vunpack.c.l.b16 %v184
    %v392 = vunpack.c.h.b16 %v184
    %v393 = vunpack.c.l.b16 %v185
    %v394 = vunpack.c.h.b16 %v185
    %v395 = vunpack.c.l.b16 %v186
    %v396 = vunpack.c.h.b16 %v186
    %v397 = vunpack.c.l.b16 %v187
    %v398 = vunpack.c.h.b16 %v187
    %v399 = vunpack.c.l.b16 %v188
    %v400 = vunpack.c.h.b16 %v188
    %v401 = vpack.c.b16 %v339, %v337
    %v402 = vpack.c.b16 %v340, %v338
    %v403 = vpack.c.b16 %v343, %v341
    %v404 = vpack.c.b16 %v344, %v342
    %v405 = vpack.c.b16 %v347, %v345
    %v406 = vpack.c.b16 %v348, %v346
    %v407 = vpack.c.b16 %v351, %v349
    %v408 = vpack.c.b16 %v352, %v350
    %v409 = vpack.c.b16 %v355, %v353
    %v410 = vpack.c.b16 %v356, %v354
    %v411 = vpack.c.b16 %v359, %v357
    %v412 = vpack.c.b16 %v360, %v358
    %v413 = vpack.c.b16 %v363, %v361
    %v414 = vpack.c.b16 %v364, %v362
    %v415 = vpack.c.b16 %v367, %v365
    %v416 = vpack.c.b16 %v368, %v366
    %v417 = vpack.c.b16 %v371, %v369
    %v418 = vpack.c.b16 %v372, %v370
    %v419 = vpack.c.b16 %v375, %v373
    %v420 = vpack.c.b16 %v376, %v374
    %v421 = vpack.c.b16 %v379, %v377
    %v422 = vpack.c.b16 %v380, %v378
    %v423 = vpack.c.b16 %v383, %v381
    %v424 = vpack.c.b16 %v384, %v382
    %v425 = vpack.c.b16 %v387, %v385
    %v426 = vpack.c.b16 %v388, %v386
    %v427 = vpack.c.b16 %v391, %v389
    %v428 = vpack.c.b16 %v392, %v390
    %v429 = vpack.c.b16 %v395, %v393
    %v430 = vpack.c.b16 %v396, %v394
    %v431 = vpack.c.b16 %v399, %v397
    %v432 = vpack.c.b16 %v400, %v398
    %465 = vmatprep.subr.bf16.mxu0 0
    %466 = vmatpush1.bf16.msra.mxu0 %v260
    %467 = vmatprep.subr.bf16.mxu0 0
    %468 = vmatpush1.bf16.msra.mxu0 %v259
    %469 = vmatprep.subr.bf16.mxu0 0
    %470 = vmatpush1.bf16.msra.mxu0 %v258
    %471 = vmatprep.subr.bf16.mxu0 0
    %472 = vmatpush1.bf16.msra.mxu0 %v257
    %473 = vmatprep.subr.bf16.mxu0 0
    %474 = vmatpush1.bf16.msra.mxu0 %v256
    %475 = vmatprep.subr.bf16.mxu0 0
    %476 = vmatpush1.bf16.msra.mxu0 %v255
    %477 = vmatprep.subr.bf16.mxu0 0
    %478 = vmatpush1.bf16.msra.mxu0 %v254
    %479 = vmatprep.subr.bf16.mxu0 0
    %480 = vmatpush1.bf16.msra.mxu0 %v253
    %481 = vmatprep.subr.bf16.mxu0 0
    %482 = vmatpush2.bf16.msra.mxu0 %v268
    %483 = vmatprep.subr.bf16.mxu0 0
    %484 = vmatpush2.bf16.msra.mxu0 %v267
    %485 = vmatprep.subr.bf16.mxu0 0
    %486 = vmatpush2.bf16.msra.mxu0 %v266
    %487 = vmatprep.subr.bf16.mxu0 0
    %488 = vmatpush2.bf16.msra.mxu0 %v265
    %489 = vmatprep.subr.bf16.mxu0 0
    %490 = vmatpush2.bf16.msra.mxu0 %v264
    %491 = vmatprep.subr.bf16.mxu0 0
    %492 = vmatpush2.bf16.msra.mxu0 %v263
    %493 = vmatprep.subr.bf16.mxu0 0
    %494 = vmatpush2.bf16.msra.mxu0 %v262
    %495 = vmatprep.subr.bf16.mxu0 0
    %496 = vmatpush2.bf16.msra.mxu0 %v261
    %497 = vmatprep.mubr.bf16.mxu0 %v402
    %498 = vmatmul.mubr.bf16.gmra.mxu0 %v401
    %v499 = vpop.f32.mrf.mxu0
    %v500 = vadd.f32 0.0, %v499
    %v501 = vpop.f32.mrf.mxu0
    %v502 = vpop.f32.mrf.mxu0
    %v503 = vadd.f32 0.0, %v502
    %v504 = vpop.f32.mrf.mxu0
    %505 = vmatprep.mubr.bf16.mxu0 %v404
    %506 = vmatmul.mubr.bf16.gmra.mxu0 %v403
    %v507 = vpop.f32.mrf.mxu0
    %v508 = vadd.f32 0.0, %v507
    %v509 = vpop.f32.mrf.mxu0
    %v510 = vpop.f32.mrf.mxu0
    %v511 = vadd.f32 0.0, %v510
    %v512 = vpop.f32.mrf.mxu0
    %513 = vmatprep.mubr.bf16.mxu0 %v406
    %514 = vmatmul.mubr.bf16.gmra.mxu0 %v405
    %v515 = vpop.f32.mrf.mxu0
    %v516 = vadd.f32 0.0, %v515
    %v517 = vpop.f32.mrf.mxu0
    %v518 = vpop.f32.mrf.mxu0
    %v519 = vadd.f32 0.0, %v518
    %v520 = vpop.f32.mrf.mxu0
    %521 = vmatprep.mubr.bf16.mxu0 %v408
    %522 = vmatmul.mubr.bf16.gmra.mxu0 %v407
    %v523 = vpop.f32.mrf.mxu0
    %v524 = vadd.f32 0.0, %v523
    %v525 = vpop.f32.mrf.mxu0
    %v526 = vpop.f32.mrf.mxu0
    %v527 = vadd.f32 0.0, %v526
    %v528 = vpop.f32.mrf.mxu0
    %529 = vmatprep.mubr.bf16.mxu0 %v410
    %530 = vmatmul.mubr.bf16.gmra.mxu0 %v409
    %v531 = vpop.f32.mrf.mxu0
    %v532 = vadd.f32 0.0, %v531
    %v533 = vpop.f32.mrf.mxu0
    %v534 = vpop.f32.mrf.mxu0
    %v535 = vadd.f32 0.0, %v534
    %v536 = vpop.f32.mrf.mxu0
    %537 = vmatprep.mubr.bf16.mxu0 %v412
    %538 = vmatmul.mubr.bf16.gmra.mxu0 %v411
    %v539 = vpop.f32.mrf.mxu0
    %v540 = vadd.f32 0.0, %v539
    %v541 = vpop.f32.mrf.mxu0
    %v542 = vpop.f32.mrf.mxu0
    %v543 = vadd.f32 0.0, %v542
    %v544 = vpop.f32.mrf.mxu0
    %545 = vmatprep.mubr.bf16.mxu0 %v414
    %546 = vmatmul.mubr.bf16.gmra.mxu0 %v413
    %v547 = vpop.f32.mrf.mxu0
    %v548 = vadd.f32 0.0, %v547
    %v549 = vpop.f32.mrf.mxu0
    %v550 = vpop.f32.mrf.mxu0
    %v551 = vadd.f32 0.0, %v550
    %v552 = vpop.f32.mrf.mxu0
    %553 = vmatprep.mubr.bf16.mxu0 %v416
    %554 = vmatmul.mubr.bf16.gmra.mxu0 %v415
    %v555 = vpop.f32.mrf.mxu0
    %v556 = vadd.f32 0.0, %v555
    %v557 = vpop.f32.mrf.mxu0
    %v558 = vpop.f32.mrf.mxu0
    %v559 = vadd.f32 0.0, %v558
    %v560 = vpop.f32.mrf.mxu0
    %561 = vmatprep.mubr.bf16.mxu0 %v418
    %562 = vmatmul.mubr.bf16.gmra.mxu0 %v417
    %v563 = vpop.f32.mrf.mxu0
    %v564 = vadd.f32 0.0, %v563
    %v565 = vpop.f32.mrf.mxu0
    %v566 = vpop.f32.mrf.mxu0
    %v567 = vadd.f32 0.0, %v566
    %v568 = vpop.f32.mrf.mxu0
    %569 = vmatprep.mubr.bf16.mxu0 %v420
    %570 = vmatmul.mubr.bf16.gmra.mxu0 %v419
    %v571 = vpop.f32.mrf.mxu0
    %v572 = vadd.f32 0.0, %v571
    %v573 = vpop.f32.mrf.mxu0
    %v574 = vpop.f32.mrf.mxu0
    %v575 = vadd.f32 0.0, %v574
    %v576 = vpop.f32.mrf.mxu0
    %577 = vmatprep.mubr.bf16.mxu0 %v422
    %578 = vmatmul.mubr.bf16.gmra.mxu0 %v421
    %v579 = vpop.f32.mrf.mxu0
    %v580 = vadd.f32 0.0, %v579
    %v581 = vpop.f32.mrf.mxu0
    %v582 = vpop.f32.mrf.mxu0
    %v583 = vadd.f32 0.0, %v582
    %v584 = vpop.f32.mrf.mxu0
    %585 = vmatprep.mubr.bf16.mxu0 %v424
    %586 = vmatmul.mubr.bf16.gmra.mxu0 %v423
    %v587 = vpop.f32.mrf.mxu0
    %v588 = vadd.f32 0.0, %v587
    %v589 = vpop.f32.mrf.mxu0
    %v590 = vpop.f32.mrf.mxu0
    %v591 = vadd.f32 0.0, %v590
    %v592 = vpop.f32.mrf.mxu0
    %593 = vmatprep.mubr.bf16.mxu0 %v426
    %594 = vmatmul.mubr.bf16.gmra.mxu0 %v425
    %v595 = vpop.f32.mrf.mxu0
    %v596 = vadd.f32 0.0, %v595
    %v597 = vpop.f32.mrf.mxu0
    %v598 = vpop.f32.mrf.mxu0
    %v599 = vadd.f32 0.0, %v598
    %v600 = vpop.f32.mrf.mxu0
    %601 = vmatprep.mubr.bf16.mxu0 %v428
    %602 = vmatmul.mubr.bf16.gmra.mxu0 %v427
    %v603 = vpop.f32.mrf.mxu0
    %v604 = vadd.f32 0.0, %v603
    %v605 = vpop.f32.mrf.mxu0
    %v606 = vpop.f32.mrf.mxu0
    %v607 = vadd.f32 0.0, %v606
    %v608 = vpop.f32.mrf.mxu0
    %609 = vmatprep.mubr.bf16.mxu0 %v430
    %610 = vmatmul.mubr.bf16.gmra.mxu0 %v429
    %v611 = vpop.f32.mrf.mxu0
    %v612 = vadd.f32 0.0, %v611
    %v613 = vpop.f32.mrf.mxu0
    %v614 = vpop.f32.mrf.mxu0
    %v615 = vadd.f32 0.0, %v614
    %v616 = vpop.f32.mrf.mxu0
    %617 = vmatprep.mubr.bf16.mxu0 %v432
    %618 = vmatmul.mubr.bf16.gmra.mxu0 %v431
    %v619 = vpop.f32.mrf.mxu0
    %v620 = vadd.f32 0.0, %v619
    %v621 = vpop.f32.mrf.mxu0
    %v622 = vpop.f32.mrf.mxu0
    %v623 = vadd.f32 0.0, %v622
    %v624 = vpop.f32.mrf.mxu0
    %625 = vdwg.mxu0
    %v626 = vpack.c.bf16 %v503, %v500
    %v627 = vpack.c.bf16 %v511, %v508
    %v628 = vpack.c.bf16 %v519, %v516
    %v629 = vpack.c.bf16 %v527, %v524
    %v630 = vpack.c.bf16 %v535, %v532
    %v631 = vpack.c.bf16 %v543, %v540
    %v632 = vpack.c.bf16 %v551, %v548
    %v633 = vpack.c.bf16 %v559, %v556
    %v634 = vpack.c.bf16 %v567, %v564
    %v635 = vpack.c.bf16 %v575, %v572
    %v636 = vpack.c.bf16 %v583, %v580
    %v637 = vpack.c.bf16 %v591, %v588
    %v638 = vpack.c.bf16 %v599, %v596
    %v639 = vpack.c.bf16 %v607, %v604
    %v640 = vpack.c.bf16 %v615, %v612
    %v641 = vpack.c.bf16 %v623, %v620
    %v643 = vlaneseq
    %v644 = vshrl.u32 %v643, 7
    %v645 = vsub.s32 0, %v644
    %v646 = vrot.slane %v285, %v645
    %v664 = vunpack.c.l.b16 %v269
    %v665 = vunpack.c.l.b16 %v270
    %v666 = vunpack.c.l.b16 %v271
    %v667 = vunpack.c.l.b16 %v272
    %v668 = vunpack.c.l.b16 %v273
    %v669 = vunpack.c.l.b16 %v274
    %v670 = vunpack.c.l.b16 %v275
    %v671 = vunpack.c.l.b16 %v276
    %v672 = vunpack.c.l.b16 %v277
    %v673 = vunpack.c.l.b16 %v278
    %v674 = vunpack.c.l.b16 %v279
    %v675 = vunpack.c.l.b16 %v280
    %v676 = vunpack.c.l.b16 %v281
    %v677 = vunpack.c.l.b16 %v282
    %v678 = vunpack.c.l.b16 %v283
    %v679 = vunpack.c.l.b16 %v284
    %v680 = vpack.c.b16 %v665, %v664
    %v681 = vpack.c.b16 %v667, %v666
    %v682 = vpack.c.b16 %v669, %v668
    %v683 = vpack.c.b16 %v671, %v670
    %v684 = vpack.c.b16 %v673, %v672
    %v685 = vpack.c.b16 %v675, %v674
    %v686 = vpack.c.b16 %v677, %v676
    %v687 = vpack.c.b16 %v679, %v678
    %696 = vmatprep.subr.bf16.mxu0 0
    %697 = vmatpush1.bf16.msra.mxu0 %v687
    %698 = vmatprep.subr.bf16.mxu0 0
    %699 = vmatpush1.bf16.msra.mxu0 %v686
    %700 = vmatprep.subr.bf16.mxu0 0
    %701 = vmatpush1.bf16.msra.mxu0 %v685
    %702 = vmatprep.subr.bf16.mxu0 0
    %703 = vmatpush1.bf16.msra.mxu0 %v684
    %704 = vmatprep.subr.bf16.mxu0 0
    %705 = vmatpush1.bf16.msra.mxu0 %v683
    %706 = vmatprep.subr.bf16.mxu0 0
    %707 = vmatpush1.bf16.msra.mxu0 %v682
    %708 = vmatprep.subr.bf16.mxu0 0
    %709 = vmatpush1.bf16.msra.mxu0 %v681
    %710 = vmatprep.subr.bf16.mxu0 0
    %711 = vmatpush1.bf16.msra.mxu0 %v680
    %712 = vmatprep.subr.bf16.mxu0 0
    %713 = vmatpush2.bf16.msra.mxu0 0
    %714 = vmatprep.subr.bf16.mxu0 0
    %715 = vmatpush2.bf16.msra.mxu0 0
    %716 = vmatprep.subr.bf16.mxu0 0
    %717 = vmatpush2.bf16.msra.mxu0 0
    %718 = vmatprep.subr.bf16.mxu0 0
    %719 = vmatpush2.bf16.msra.mxu0 0
    %720 = vmatprep.subr.bf16.mxu0 0
    %721 = vmatpush2.bf16.msra.mxu0 0
    %722 = vmatprep.subr.bf16.mxu0 0
    %723 = vmatpush2.bf16.msra.mxu0 0
    %724 = vmatprep.subr.bf16.mxu0 0
    %725 = vmatpush2.bf16.msra.mxu0 0
    %726 = vmatprep.subr.bf16.mxu0 0
    %727 = vmatpush2.bf16.msra.mxu0 0
    %728 = vmatprep.mubr.bf16.mxu0 0
    %729 = vmatmul.mubr.bf16.gmra.mxu0 %v626
    %v730 = vpop.f32.mrf.mxu0
    %v731 = vadd.f32 %v646, %v730
    %v732 = vpop.f32.mrf.mxu0
    %v733 = vpop.f32.mrf.mxu0
    %v734 = vadd.f32 %v646, %v733
    %v735 = vpop.f32.mrf.mxu0
    %736 = vmatprep.mubr.bf16.mxu0 0
    %737 = vmatmul.mubr.bf16.gmra.mxu0 %v627
    %v738 = vpop.f32.mrf.mxu0
    %v739 = vadd.f32 %v646, %v738
    %v740 = vpop.f32.mrf.mxu0
    %v741 = vpop.f32.mrf.mxu0
    %v742 = vadd.f32 %v646, %v741
    %v743 = vpop.f32.mrf.mxu0
    %744 = vmatprep.mubr.bf16.mxu0 0
    %745 = vmatmul.mubr.bf16.gmra.mxu0 %v628
    %v746 = vpop.f32.mrf.mxu0
    %v747 = vadd.f32 %v646, %v746
    %v748 = vpop.f32.mrf.mxu0
    %v749 = vpop.f32.mrf.mxu0
    %v750 = vadd.f32 %v646, %v749
    %v751 = vpop.f32.mrf.mxu0
    %752 = vmatprep.mubr.bf16.mxu0 0
    %753 = vmatmul.mubr.bf16.gmra.mxu0 %v629
    %v754 = vpop.f32.mrf.mxu0
    %v755 = vadd.f32 %v646, %v754
    %v756 = vpop.f32.mrf.mxu0
    %v757 = vpop.f32.mrf.mxu0
    %v758 = vadd.f32 %v646, %v757
    %v759 = vpop.f32.mrf.mxu0
    %760 = vmatprep.mubr.bf16.mxu0 0
    %761 = vmatmul.mubr.bf16.gmra.mxu0 %v630
    %v762 = vpop.f32.mrf.mxu0
    %v763 = vadd.f32 %v646, %v762
    %v764 = vpop.f32.mrf.mxu0
    %v765 = vpop.f32.mrf.mxu0
    %v766 = vadd.f32 %v646, %v765
    %v767 = vpop.f32.mrf.mxu0
    %768 = vmatprep.mubr.bf16.mxu0 0
    %769 = vmatmul.mubr.bf16.gmra.mxu0 %v631
    %v770 = vpop.f32.mrf.mxu0
    %v771 = vadd.f32 %v646, %v770
    %v772 = vpop.f32.mrf.mxu0
    %v773 = vpop.f32.mrf.mxu0
    %v774 = vadd.f32 %v646, %v773
    %v775 = vpop.f32.mrf.mxu0
    %776 = vmatprep.mubr.bf16.mxu0 0
    %777 = vmatmul.mubr.bf16.gmra.mxu0 %v632
    %v778 = vpop.f32.mrf.mxu0
    %v779 = vadd.f32 %v646, %v778
    %v780 = vpop.f32.mrf.mxu0
    %v781 = vpop.f32.mrf.mxu0
    %v782 = vadd.f32 %v646, %v781
    %v783 = vpop.f32.mrf.mxu0
    %784 = vmatprep.mubr.bf16.mxu0 0
    %785 = vmatmul.mubr.bf16.gmra.mxu0 %v633
    %v786 = vpop.f32.mrf.mxu0
    %v787 = vadd.f32 %v646, %v786
    %v788 = vpop.f32.mrf.mxu0
    %v789 = vpop.f32.mrf.mxu0
    %v790 = vadd.f32 %v646, %v789
    %v791 = vpop.f32.mrf.mxu0
    %792 = vmatprep.mubr.bf16.mxu0 0
    %793 = vmatmul.mubr.bf16.gmra.mxu0 %v634
    %v794 = vpop.f32.mrf.mxu0
    %v795 = vadd.f32 %v646, %v794
    %v796 = vpop.f32.mrf.mxu0
    %v797 = vpop.f32.mrf.mxu0
    %v798 = vadd.f32 %v646, %v797
    %v799 = vpop.f32.mrf.mxu0
    %800 = vmatprep.mubr.bf16.mxu0 0
    %801 = vmatmul.mubr.bf16.gmra.mxu0 %v635
    %v802 = vpop.f32.mrf.mxu0
    %v803 = vadd.f32 %v646, %v802
    %v804 = vpop.f32.mrf.mxu0
    %v805 = vpop.f32.mrf.mxu0
    %v806 = vadd.f32 %v646, %v805
    %v807 = vpop.f32.mrf.mxu0
    %808 = vmatprep.mubr.bf16.mxu0 0
    %809 = vmatmul.mubr.bf16.gmra.mxu0 %v636
    %v810 = vpop.f32.mrf.mxu0
    %v811 = vadd.f32 %v646, %v810
    %v812 = vpop.f32.mrf.mxu0
    %v813 = vpop.f32.mrf.mxu0
    %v814 = vadd.f32 %v646, %v813
    %v815 = vpop.f32.mrf.mxu0
    %816 = vmatprep.mubr.bf16.mxu0 0
    %817 = vmatmul.mubr.bf16.gmra.mxu0 %v637
    %v818 = vpop.f32.mrf.mxu0
    %v819 = vadd.f32 %v646, %v818
    %v820 = vpop.f32.mrf.mxu0
    %v821 = vpop.f32.mrf.mxu0
    %v822 = vadd.f32 %v646, %v821
    %v823 = vpop.f32.mrf.mxu0
    %824 = vmatprep.mubr.bf16.mxu0 0
    %825 = vmatmul.mubr.bf16.gmra.mxu0 %v638
    %v826 = vpop.f32.mrf.mxu0
    %v827 = vadd.f32 %v646, %v826
    %v828 = vpop.f32.mrf.mxu0
    %v829 = vpop.f32.mrf.mxu0
    %v830 = vadd.f32 %v646, %v829
    %v831 = vpop.f32.mrf.mxu0
    %832 = vmatprep.mubr.bf16.mxu0 0
    %833 = vmatmul.mubr.bf16.gmra.mxu0 %v639
    %v834 = vpop.f32.mrf.mxu0
    %v835 = vadd.f32 %v646, %v834
    %v836 = vpop.f32.mrf.mxu0
    %v837 = vpop.f32.mrf.mxu0
    %v838 = vadd.f32 %v646, %v837
    %v839 = vpop.f32.mrf.mxu0
    %840 = vmatprep.mubr.bf16.mxu0 0
    %841 = vmatmul.mubr.bf16.gmra.mxu0 %v640
    %v842 = vpop.f32.mrf.mxu0
    %v843 = vadd.f32 %v646, %v842
    %v844 = vpop.f32.mrf.mxu0
    %v845 = vpop.f32.mrf.mxu0
    %v846 = vadd.f32 %v646, %v845
    %v847 = vpop.f32.mrf.mxu0
    %848 = vmatprep.mubr.bf16.mxu0 0
    %849 = vmatmul.mubr.bf16.gmra.mxu0 %v641
    %v850 = vpop.f32.mrf.mxu0
    %v851 = vadd.f32 %v646, %v850
    %v852 = vpop.f32.mrf.mxu0
    %v853 = vpop.f32.mrf.mxu0
    %v854 = vadd.f32 %v646, %v853
    %v855 = vpop.f32.mrf.mxu0
    %856 = vdwg.mxu0
    %v857 = vmax.f32 %v731, 0.0
    %v858 = vmax.f32 %v734, 0.0
    %v859 = vmax.f32 %v739, 0.0
    %v860 = vmax.f32 %v742, 0.0
    %v861 = vmax.f32 %v747, 0.0
    %v862 = vmax.f32 %v750, 0.0
    %v863 = vmax.f32 %v755, 0.0
    %v864 = vmax.f32 %v758, 0.0
    %v865 = vmax.f32 %v763, 0.0
    %v866 = vmax.f32 %v766, 0.0
    %v867 = vmax.f32 %v771, 0.0
    %v868 = vmax.f32 %v774, 0.0
    %v869 = vmax.f32 %v779, 0.0
    %v870 = vmax.f32 %v782, 0.0
    %v871 = vmax.f32 %v787, 0.0
    %v872 = vmax.f32 %v790, 0.0
    %v873 = vmax.f32 %v795, 0.0
    %v874 = vmax.f32 %v798, 0.0
    %v875 = vmax.f32 %v803, 0.0
    %v876 = vmax.f32 %v806, 0.0
    %v877 = vmax.f32 %v811, 0.0
    %v878 = vmax.f32 %v814, 0.0
    %v879 = vmax.f32 %v819, 0.0
    %v880 = vmax.f32 %v822, 0.0
    %v881 = vmax.f32 %v827, 0.0
    %v882 = vmax.f32 %v830, 0.0
    %v883 = vmax.f32 %v835, 0.0
    %v884 = vmax.f32 %v838, 0.0
    %v885 = vmax.f32 %v843, 0.0
    %v886 = vmax.f32 %v846, 0.0
    %v887 = vmax.f32 %v851, 0.0
    %v888 = vmax.f32 %v854, 0.0
    %v889 = vpack.c.bf16 %v858, %v857
    %v890 = vpack.c.bf16 %v860, %v859
    %v891 = vpack.c.bf16 %v862, %v861
    %v892 = vpack.c.bf16 %v864, %v863
    %v893 = vpack.c.bf16 %v866, %v865
    %v894 = vpack.c.bf16 %v868, %v867
    %v895 = vpack.c.bf16 %v870, %v869
    %v896 = vpack.c.bf16 %v872, %v871
    %v897 = vpack.c.bf16 %v874, %v873
    %v898 = vpack.c.bf16 %v876, %v875
    %v899 = vpack.c.bf16 %v878, %v877
    %v900 = vpack.c.bf16 %v880, %v879
    %v901 = vpack.c.bf16 %v882, %v881
    %v902 = vpack.c.bf16 %v884, %v883
    %v903 = vpack.c.bf16 %v886, %v885
    %v904 = vpack.c.bf16 %v888, %v887
    %v906 = vlaneseq
    %v907 = vshrl.u32 %v906, 7
    %v908 = vsub.s32 0, %v907
    %v909 = vrot.slane %v302, %v908
    %v927 = vunpack.c.l.b16 %v286
    %v928 = vunpack.c.l.b16 %v287
    %v929 = vunpack.c.l.b16 %v288
    %v930 = vunpack.c.l.b16 %v289
    %v931 = vunpack.c.l.b16 %v290
    %v932 = vunpack.c.l.b16 %v291
    %v933 = vunpack.c.l.b16 %v292
    %v934 = vunpack.c.l.b16 %v293
    %v935 = vunpack.c.l.b16 %v294
    %v936 = vunpack.c.l.b16 %v295
    %v937 = vunpack.c.l.b16 %v296
    %v938 = vunpack.c.l.b16 %v297
    %v939 = vunpack.c.l.b16 %v298
    %v940 = vunpack.c.l.b16 %v299
    %v941 = vunpack.c.l.b16 %v300
    %v942 = vunpack.c.l.b16 %v301
    %v943 = vpack.c.b16 %v928, %v927
    %v944 = vpack.c.b16 %v930, %v929
    %v945 = vpack.c.b16 %v932, %v931
    %v946 = vpack.c.b16 %v934, %v933
    %v947 = vpack.c.b16 %v936, %v935
    %v948 = vpack.c.b16 %v938, %v937
    %v949 = vpack.c.b16 %v940, %v939
    %v950 = vpack.c.b16 %v942, %v941
    %959 = vmatprep.subr.bf16.mxu0 0
    %960 = vmatpush1.bf16.msra.mxu0 %v950
    %961 = vmatprep.subr.bf16.mxu0 0
    %962 = vmatpush1.bf16.msra.mxu0 %v949
    %963 = vmatprep.subr.bf16.mxu0 0
    %964 = vmatpush1.bf16.msra.mxu0 %v948
    %965 = vmatprep.subr.bf16.mxu0 0
    %966 = vmatpush1.bf16.msra.mxu0 %v947
    %967 = vmatprep.subr.bf16.mxu0 0
    %968 = vmatpush1.bf16.msra.mxu0 %v946
    %969 = vmatprep.subr.bf16.mxu0 0
    %970 = vmatpush1.bf16.msra.mxu0 %v945
    %971 = vmatprep.subr.bf16.mxu0 0
    %972 = vmatpush1.bf16.msra.mxu0 %v944
    %973 = vmatprep.subr.bf16.mxu0 0
    %974 = vmatpush1.bf16.msra.mxu0 %v943
    %975 = vmatprep.subr.bf16.mxu0 0
    %976 = vmatpush2.bf16.msra.mxu0 0
    %977 = vmatprep.subr.bf16.mxu0 0
    %978 = vmatpush2.bf16.msra.mxu0 0
    %979 = vmatprep.subr.bf16.mxu0 0
    %980 = vmatpush2.bf16.msra.mxu0 0
    %981 = vmatprep.subr.bf16.mxu0 0
    %982 = vmatpush2.bf16.msra.mxu0 0
    %983 = vmatprep.subr.bf16.mxu0 0
    %984 = vmatpush2.bf16.msra.mxu0 0
    %985 = vmatprep.subr.bf16.mxu0 0
    %986 = vmatpush2.bf16.msra.mxu0 0
    %987 = vmatprep.subr.bf16.mxu0 0
    %988 = vmatpush2.bf16.msra.mxu0 0
    %989 = vmatprep.subr.bf16.mxu0 0
    %990 = vmatpush2.bf16.msra.mxu0 0
    %991 = vmatprep.mubr.bf16.mxu0 0
    %992 = vmatmul.mubr.bf16.gmra.mxu0 %v889
    %v993 = vpop.f32.mrf.mxu0
    %v994 = vadd.f32 %v909, %v993
    %v995 = vpop.f32.mrf.mxu0
    %v996 = vpop.f32.mrf.mxu0
    %v997 = vadd.f32 %v909, %v996
    %v998 = vpop.f32.mrf.mxu0
    %999 = vmatprep.mubr.bf16.mxu0 0
    %1000 = vmatmul.mubr.bf16.gmra.mxu0 %v890
    %v1001 = vpop.f32.mrf.mxu0
    %v1002 = vadd.f32 %v909, %v1001
    %v1003 = vpop.f32.mrf.mxu0
    %v1004 = vpop.f32.mrf.mxu0
    %v1005 = vadd.f32 %v909, %v1004
    %v1006 = vpop.f32.mrf.mxu0
    %1007 = vmatprep.mubr.bf16.mxu0 0
    %1008 = vmatmul.mubr.bf16.gmra.mxu0 %v891
    %v1009 = vpop.f32.mrf.mxu0
    %v1010 = vadd.f32 %v909, %v1009
    %v1011 = vpop.f32.mrf.mxu0
    %v1012 = vpop.f32.mrf.mxu0
    %v1013 = vadd.f32 %v909, %v1012
    %v1014 = vpop.f32.mrf.mxu0
    %1015 = vmatprep.mubr.bf16.mxu0 0
    %1016 = vmatmul.mubr.bf16.gmra.mxu0 %v892
    %v1017 = vpop.f32.mrf.mxu0
    %v1018 = vadd.f32 %v909, %v1017
    %v1019 = vpop.f32.mrf.mxu0
    %v1020 = vpop.f32.mrf.mxu0
    %v1021 = vadd.f32 %v909, %v1020
    %v1022 = vpop.f32.mrf.mxu0
    %1023 = vmatprep.mubr.bf16.mxu0 0
    %1024 = vmatmul.mubr.bf16.gmra.mxu0 %v893
    %v1025 = vpop.f32.mrf.mxu0
    %v1026 = vadd.f32 %v909, %v1025
    %v1027 = vpop.f32.mrf.mxu0
    %v1028 = vpop.f32.mrf.mxu0
    %v1029 = vadd.f32 %v909, %v1028
    %v1030 = vpop.f32.mrf.mxu0
    %1031 = vmatprep.mubr.bf16.mxu0 0
    %1032 = vmatmul.mubr.bf16.gmra.mxu0 %v894
    %v1033 = vpop.f32.mrf.mxu0
    %v1034 = vadd.f32 %v909, %v1033
    %v1035 = vpop.f32.mrf.mxu0
    %v1036 = vpop.f32.mrf.mxu0
    %v1037 = vadd.f32 %v909, %v1036
    %v1038 = vpop.f32.mrf.mxu0
    %1039 = vmatprep.mubr.bf16.mxu0 0
    %1040 = vmatmul.mubr.bf16.gmra.mxu0 %v895
    %v1041 = vpop.f32.mrf.mxu0
    %v1042 = vadd.f32 %v909, %v1041
    %v1043 = vpop.f32.mrf.mxu0
    %v1044 = vpop.f32.mrf.mxu0
    %v1045 = vadd.f32 %v909, %v1044
    %v1046 = vpop.f32.mrf.mxu0
    %1047 = vmatprep.mubr.bf16.mxu0 0
    %1048 = vmatmul.mubr.bf16.gmra.mxu0 %v896
    %v1049 = vpop.f32.mrf.mxu0
    %v1050 = vadd.f32 %v909, %v1049
    %v1051 = vpop.f32.mrf.mxu0
    %v1052 = vpop.f32.mrf.mxu0
    %v1053 = vadd.f32 %v909, %v1052
    %v1054 = vpop.f32.mrf.mxu0
    %1055 = vmatprep.mubr.bf16.mxu0 0
    %1056 = vmatmul.mubr.bf16.gmra.mxu0 %v897
    %v1057 = vpop.f32.mrf.mxu0
    %v1058 = vadd.f32 %v909, %v1057
    %v1059 = vpop.f32.mrf.mxu0
    %v1060 = vpop.f32.mrf.mxu0
    %v1061 = vadd.f32 %v909, %v1060
    %v1062 = vpop.f32.mrf.mxu0
    %1063 = vmatprep.mubr.bf16.mxu0 0
    %1064 = vmatmul.mubr.bf16.gmra.mxu0 %v898
    %v1065 = vpop.f32.mrf.mxu0
    %v1066 = vadd.f32 %v909, %v1065
    %v1067 = vpop.f32.mrf.mxu0
    %v1068 = vpop.f32.mrf.mxu0
    %v1069 = vadd.f32 %v909, %v1068
    %v1070 = vpop.f32.mrf.mxu0
    %1071 = vmatprep.mubr.bf16.mxu0 0
    %1072 = vmatmul.mubr.bf16.gmra.mxu0 %v899
    %v1073 = vpop.f32.mrf.mxu0
    %v1074 = vadd.f32 %v909, %v1073
    %v1075 = vpop.f32.mrf.mxu0
    %v1076 = vpop.f32.mrf.mxu0
    %v1077 = vadd.f32 %v909, %v1076
    %v1078 = vpop.f32.mrf.mxu0
    %1079 = vmatprep.mubr.bf16.mxu0 0
    %1080 = vmatmul.mubr.bf16.gmra.mxu0 %v900
    %v1081 = vpop.f32.mrf.mxu0
    %v1082 = vadd.f32 %v909, %v1081
    %v1083 = vpop.f32.mrf.mxu0
    %v1084 = vpop.f32.mrf.mxu0
    %v1085 = vadd.f32 %v909, %v1084
    %v1086 = vpop.f32.mrf.mxu0
    %1087 = vmatprep.mubr.bf16.mxu0 0
    %1088 = vmatmul.mubr.bf16.gmra.mxu0 %v901
    %v1089 = vpop.f32.mrf.mxu0
    %v1090 = vadd.f32 %v909, %v1089
    %v1091 = vpop.f32.mrf.mxu0
    %v1092 = vpop.f32.mrf.mxu0
    %v1093 = vadd.f32 %v909, %v1092
    %v1094 = vpop.f32.mrf.mxu0
    %1095 = vmatprep.mubr.bf16.mxu0 0
    %1096 = vmatmul.mubr.bf16.gmra.mxu0 %v902
    %v1097 = vpop.f32.mrf.mxu0
    %v1098 = vadd.f32 %v909, %v1097
    %v1099 = vpop.f32.mrf.mxu0
    %v1100 = vpop.f32.mrf.mxu0
    %v1101 = vadd.f32 %v909, %v1100
    %v1102 = vpop.f32.mrf.mxu0
    %1103 = vmatprep.mubr.bf16.mxu0 0
    %1104 = vmatmul.mubr.bf16.gmra.mxu0 %v903
    %v1105 = vpop.f32.mrf.mxu0
    %v1106 = vadd.f32 %v909, %v1105
    %v1107 = vpop.f32.mrf.mxu0
    %v1108 = vpop.f32.mrf.mxu0
    %v1109 = vadd.f32 %v909, %v1108
    %v1110 = vpop.f32.mrf.mxu0
    %1111 = vmatprep.mubr.bf16.mxu0 0
    %1112 = vmatmul.mubr.bf16.gmra.mxu0 %v904
    %v1113 = vpop.f32.mrf.mxu0
    %v1114 = vadd.f32 %v909, %v1113
    %v1115 = vpop.f32.mrf.mxu0
    %v1116 = vpop.f32.mrf.mxu0
    %v1117 = vadd.f32 %v909, %v1116
    %v1118 = vpop.f32.mrf.mxu0
    %1119 = vdwg.mxu0
    %v1120 = vmax.f32 %v994, 0.0
    %v1121 = vmax.f32 %v997, 0.0
    %v1122 = vmax.f32 %v1002, 0.0
    %v1123 = vmax.f32 %v1005, 0.0
    %v1124 = vmax.f32 %v1010, 0.0
    %v1125 = vmax.f32 %v1013, 0.0
    %v1126 = vmax.f32 %v1018, 0.0
    %v1127 = vmax.f32 %v1021, 0.0
    %v1128 = vmax.f32 %v1026, 0.0
    %v1129 = vmax.f32 %v1029, 0.0
    %v1130 = vmax.f32 %v1034, 0.0
    %v1131 = vmax.f32 %v1037, 0.0
    %v1132 = vmax.f32 %v1042, 0.0
    %v1133 = vmax.f32 %v1045, 0.0
    %v1134 = vmax.f32 %v1050, 0.0
    %v1135 = vmax.f32 %v1053, 0.0
    %v1136 = vmax.f32 %v1058, 0.0
    %v1137 = vmax.f32 %v1061, 0.0
    %v1138 = vmax.f32 %v1066, 0.0
    %v1139 = vmax.f32 %v1069, 0.0
    %v1140 = vmax.f32 %v1074, 0.0
    %v1141 = vmax.f32 %v1077, 0.0
    %v1142 = vmax.f32 %v1082, 0.0
    %v1143 = vmax.f32 %v1085, 0.0
    %v1144 = vmax.f32 %v1090, 0.0
    %v1145 = vmax.f32 %v1093, 0.0
    %v1146 = vmax.f32 %v1098, 0.0
    %v1147 = vmax.f32 %v1101, 0.0
    %v1148 = vmax.f32 %v1106, 0.0
    %v1149 = vmax.f32 %v1109, 0.0
    %v1150 = vmax.f32 %v1114, 0.0
    %v1151 = vmax.f32 %v1117, 0.0
    %1153 = vset.pattern.permute.xlu0 0
    %1154 = vperm.xlu0 %1153, %v189
    %v1155 = vpop.permute.xlu0 %1154
    %1158 = vset.pattern.permute.xlu0 0
    %1159 = vperm.xlu0 %1158, %v190
    %v1160 = vpop.permute.xlu0 %1159
    %1163 = vset.pattern.permute.xlu0 0
    %1164 = vperm.xlu0 %1163, %v191
    %v1165 = vpop.permute.xlu0 %1164
    %1168 = vset.pattern.permute.xlu0 0
    %1169 = vperm.xlu0 %1168, %v192
    %v1170 = vpop.permute.xlu0 %1169
    %1173 = vset.pattern.permute.xlu0 0
    %1174 = vperm.xlu0 %1173, %v193
    %v1175 = vpop.permute.xlu0 %1174
    %1178 = vset.pattern.permute.xlu0 0
    %1179 = vperm.xlu0 %1178, %v194
    %v1180 = vpop.permute.xlu0 %1179
    %1183 = vset.pattern.permute.xlu0 0
    %1184 = vperm.xlu0 %1183, %v195
    %v1185 = vpop.permute.xlu0 %1184
    %1188 = vset.pattern.permute.xlu0 0
    %1189 = vperm.xlu0 %1188, %v196
    %v1190 = vpop.permute.xlu0 %1189
    %1193 = vset.pattern.permute.xlu0 0
    %1194 = vperm.xlu0 %1193, %v197
    %v1195 = vpop.permute.xlu0 %1194
    %1198 = vset.pattern.permute.xlu0 0
    %1199 = vperm.xlu0 %1198, %v198
    %v1200 = vpop.permute.xlu0 %1199
    %1203 = vset.pattern.permute.xlu0 0
    %1204 = vperm.xlu0 %1203, %v199
    %v1205 = vpop.permute.xlu0 %1204
    %1208 = vset.pattern.permute.xlu0 0
    %1209 = vperm.xlu0 %1208, %v200
    %v1210 = vpop.permute.xlu0 %1209
    %1213 = vset.pattern.permute.xlu0 0
    %1214 = vperm.xlu0 %1213, %v201
    %v1215 = vpop.permute.xlu0 %1214
    %1218 = vset.pattern.permute.xlu0 0
    %1219 = vperm.xlu0 %1218, %v202
    %v1220 = vpop.permute.xlu0 %1219
    %1223 = vset.pattern.permute.xlu0 0
    %1224 = vperm.xlu0 %1223, %v203
    %v1225 = vpop.permute.xlu0 %1224
    %1228 = vset.pattern.permute.xlu0 0
    %1229 = vperm.xlu0 %1228, %v204
    %v1230 = vpop.permute.xlu0 %1229
    %1233 = vset.pattern.permute.xlu0 0
    %1234 = vperm.xlu0 %1233, %v205
    %v1235 = vpop.permute.xlu0 %1234
    %1238 = vset.pattern.permute.xlu0 0
    %1239 = vperm.xlu0 %1238, %v206
    %v1240 = vpop.permute.xlu0 %1239
    %1243 = vset.pattern.permute.xlu0 0
    %1244 = vperm.xlu0 %1243, %v207
    %v1245 = vpop.permute.xlu0 %1244
    %1248 = vset.pattern.permute.xlu0 0
    %1249 = vperm.xlu0 %1248, %v208
    %v1250 = vpop.permute.xlu0 %1249
    %1253 = vset.pattern.permute.xlu0 0
    %1254 = vperm.xlu0 %1253, %v209
    %v1255 = vpop.permute.xlu0 %1254
    %1258 = vset.pattern.permute.xlu0 0
    %1259 = vperm.xlu0 %1258, %v210
    %v1260 = vpop.permute.xlu0 %1259
    %1263 = vset.pattern.permute.xlu0 0
    %1264 = vperm.xlu0 %1263, %v211
    %v1265 = vpop.permute.xlu0 %1264
    %1268 = vset.pattern.permute.xlu0 0
    %1269 = vperm.xlu0 %1268, %v212
    %v1270 = vpop.permute.xlu0 %1269
    %1273 = vset.pattern.permute.xlu0 0
    %1274 = vperm.xlu0 %1273, %v213
    %v1275 = vpop.permute.xlu0 %1274
    %1278 = vset.pattern.permute.xlu0 0
    %1279 = vperm.xlu0 %1278, %v214
    %v1280 = vpop.permute.xlu0 %1279
    %1283 = vset.pattern.permute.xlu0 0
    %1284 = vperm.xlu0 %1283, %v215
    %v1285 = vpop.permute.xlu0 %1284
    %1288 = vset.pattern.permute.xlu0 0
    %1289 = vperm.xlu0 %1288, %v216
    %v1290 = vpop.permute.xlu0 %1289
    %1293 = vset.pattern.permute.xlu0 0
    %1294 = vperm.xlu0 %1293, %v217
    %v1295 = vpop.permute.xlu0 %1294
    %1298 = vset.pattern.permute.xlu0 0
    %1299 = vperm.xlu0 %1298, %v218
    %v1300 = vpop.permute.xlu0 %1299
    %1303 = vset.pattern.permute.xlu0 0
    %1304 = vperm.xlu0 %1303, %v219
    %v1305 = vpop.permute.xlu0 %1304
    %1308 = vset.pattern.permute.xlu0 0
    %1309 = vperm.xlu0 %1308, %v220
    %v1310 = vpop.permute.xlu0 %1309
    %v1312 = vmul.f32 %v1120, %v1155
    %v1313 = vmul.f32 %v1121, %v1160
    %v1314 = vmul.f32 %v1122, %v1165
    %v1315 = vmul.f32 %v1123, %v1170
    %v1316 = vmul.f32 %v1124, %v1175
    %v1317 = vmul.f32 %v1125, %v1180
    %v1318 = vmul.f32 %v1126, %v1185
    %v1319 = vmul.f32 %v1127, %v1190
    %v1320 = vmul.f32 %v1128, %v1195
    %v1321 = vmul.f32 %v1129, %v1200
    %v1322 = vmul.f32 %v1130, %v1205
    %v1323 = vmul.f32 %v1131, %v1210
    %v1324 = vmul.f32 %v1132, %v1215
    %v1325 = vmul.f32 %v1133, %v1220
    %v1326 = vmul.f32 %v1134, %v1225
    %v1327 = vmul.f32 %v1135, %v1230
    %v1328 = vmul.f32 %v1136, %v1235
    %v1329 = vmul.f32 %v1137, %v1240
    %v1330 = vmul.f32 %v1138, %v1245
    %v1331 = vmul.f32 %v1139, %v1250
    %v1332 = vmul.f32 %v1140, %v1255
    %v1333 = vmul.f32 %v1141, %v1260
    %v1334 = vmul.f32 %v1142, %v1265
    %v1335 = vmul.f32 %v1143, %v1270
    %v1336 = vmul.f32 %v1144, %v1275
    %v1337 = vmul.f32 %v1145, %v1280
    %v1338 = vmul.f32 %v1146, %v1285
    %v1339 = vmul.f32 %v1147, %v1290
    %v1340 = vmul.f32 %v1148, %v1295
    %v1341 = vmul.f32 %v1149, %v1300
    %v1342 = vmul.f32 %v1150, %v1305
    %v1343 = vmul.f32 %v1151, %v1310
    %v1344 = vadd.f32 %v1312, %v1313
    %v1345 = vadd.f32 %v1344, %v1314
    %v1346 = vadd.f32 %v1345, %v1315
    %v1347 = vadd.f32 %v1346, %v1316
    %v1348 = vadd.f32 %v1347, %v1317
    %v1349 = vadd.f32 %v1348, %v1318
    %v1350 = vadd.f32 %v1349, %v1319
    %v1351 = vadd.f32 %v1350, %v1320
    %v1352 = vadd.f32 %v1351, %v1321
    %v1353 = vadd.f32 %v1352, %v1322
    %v1354 = vadd.f32 %v1353, %v1323
    %v1355 = vadd.f32 %v1354, %v1324
    %v1356 = vadd.f32 %v1355, %v1325
    %v1357 = vadd.f32 %v1356, %v1326
    %v1358 = vadd.f32 %v1357, %v1327
    %v1359 = vadd.f32 %v1358, %v1328
    %v1360 = vadd.f32 %v1359, %v1329
    %v1361 = vadd.f32 %v1360, %v1330
    %v1362 = vadd.f32 %v1361, %v1331
    %v1363 = vadd.f32 %v1362, %v1332
    %v1364 = vadd.f32 %v1363, %v1333
    %v1365 = vadd.f32 %v1364, %v1334
    %v1366 = vadd.f32 %v1365, %v1335
    %v1367 = vadd.f32 %v1366, %v1336
    %v1368 = vadd.f32 %v1367, %v1337
    %v1369 = vadd.f32 %v1368, %v1338
    %v1370 = vadd.f32 %v1369, %v1339
    %v1371 = vadd.f32 %v1370, %v1340
    %v1372 = vadd.f32 %v1371, %v1341
    %v1373 = vadd.f32 %v1372, %v1342
    %v1374 = vadd.f32 %v1373, %v1343
    %v1375 = vrot.slane %v1374, 4
    %v1376 = vadd.f32 %v1374, %v1375
    %v1377 = vrot.slane %v1376, 2
    %v1378 = vadd.f32 %v1376, %v1377
    %v1379 = vrot.slane %v1378, 1
    %v1380 = vadd.f32 %v1378, %v1379
    %v1381 = vmul.f32 %v1312, %v1312
    %v1382 = vmul.f32 %v1313, %v1313
    %v1383 = vmul.f32 %v1314, %v1314
    %v1384 = vmul.f32 %v1315, %v1315
    %v1385 = vmul.f32 %v1316, %v1316
    %v1386 = vmul.f32 %v1317, %v1317
    %v1387 = vmul.f32 %v1318, %v1318
    %v1388 = vmul.f32 %v1319, %v1319
    %v1389 = vmul.f32 %v1320, %v1320
    %v1390 = vmul.f32 %v1321, %v1321
    %v1391 = vmul.f32 %v1322, %v1322
    %v1392 = vmul.f32 %v1323, %v1323
    %v1393 = vmul.f32 %v1324, %v1324
    %v1394 = vmul.f32 %v1325, %v1325
    %v1395 = vmul.f32 %v1326, %v1326
    %v1396 = vmul.f32 %v1327, %v1327
    %v1397 = vmul.f32 %v1328, %v1328
    %v1398 = vmul.f32 %v1329, %v1329
    %v1399 = vmul.f32 %v1330, %v1330
    %v1400 = vmul.f32 %v1331, %v1331
    %v1401 = vmul.f32 %v1332, %v1332
    %v1402 = vmul.f32 %v1333, %v1333
    %v1403 = vmul.f32 %v1334, %v1334
    %v1404 = vmul.f32 %v1335, %v1335
    %v1405 = vmul.f32 %v1336, %v1336
    %v1406 = vmul.f32 %v1337, %v1337
    %v1407 = vmul.f32 %v1338, %v1338
    %v1408 = vmul.f32 %v1339, %v1339
    %v1409 = vmul.f32 %v1340, %v1340
    %v1410 = vmul.f32 %v1341, %v1341
    %v1411 = vmul.f32 %v1342, %v1342
    %v1412 = vmul.f32 %v1343, %v1343
    %v1413 = vadd.f32 %v1381, %v1382
    %v1414 = vadd.f32 %v1413, %v1383
    %v1415 = vadd.f32 %v1414, %v1384
    %v1416 = vadd.f32 %v1415, %v1385
    %v1417 = vadd.f32 %v1416, %v1386
    %v1418 = vadd.f32 %v1417, %v1387
    %v1419 = vadd.f32 %v1418, %v1388
    %v1420 = vadd.f32 %v1419, %v1389
    %v1421 = vadd.f32 %v1420, %v1390
    %v1422 = vadd.f32 %v1421, %v1391
    %v1423 = vadd.f32 %v1422, %v1392
    %v1424 = vadd.f32 %v1423, %v1393
    %v1425 = vadd.f32 %v1424, %v1394
    %v1426 = vadd.f32 %v1425, %v1395
    %v1427 = vadd.f32 %v1426, %v1396
    %v1428 = vadd.f32 %v1427, %v1397
    %v1429 = vadd.f32 %v1428, %v1398
    %v1430 = vadd.f32 %v1429, %v1399
    %v1431 = vadd.f32 %v1430, %v1400
    %v1432 = vadd.f32 %v1431, %v1401
    %v1433 = vadd.f32 %v1432, %v1402
    %v1434 = vadd.f32 %v1433, %v1403
    %v1435 = vadd.f32 %v1434, %v1404
    %v1436 = vadd.f32 %v1435, %v1405
    %v1437 = vadd.f32 %v1436, %v1406
    %v1438 = vadd.f32 %v1437, %v1407
    %v1439 = vadd.f32 %v1438, %v1408
    %v1440 = vadd.f32 %v1439, %v1409
    %v1441 = vadd.f32 %v1440, %v1410
    %v1442 = vadd.f32 %v1441, %v1411
    %v1443 = vadd.f32 %v1442, %v1412
    %v1444 = vrot.slane %v1443, 4
    %v1445 = vadd.f32 %v1443, %v1444
    %v1446 = vrot.slane %v1445, 2
    %v1447 = vadd.f32 %v1445, %v1446
    %v1448 = vrot.slane %v1447, 1
    %v1449 = vadd.f32 %v1447, %v1448
    %v1450 = vstv %s124
    %v1451 = vmul.f32 %v1380, %v1450
    %v1452 = vmul.f32 %v1449, %v1450
    %v1453 = vmul.f32 %v1451, %v1451
    %v1454 = vsub.f32 %v1452, %v1453
    %v1455 = vmax.f32 %v1454, 0.0
    %v1456 = vsub.f32 %v1312, %v1451
    %v1457 = vsub.f32 %v1313, %v1451
    %v1458 = vsub.f32 %v1314, %v1451
    %v1459 = vsub.f32 %v1315, %v1451
    %v1460 = vsub.f32 %v1316, %v1451
    %v1461 = vsub.f32 %v1317, %v1451
    %v1462 = vsub.f32 %v1318, %v1451
    %v1463 = vsub.f32 %v1319, %v1451
    %v1464 = vsub.f32 %v1320, %v1451
    %v1465 = vsub.f32 %v1321, %v1451
    %v1466 = vsub.f32 %v1322, %v1451
    %v1467 = vsub.f32 %v1323, %v1451
    %v1468 = vsub.f32 %v1324, %v1451
    %v1469 = vsub.f32 %v1325, %v1451
    %v1470 = vsub.f32 %v1326, %v1451
    %v1471 = vsub.f32 %v1327, %v1451
    %v1472 = vsub.f32 %v1328, %v1451
    %v1473 = vsub.f32 %v1329, %v1451
    %v1474 = vsub.f32 %v1330, %v1451
    %v1475 = vsub.f32 %v1331, %v1451
    %v1476 = vsub.f32 %v1332, %v1451
    %v1477 = vsub.f32 %v1333, %v1451
    %v1478 = vsub.f32 %v1334, %v1451
    %v1479 = vsub.f32 %v1335, %v1451
    %v1480 = vsub.f32 %v1336, %v1451
    %v1481 = vsub.f32 %v1337, %v1451
    %v1482 = vsub.f32 %v1338, %v1451
    %v1483 = vsub.f32 %v1339, %v1451
    %v1484 = vsub.f32 %v1340, %v1451
    %v1485 = vsub.f32 %v1341, %v1451
    %v1486 = vsub.f32 %v1342, %v1451
    %v1487 = vsub.f32 %v1343, %v1451
    %v1488 = vadd.f32 %v1455, 1e-05
    %v1489 = vrsqrt.pop %v1488
    %v1490 = vmul.f32 %v1456, %v1489
    %v1491 = vmul.f32 %v1457, %v1489
    %v1492 = vmul.f32 %v1458, %v1489
    %v1493 = vmul.f32 %v1459, %v1489
    %v1494 = vmul.f32 %v1460, %v1489
    %v1495 = vmul.f32 %v1461, %v1489
    %v1496 = vmul.f32 %v1462, %v1489
    %v1497 = vmul.f32 %v1463, %v1489
    %v1498 = vmul.f32 %v1464, %v1489
    %v1499 = vmul.f32 %v1465, %v1489
    %v1500 = vmul.f32 %v1466, %v1489
    %v1501 = vmul.f32 %v1467, %v1489
    %v1502 = vmul.f32 %v1468, %v1489
    %v1503 = vmul.f32 %v1469, %v1489
    %v1504 = vmul.f32 %v1470, %v1489
    %v1505 = vmul.f32 %v1471, %v1489
    %v1506 = vmul.f32 %v1472, %v1489
    %v1507 = vmul.f32 %v1473, %v1489
    %v1508 = vmul.f32 %v1474, %v1489
    %v1509 = vmul.f32 %v1475, %v1489
    %v1510 = vmul.f32 %v1476, %v1489
    %v1511 = vmul.f32 %v1477, %v1489
    %v1512 = vmul.f32 %v1478, %v1489
    %v1513 = vmul.f32 %v1479, %v1489
    %v1514 = vmul.f32 %v1480, %v1489
    %v1515 = vmul.f32 %v1481, %v1489
    %v1516 = vmul.f32 %v1482, %v1489
    %v1517 = vmul.f32 %v1483, %v1489
    %v1518 = vmul.f32 %v1484, %v1489
    %v1519 = vmul.f32 %v1485, %v1489
    %v1520 = vmul.f32 %v1486, %v1489
    %v1521 = vmul.f32 %v1487, %v1489
    %v1523 = vlaneseq
    %v1524 = vshrl.u32 %v1523, 7
    %v1525 = vsub.s32 0, %v1524
    %v1526 = vrot.slane %v303, %v1525
    %v1528 = vmul.f32 %v1490, %v1526
    %v1529 = vmul.f32 %v1491, %v1526
    %v1530 = vmul.f32 %v1492, %v1526
    %v1531 = vmul.f32 %v1493, %v1526
    %v1532 = vmul.f32 %v1494, %v1526
    %v1533 = vmul.f32 %v1495, %v1526
    %v1534 = vmul.f32 %v1496, %v1526
    %v1535 = vmul.f32 %v1497, %v1526
    %v1536 = vmul.f32 %v1498, %v1526
    %v1537 = vmul.f32 %v1499, %v1526
    %v1538 = vmul.f32 %v1500, %v1526
    %v1539 = vmul.f32 %v1501, %v1526
    %v1540 = vmul.f32 %v1502, %v1526
    %v1541 = vmul.f32 %v1503, %v1526
    %v1542 = vmul.f32 %v1504, %v1526
    %v1543 = vmul.f32 %v1505, %v1526
    %v1544 = vmul.f32 %v1506, %v1526
    %v1545 = vmul.f32 %v1507, %v1526
    %v1546 = vmul.f32 %v1508, %v1526
    %v1547 = vmul.f32 %v1509, %v1526
    %v1548 = vmul.f32 %v1510, %v1526
    %v1549 = vmul.f32 %v1511, %v1526
    %v1550 = vmul.f32 %v1512, %v1526
    %v1551 = vmul.f32 %v1513, %v1526
    %v1552 = vmul.f32 %v1514, %v1526
    %v1553 = vmul.f32 %v1515, %v1526
    %v1554 = vmul.f32 %v1516, %v1526
    %v1555 = vmul.f32 %v1517, %v1526
    %v1556 = vmul.f32 %v1518, %v1526
    %v1557 = vmul.f32 %v1519, %v1526
    %v1558 = vmul.f32 %v1520, %v1526
    %v1559 = vmul.f32 %v1521, %v1526
    %v1561 = vlaneseq
    %v1562 = vshrl.u32 %v1561, 7
    %v1563 = vsub.s32 0, %v1562
    %v1564 = vrot.slane %v304, %v1563
    %v1566 = vadd.f32 %v1528, %v1564
    %v1567 = vadd.f32 %v1529, %v1564
    %v1568 = vadd.f32 %v1530, %v1564
    %v1569 = vadd.f32 %v1531, %v1564
    %v1570 = vadd.f32 %v1532, %v1564
    %v1571 = vadd.f32 %v1533, %v1564
    %v1572 = vadd.f32 %v1534, %v1564
    %v1573 = vadd.f32 %v1535, %v1564
    %v1574 = vadd.f32 %v1536, %v1564
    %v1575 = vadd.f32 %v1537, %v1564
    %v1576 = vadd.f32 %v1538, %v1564
    %v1577 = vadd.f32 %v1539, %v1564
    %v1578 = vadd.f32 %v1540, %v1564
    %v1579 = vadd.f32 %v1541, %v1564
    %v1580 = vadd.f32 %v1542, %v1564
    %v1581 = vadd.f32 %v1543, %v1564
    %v1582 = vadd.f32 %v1544, %v1564
    %v1583 = vadd.f32 %v1545, %v1564
    %v1584 = vadd.f32 %v1546, %v1564
    %v1585 = vadd.f32 %v1547, %v1564
    %v1586 = vadd.f32 %v1548, %v1564
    %v1587 = vadd.f32 %v1549, %v1564
    %v1588 = vadd.f32 %v1550, %v1564
    %v1589 = vadd.f32 %v1551, %v1564
    %v1590 = vadd.f32 %v1552, %v1564
    %v1591 = vadd.f32 %v1553, %v1564
    %v1592 = vadd.f32 %v1554, %v1564
    %v1593 = vadd.f32 %v1555, %v1564
    %v1594 = vadd.f32 %v1556, %v1564
    %v1595 = vadd.f32 %v1557, %v1564
    %v1596 = vadd.f32 %v1558, %v1564
    %v1597 = vadd.f32 %v1559, %v1564
    %v1598 = vsel %vm221, 1, 0
    %v1599 = vsel %vm222, 1, 0
    %v1600 = vsel %vm223, 1, 0
    %v1601 = vsel %vm224, 1, 0
    %v1602 = vsel %vm225, 1, 0
    %v1603 = vsel %vm226, 1, 0
    %v1604 = vsel %vm227, 1, 0
    %v1605 = vsel %vm228, 1, 0
    %v1606 = vsel %vm229, 1, 0
    %v1607 = vsel %vm230, 1, 0
    %v1608 = vsel %vm231, 1, 0
    %v1609 = vsel %vm232, 1, 0
    %v1610 = vsel %vm233, 1, 0
    %v1611 = vsel %vm234, 1, 0
    %v1612 = vsel %vm235, 1, 0
    %v1613 = vsel %vm236, 1, 0
    %v1614 = vsel %vm237, 1, 0
    %v1615 = vsel %vm238, 1, 0
    %v1616 = vsel %vm239, 1, 0
    %v1617 = vsel %vm240, 1, 0
    %v1618 = vsel %vm241, 1, 0
    %v1619 = vsel %vm242, 1, 0
    %v1620 = vsel %vm243, 1, 0
    %v1621 = vsel %vm244, 1, 0
    %v1622 = vsel %vm245, 1, 0
    %v1623 = vsel %vm246, 1, 0
    %v1624 = vsel %vm247, 1, 0
    %v1625 = vsel %vm248, 1, 0
    %v1626 = vsel %vm249, 1, 0
    %v1627 = vsel %vm250, 1, 0
    %v1628 = vsel %vm251, 1, 0
    %v1629 = vsel %vm252, 1, 0
    %1630 = vset.pattern.permute.xlu0 0
    %1631 = vperm.xlu0 %1630, %v1598
    %v1632 = vpop.permute.xlu0 %1631
    %1633 = vset.pattern.permute.xlu0 0
    %1634 = vperm.xlu0 %1633, %v1599
    %v1635 = vpop.permute.xlu0 %1634
    %1636 = vset.pattern.permute.xlu0 0
    %1637 = vperm.xlu0 %1636, %v1600
    %v1638 = vpop.permute.xlu0 %1637
    %1639 = vset.pattern.permute.xlu0 0
    %1640 = vperm.xlu0 %1639, %v1601
    %v1641 = vpop.permute.xlu0 %1640
    %1642 = vset.pattern.permute.xlu0 0
    %1643 = vperm.xlu0 %1642, %v1602
    %v1644 = vpop.permute.xlu0 %1643
    %1645 = vset.pattern.permute.xlu0 0
    %1646 = vperm.xlu0 %1645, %v1603
    %v1647 = vpop.permute.xlu0 %1646
    %1648 = vset.pattern.permute.xlu0 0
    %1649 = vperm.xlu0 %1648, %v1604
    %v1650 = vpop.permute.xlu0 %1649
    %1651 = vset.pattern.permute.xlu0 0
    %1652 = vperm.xlu0 %1651, %v1605
    %v1653 = vpop.permute.xlu0 %1652
    %1654 = vset.pattern.permute.xlu0 0
    %1655 = vperm.xlu0 %1654, %v1606
    %v1656 = vpop.permute.xlu0 %1655
    %1657 = vset.pattern.permute.xlu0 0
    %1658 = vperm.xlu0 %1657, %v1607
    %v1659 = vpop.permute.xlu0 %1658
    %1660 = vset.pattern.permute.xlu0 0
    %1661 = vperm.xlu0 %1660, %v1608
    %v1662 = vpop.permute.xlu0 %1661
    %1663 = vset.pattern.permute.xlu0 0
    %1664 = vperm.xlu0 %1663, %v1609
    %v1665 = vpop.permute.xlu0 %1664
    %1666 = vset.pattern.permute.xlu0 0
    %1667 = vperm.xlu0 %1666, %v1610
    %v1668 = vpop.permute.xlu0 %1667
    %1669 = vset.pattern.permute.xlu0 0
    %1670 = vperm.xlu0 %1669, %v1611
    %v1671 = vpop.permute.xlu0 %1670
    %1672 = vset.pattern.permute.xlu0 0
    %1673 = vperm.xlu0 %1672, %v1612
    %v1674 = vpop.permute.xlu0 %1673
    %1675 = vset.pattern.permute.xlu0 0
    %1676 = vperm.xlu0 %1675, %v1613
    %v1677 = vpop.permute.xlu0 %1676
    %1678 = vset.pattern.permute.xlu0 0
    %1679 = vperm.xlu0 %1678, %v1614
    %v1680 = vpop.permute.xlu0 %1679
    %1681 = vset.pattern.permute.xlu0 0
    %1682 = vperm.xlu0 %1681, %v1615
    %v1683 = vpop.permute.xlu0 %1682
    %1684 = vset.pattern.permute.xlu0 0
    %1685 = vperm.xlu0 %1684, %v1616
    %v1686 = vpop.permute.xlu0 %1685
    %1687 = vset.pattern.permute.xlu0 0
    %1688 = vperm.xlu0 %1687, %v1617
    %v1689 = vpop.permute.xlu0 %1688
    %1690 = vset.pattern.permute.xlu0 0
    %1691 = vperm.xlu0 %1690, %v1618
    %v1692 = vpop.permute.xlu0 %1691
    %1693 = vset.pattern.permute.xlu0 0
    %1694 = vperm.xlu0 %1693, %v1619
    %v1695 = vpop.permute.xlu0 %1694
    %1696 = vset.pattern.permute.xlu0 0
    %1697 = vperm.xlu0 %1696, %v1620
    %v1698 = vpop.permute.xlu0 %1697
    %1699 = vset.pattern.permute.xlu0 0
    %1700 = vperm.xlu0 %1699, %v1621
    %v1701 = vpop.permute.xlu0 %1700
    %1702 = vset.pattern.permute.xlu0 0
    %1703 = vperm.xlu0 %1702, %v1622
    %v1704 = vpop.permute.xlu0 %1703
    %1705 = vset.pattern.permute.xlu0 0
    %1706 = vperm.xlu0 %1705, %v1623
    %v1707 = vpop.permute.xlu0 %1706
    %1708 = vset.pattern.permute.xlu0 0
    %1709 = vperm.xlu0 %1708, %v1624
    %v1710 = vpop.permute.xlu0 %1709
    %1711 = vset.pattern.permute.xlu0 0
    %1712 = vperm.xlu0 %1711, %v1625
    %v1713 = vpop.permute.xlu0 %1712
    %1714 = vset.pattern.permute.xlu0 0
    %1715 = vperm.xlu0 %1714, %v1626
    %v1716 = vpop.permute.xlu0 %1715
    %1717 = vset.pattern.permute.xlu0 0
    %1718 = vperm.xlu0 %1717, %v1627
    %v1719 = vpop.permute.xlu0 %1718
    %1720 = vset.pattern.permute.xlu0 0
    %1721 = vperm.xlu0 %1720, %v1628
    %v1722 = vpop.permute.xlu0 %1721
    %1723 = vset.pattern.permute.xlu0 0
    %1724 = vperm.xlu0 %1723, %v1629
    %v1725 = vpop.permute.xlu0 %1724
    %vm1726 = vcmp.eq.s32.totalorder %v1632, 1
    %vm1727 = vcmp.eq.s32.totalorder %v1635, 1
    %vm1728 = vcmp.eq.s32.totalorder %v1638, 1
    %vm1729 = vcmp.eq.s32.totalorder %v1641, 1
    %vm1730 = vcmp.eq.s32.totalorder %v1644, 1
    %vm1731 = vcmp.eq.s32.totalorder %v1647, 1
    %vm1732 = vcmp.eq.s32.totalorder %v1650, 1
    %vm1733 = vcmp.eq.s32.totalorder %v1653, 1
    %vm1734 = vcmp.eq.s32.totalorder %v1656, 1
    %vm1735 = vcmp.eq.s32.totalorder %v1659, 1
    %vm1736 = vcmp.eq.s32.totalorder %v1662, 1
    %vm1737 = vcmp.eq.s32.totalorder %v1665, 1
    %vm1738 = vcmp.eq.s32.totalorder %v1668, 1
    %vm1739 = vcmp.eq.s32.totalorder %v1671, 1
    %vm1740 = vcmp.eq.s32.totalorder %v1674, 1
    %vm1741 = vcmp.eq.s32.totalorder %v1677, 1
    %vm1742 = vcmp.eq.s32.totalorder %v1680, 1
    %vm1743 = vcmp.eq.s32.totalorder %v1683, 1
    %vm1744 = vcmp.eq.s32.totalorder %v1686, 1
    %vm1745 = vcmp.eq.s32.totalorder %v1689, 1
    %vm1746 = vcmp.eq.s32.totalorder %v1692, 1
    %vm1747 = vcmp.eq.s32.totalorder %v1695, 1
    %vm1748 = vcmp.eq.s32.totalorder %v1698, 1
    %vm1749 = vcmp.eq.s32.totalorder %v1701, 1
    %vm1750 = vcmp.eq.s32.totalorder %v1704, 1
    %vm1751 = vcmp.eq.s32.totalorder %v1707, 1
    %vm1752 = vcmp.eq.s32.totalorder %v1710, 1
    %vm1753 = vcmp.eq.s32.totalorder %v1713, 1
    %vm1754 = vcmp.eq.s32.totalorder %v1716, 1
    %vm1755 = vcmp.eq.s32.totalorder %v1719, 1
    %vm1756 = vcmp.eq.s32.totalorder %v1722, 1
    %vm1757 = vcmp.eq.s32.totalorder %v1725, 1
    %v1758 = vsel %vm1726, %v1566, -1e+30
    %v1759 = vsel %vm1727, %v1567, -1e+30
    %v1760 = vsel %vm1728, %v1568, -1e+30
    %v1761 = vsel %vm1729, %v1569, -1e+30
    %v1762 = vsel %vm1730, %v1570, -1e+30
    %v1763 = vsel %vm1731, %v1571, -1e+30
    %v1764 = vsel %vm1732, %v1572, -1e+30
    %v1765 = vsel %vm1733, %v1573, -1e+30
    %v1766 = vsel %vm1734, %v1574, -1e+30
    %v1767 = vsel %vm1735, %v1575, -1e+30
    %v1768 = vsel %vm1736, %v1576, -1e+30
    %v1769 = vsel %vm1737, %v1577, -1e+30
    %v1770 = vsel %vm1738, %v1578, -1e+30
    %v1771 = vsel %vm1739, %v1579, -1e+30
    %v1772 = vsel %vm1740, %v1580, -1e+30
    %v1773 = vsel %vm1741, %v1581, -1e+30
    %v1774 = vsel %vm1742, %v1582, -1e+30
    %v1775 = vsel %vm1743, %v1583, -1e+30
    %v1776 = vsel %vm1744, %v1584, -1e+30
    %v1777 = vsel %vm1745, %v1585, -1e+30
    %v1778 = vsel %vm1746, %v1586, -1e+30
    %v1779 = vsel %vm1747, %v1587, -1e+30
    %v1780 = vsel %vm1748, %v1588, -1e+30
    %v1781 = vsel %vm1749, %v1589, -1e+30
    %v1782 = vsel %vm1750, %v1590, -1e+30
    %v1783 = vsel %vm1751, %v1591, -1e+30
    %v1784 = vsel %vm1752, %v1592, -1e+30
    %v1785 = vsel %vm1753, %v1593, -1e+30
    %v1786 = vsel %vm1754, %v1594, -1e+30
    %v1787 = vsel %vm1755, %v1595, -1e+30
    %v1788 = vsel %vm1756, %v1596, -1e+30
    %v1789 = vsel %vm1757, %v1597, -1e+30
    %v1790 = vmax.f32 %v1758, %v1762
    %v1791 = vmax.f32 %v1759, %v1763
    %v1792 = vmax.f32 %v1760, %v1764
    %v1793 = vmax.f32 %v1761, %v1765
    %v1794 = vmax.f32 %v1790, %v1791
    %v1795 = vmax.f32 %v1792, %v1793
    %v1796 = vmax.f32 %v1794, %v1795
    %v1797 = vrot.slane %v1796, 4
    %v1798 = vmax.f32 %v1796, %v1797
    %v1799 = vrot.slane %v1798, 2
    %v1800 = vmax.f32 %v1798, %v1799
    %v1801 = vrot.slane %v1800, 1
    %v1802 = vmax.f32 %v1800, %v1801
    %v1803 = vmax.f32 %v1766, %v1770
    %v1804 = vmax.f32 %v1767, %v1771
    %v1805 = vmax.f32 %v1768, %v1772
    %v1806 = vmax.f32 %v1769, %v1773
    %v1807 = vmax.f32 %v1803, %v1804
    %v1808 = vmax.f32 %v1805, %v1806
    %v1809 = vmax.f32 %v1807, %v1808
    %v1810 = vrot.slane %v1809, 4
    %v1811 = vmax.f32 %v1809, %v1810
    %v1812 = vrot.slane %v1811, 2
    %v1813 = vmax.f32 %v1811, %v1812
    %v1814 = vrot.slane %v1813, 1
    %v1815 = vmax.f32 %v1813, %v1814
    %v1816 = vmax.f32 %v1774, %v1778
    %v1817 = vmax.f32 %v1775, %v1779
    %v1818 = vmax.f32 %v1776, %v1780
    %v1819 = vmax.f32 %v1777, %v1781
    %v1820 = vmax.f32 %v1816, %v1817
    %v1821 = vmax.f32 %v1818, %v1819
    %v1822 = vmax.f32 %v1820, %v1821
    %v1823 = vrot.slane %v1822, 4
    %v1824 = vmax.f32 %v1822, %v1823
    %v1825 = vrot.slane %v1824, 2
    %v1826 = vmax.f32 %v1824, %v1825
    %v1827 = vrot.slane %v1826, 1
    %v1828 = vmax.f32 %v1826, %v1827
    %v1829 = vmax.f32 %v1782, %v1786
    %v1830 = vmax.f32 %v1783, %v1787
    %v1831 = vmax.f32 %v1784, %v1788
    %v1832 = vmax.f32 %v1785, %v1789
    %v1833 = vmax.f32 %v1829, %v1830
    %v1834 = vmax.f32 %v1831, %v1832
    %v1835 = vmax.f32 %v1833, %v1834
    %v1836 = vrot.slane %v1835, 4
    %v1837 = vmax.f32 %v1835, %v1836
    %v1838 = vrot.slane %v1837, 2
    %v1839 = vmax.f32 %v1837, %v1838
    %v1840 = vrot.slane %v1839, 1
    %v1841 = vmax.f32 %v1839, %v1840
    %vm1842 = vcmask 1040384
    %v1843 = vsel %vm1842, %v1802, %v1815
    %vm1844 = vcmask 1041408
    %v1845 = vsel %vm1844, %v1843, %v1828
    %vm1846 = vcmask 1042432
    %v1847 = vsel %vm1846, %v1845, %v1841
    %v1848 = vpack.c.bf16 %v1567, %v1566
    %v1849 = vpack.c.bf16 %v1569, %v1568
    %v1850 = vpack.c.bf16 %v1571, %v1570
    %v1851 = vpack.c.bf16 %v1573, %v1572
    %v1852 = vpack.c.bf16 %v1575, %v1574
    %v1853 = vpack.c.bf16 %v1577, %v1576
    %v1854 = vpack.c.bf16 %v1579, %v1578
    %v1855 = vpack.c.bf16 %v1581, %v1580
    %v1856 = vpack.c.bf16 %v1583, %v1582
    %v1857 = vpack.c.bf16 %v1585, %v1584
    %v1858 = vpack.c.bf16 %v1587, %v1586
    %v1859 = vpack.c.bf16 %v1589, %v1588
    %v1860 = vpack.c.bf16 %v1591, %v1590
    %v1861 = vpack.c.bf16 %v1593, %v1592
    %v1862 = vpack.c.bf16 %v1595, %v1594
    %v1863 = vpack.c.bf16 %v1597, %v1596
    %v1864 = vld [vmem:[#allocation9] sm:$0xf]
    %v1865 = vld [vmem:[#allocation9 + $0x4] sm:$0xf]
    %v1866 = vld [vmem:[#allocation9 + $0x8] sm:$0xf]
    %v1867 = vld [vmem:[#allocation9 + $0xc] sm:$0xf]
    %v1868 = vld [vmem:[#allocation9 + $0x10] sm:$0xf]
    %v1869 = vld [vmem:[#allocation9 + $0x14] sm:$0xf]
    %v1870 = vld [vmem:[#allocation9 + $0x18] sm:$0xf]
    %v1871 = vld [vmem:[#allocation9 + $0x1c] sm:$0xf]
    %v1872 = vld [vmem:[#allocation9 + $0x20] sm:$0xf]
    %v1873 = vld [vmem:[#allocation9 + $0x24] sm:$0xf]
    %v1874 = vld [vmem:[#allocation9 + $0x28] sm:$0xf]
    %v1875 = vld [vmem:[#allocation9 + $0x2c] sm:$0xf]
    %v1876 = vld [vmem:[#allocation9 + $0x30] sm:$0xf]
    %v1877 = vld [vmem:[#allocation9 + $0x34] sm:$0xf]
    %v1878 = vld [vmem:[#allocation9 + $0x38] sm:$0xf]
    %v1879 = vld [vmem:[#allocation9 + $0x3c] sm:$0xf]
    %v1880 = vld [vmem:[%s11] sm:$0x1]
    %v1881 = vld [vmem:[#allocation11] sm:$0xf]
    %v1882 = vld [vmem:[#allocation11 + $0x4] sm:$0xf]
    %v1883 = vld [vmem:[#allocation11 + $0x8] sm:$0xf]
    %v1884 = vld [vmem:[#allocation11 + $0xc] sm:$0xf]
    %v1885 = vld [vmem:[#allocation11 + $0x10] sm:$0xf]
    %v1886 = vld [vmem:[#allocation11 + $0x14] sm:$0xf]
    %v1887 = vld [vmem:[#allocation11 + $0x18] sm:$0xf]
    %v1888 = vld [vmem:[#allocation11 + $0x1c] sm:$0xf]
    %v1889 = vld [vmem:[#allocation11 + $0x20] sm:$0xf]
    %v1890 = vld [vmem:[#allocation11 + $0x24] sm:$0xf]
    %v1891 = vld [vmem:[#allocation11 + $0x28] sm:$0xf]
    %v1892 = vld [vmem:[#allocation11 + $0x2c] sm:$0xf]
    %v1893 = vld [vmem:[#allocation11 + $0x30] sm:$0xf]
    %v1894 = vld [vmem:[#allocation11 + $0x34] sm:$0xf]
    %v1895 = vld [vmem:[#allocation11 + $0x38] sm:$0xf]
    %v1896 = vld [vmem:[#allocation11 + $0x3c] sm:$0xf]
    %v1897 = vld [vmem:[%s13] sm:$0x1]
    %v1898 = vld [vmem:[%s14] sm:$0x1]
    %v1899 = vld [vmem:[%s15] sm:$0x1]
    %1900 = vmatprep.subr.bf16.mxu0 0
    %1901 = vmatpush1.bf16.msra.mxu0 %v1855
    %1902 = vmatprep.subr.bf16.mxu0 0
    %1903 = vmatpush1.bf16.msra.mxu0 %v1854
    %1904 = vmatprep.subr.bf16.mxu0 0
    %1905 = vmatpush1.bf16.msra.mxu0 %v1853
    %1906 = vmatprep.subr.bf16.mxu0 0
    %1907 = vmatpush1.bf16.msra.mxu0 %v1852
    %1908 = vmatprep.subr.bf16.mxu0 0
    %1909 = vmatpush1.bf16.msra.mxu0 %v1851
    %1910 = vmatprep.subr.bf16.mxu0 0
    %1911 = vmatpush1.bf16.msra.mxu0 %v1850
    %1912 = vmatprep.subr.bf16.mxu0 0
    %1913 = vmatpush1.bf16.msra.mxu0 %v1849
    %1914 = vmatprep.subr.bf16.mxu0 0
    %1915 = vmatpush1.bf16.msra.mxu0 %v1848
    %1916 = vmatprep.subr.bf16.mxu0 0
    %1917 = vmatpush2.bf16.msra.mxu0 %v1863
    %1918 = vmatprep.subr.bf16.mxu0 0
    %1919 = vmatpush2.bf16.msra.mxu0 %v1862
    %1920 = vmatprep.subr.bf16.mxu0 0
    %1921 = vmatpush2.bf16.msra.mxu0 %v1861
    %1922 = vmatprep.subr.bf16.mxu0 0
    %1923 = vmatpush2.bf16.msra.mxu0 %v1860
    %1924 = vmatprep.subr.bf16.mxu0 0
    %1925 = vmatpush2.bf16.msra.mxu0 %v1859
    %1926 = vmatprep.subr.bf16.mxu0 0
    %1927 = vmatpush2.bf16.msra.mxu0 %v1858
    %1928 = vmatprep.subr.bf16.mxu0 0
    %1929 = vmatpush2.bf16.msra.mxu0 %v1857
    %1930 = vmatprep.subr.bf16.mxu0 0
    %1931 = vmatpush2.bf16.msra.mxu0 %v1856
    %1932 = vmatprep.mubr.bf16.mxu0 %v402
    %1933 = vmatmul.mubr.bf16.gmra.mxu0 %v401
    %v1934 = vpop.f32.mrf.mxu0
    %v1935 = vadd.f32 0.0, %v1934
    %v1936 = vpop.f32.mrf.mxu0
    %v1937 = vpop.f32.mrf.mxu0
    %v1938 = vadd.f32 0.0, %v1937
    %v1939 = vpop.f32.mrf.mxu0
    %1940 = vmatprep.mubr.bf16.mxu0 %v404
    %1941 = vmatmul.mubr.bf16.gmra.mxu0 %v403
    %v1942 = vpop.f32.mrf.mxu0
    %v1943 = vadd.f32 0.0, %v1942
    %v1944 = vpop.f32.mrf.mxu0
    %v1945 = vpop.f32.mrf.mxu0
    %v1946 = vadd.f32 0.0, %v1945
    %v1947 = vpop.f32.mrf.mxu0
    %1948 = vmatprep.mubr.bf16.mxu0 %v406
    %1949 = vmatmul.mubr.bf16.gmra.mxu0 %v405
    %v1950 = vpop.f32.mrf.mxu0
    %v1951 = vadd.f32 0.0, %v1950
    %v1952 = vpop.f32.mrf.mxu0
    %v1953 = vpop.f32.mrf.mxu0
    %v1954 = vadd.f32 0.0, %v1953
    %v1955 = vpop.f32.mrf.mxu0
    %1956 = vmatprep.mubr.bf16.mxu0 %v408
    %1957 = vmatmul.mubr.bf16.gmra.mxu0 %v407
    %v1958 = vpop.f32.mrf.mxu0
    %v1959 = vadd.f32 0.0, %v1958
    %v1960 = vpop.f32.mrf.mxu0
    %v1961 = vpop.f32.mrf.mxu0
    %v1962 = vadd.f32 0.0, %v1961
    %v1963 = vpop.f32.mrf.mxu0
    %1964 = vmatprep.mubr.bf16.mxu0 %v410
    %1965 = vmatmul.mubr.bf16.gmra.mxu0 %v409
    %v1966 = vpop.f32.mrf.mxu0
    %v1967 = vadd.f32 0.0, %v1966
    %v1968 = vpop.f32.mrf.mxu0
    %v1969 = vpop.f32.mrf.mxu0
    %v1970 = vadd.f32 0.0, %v1969
    %v1971 = vpop.f32.mrf.mxu0
    %1972 = vmatprep.mubr.bf16.mxu0 %v412
    %1973 = vmatmul.mubr.bf16.gmra.mxu0 %v411
    %v1974 = vpop.f32.mrf.mxu0
    %v1975 = vadd.f32 0.0, %v1974
    %v1976 = vpop.f32.mrf.mxu0
    %v1977 = vpop.f32.mrf.mxu0
    %v1978 = vadd.f32 0.0, %v1977
    %v1979 = vpop.f32.mrf.mxu0
    %1980 = vmatprep.mubr.bf16.mxu0 %v414
    %1981 = vmatmul.mubr.bf16.gmra.mxu0 %v413
    %v1982 = vpop.f32.mrf.mxu0
    %v1983 = vadd.f32 0.0, %v1982
    %v1984 = vpop.f32.mrf.mxu0
    %v1985 = vpop.f32.mrf.mxu0
    %v1986 = vadd.f32 0.0, %v1985
    %v1987 = vpop.f32.mrf.mxu0
    %1988 = vmatprep.mubr.bf16.mxu0 %v416
    %1989 = vmatmul.mubr.bf16.gmra.mxu0 %v415
    %v1990 = vpop.f32.mrf.mxu0
    %v1991 = vadd.f32 0.0, %v1990
    %v1992 = vpop.f32.mrf.mxu0
    %v1993 = vpop.f32.mrf.mxu0
    %v1994 = vadd.f32 0.0, %v1993
    %v1995 = vpop.f32.mrf.mxu0
    %1996 = vmatprep.mubr.bf16.mxu0 %v418
    %1997 = vmatmul.mubr.bf16.gmra.mxu0 %v417
    %v1998 = vpop.f32.mrf.mxu0
    %v1999 = vadd.f32 0.0, %v1998
    %v2000 = vpop.f32.mrf.mxu0
    %v2001 = vpop.f32.mrf.mxu0
    %v2002 = vadd.f32 0.0, %v2001
    %v2003 = vpop.f32.mrf.mxu0
    %2004 = vmatprep.mubr.bf16.mxu0 %v420
    %2005 = vmatmul.mubr.bf16.gmra.mxu0 %v419
    %v2006 = vpop.f32.mrf.mxu0
    %v2007 = vadd.f32 0.0, %v2006
    %v2008 = vpop.f32.mrf.mxu0
    %v2009 = vpop.f32.mrf.mxu0
    %v2010 = vadd.f32 0.0, %v2009
    %v2011 = vpop.f32.mrf.mxu0
    %2012 = vmatprep.mubr.bf16.mxu0 %v422
    %2013 = vmatmul.mubr.bf16.gmra.mxu0 %v421
    %v2014 = vpop.f32.mrf.mxu0
    %v2015 = vadd.f32 0.0, %v2014
    %v2016 = vpop.f32.mrf.mxu0
    %v2017 = vpop.f32.mrf.mxu0
    %v2018 = vadd.f32 0.0, %v2017
    %v2019 = vpop.f32.mrf.mxu0
    %2020 = vmatprep.mubr.bf16.mxu0 %v424
    %2021 = vmatmul.mubr.bf16.gmra.mxu0 %v423
    %v2022 = vpop.f32.mrf.mxu0
    %v2023 = vadd.f32 0.0, %v2022
    %v2024 = vpop.f32.mrf.mxu0
    %v2025 = vpop.f32.mrf.mxu0
    %v2026 = vadd.f32 0.0, %v2025
    %v2027 = vpop.f32.mrf.mxu0
    %2028 = vmatprep.mubr.bf16.mxu0 %v426
    %2029 = vmatmul.mubr.bf16.gmra.mxu0 %v425
    %v2030 = vpop.f32.mrf.mxu0
    %v2031 = vadd.f32 0.0, %v2030
    %v2032 = vpop.f32.mrf.mxu0
    %v2033 = vpop.f32.mrf.mxu0
    %v2034 = vadd.f32 0.0, %v2033
    %v2035 = vpop.f32.mrf.mxu0
    %2036 = vmatprep.mubr.bf16.mxu0 %v428
    %2037 = vmatmul.mubr.bf16.gmra.mxu0 %v427
    %v2038 = vpop.f32.mrf.mxu0
    %v2039 = vadd.f32 0.0, %v2038
    %v2040 = vpop.f32.mrf.mxu0
    %v2041 = vpop.f32.mrf.mxu0
    %v2042 = vadd.f32 0.0, %v2041
    %v2043 = vpop.f32.mrf.mxu0
    %2044 = vmatprep.mubr.bf16.mxu0 %v430
    %2045 = vmatmul.mubr.bf16.gmra.mxu0 %v429
    %v2046 = vpop.f32.mrf.mxu0
    %v2047 = vadd.f32 0.0, %v2046
    %v2048 = vpop.f32.mrf.mxu0
    %v2049 = vpop.f32.mrf.mxu0
    %v2050 = vadd.f32 0.0, %v2049
    %v2051 = vpop.f32.mrf.mxu0
    %2052 = vmatprep.mubr.bf16.mxu0 %v432
    %2053 = vmatmul.mubr.bf16.gmra.mxu0 %v431
    %v2054 = vpop.f32.mrf.mxu0
    %v2055 = vadd.f32 0.0, %v2054
    %v2056 = vpop.f32.mrf.mxu0
    %v2057 = vpop.f32.mrf.mxu0
    %v2058 = vadd.f32 0.0, %v2057
    %v2059 = vpop.f32.mrf.mxu0
    %2060 = vdwg.mxu0
    %v2061 = vpack.c.bf16 %v1938, %v1935
    %v2062 = vpack.c.bf16 %v1946, %v1943
    %v2063 = vpack.c.bf16 %v1954, %v1951
    %v2064 = vpack.c.bf16 %v1962, %v1959
    %v2065 = vpack.c.bf16 %v1970, %v1967
    %v2066 = vpack.c.bf16 %v1978, %v1975
    %v2067 = vpack.c.bf16 %v1986, %v1983
    %v2068 = vpack.c.bf16 %v1994, %v1991
    %v2069 = vpack.c.bf16 %v2002, %v1999
    %v2070 = vpack.c.bf16 %v2010, %v2007
    %v2071 = vpack.c.bf16 %v2018, %v2015
    %v2072 = vpack.c.bf16 %v2026, %v2023
    %v2073 = vpack.c.bf16 %v2034, %v2031
    %v2074 = vpack.c.bf16 %v2042, %v2039
    %v2075 = vpack.c.bf16 %v2050, %v2047
    %v2076 = vpack.c.bf16 %v2058, %v2055
    %v2078 = vlaneseq
    %v2079 = vshrl.u32 %v2078, 7
    %v2080 = vsub.s32 0, %v2079
    %v2081 = vrot.slane %v1880, %v2080
    %v2099 = vunpack.c.l.b16 %v1864
    %v2100 = vunpack.c.l.b16 %v1865
    %v2101 = vunpack.c.l.b16 %v1866
    %v2102 = vunpack.c.l.b16 %v1867
    %v2103 = vunpack.c.l.b16 %v1868
    %v2104 = vunpack.c.l.b16 %v1869
    %v2105 = vunpack.c.l.b16 %v1870
    %v2106 = vunpack.c.l.b16 %v1871
    %v2107 = vunpack.c.l.b16 %v1872
    %v2108 = vunpack.c.l.b16 %v1873
    %v2109 = vunpack.c.l.b16 %v1874
    %v2110 = vunpack.c.l.b16 %v1875
    %v2111 = vunpack.c.l.b16 %v1876
    %v2112 = vunpack.c.l.b16 %v1877
    %v2113 = vunpack.c.l.b16 %v1878
    %v2114 = vunpack.c.l.b16 %v1879
    %v2115 = vpack.c.b16 %v2100, %v2099
    %v2116 = vpack.c.b16 %v2102, %v2101
    %v2117 = vpack.c.b16 %v2104, %v2103
    %v2118 = vpack.c.b16 %v2106, %v2105
    %v2119 = vpack.c.b16 %v2108, %v2107
    %v2120 = vpack.c.b16 %v2110, %v2109
    %v2121 = vpack.c.b16 %v2112, %v2111
    %v2122 = vpack.c.b16 %v2114, %v2113
    %2131 = vmatprep.subr.bf16.mxu0 0
    %2132 = vmatpush1.bf16.msra.mxu0 %v2122
    %2133 = vmatprep.subr.bf16.mxu0 0
    %2134 = vmatpush1.bf16.msra.mxu0 %v2121
    %2135 = vmatprep.subr.bf16.mxu0 0
    %2136 = vmatpush1.bf16.msra.mxu0 %v2120
    %2137 = vmatprep.subr.bf16.mxu0 0
    %2138 = vmatpush1.bf16.msra.mxu0 %v2119
    %2139 = vmatprep.subr.bf16.mxu0 0
    %2140 = vmatpush1.bf16.msra.mxu0 %v2118
    %2141 = vmatprep.subr.bf16.mxu0 0
    %2142 = vmatpush1.bf16.msra.mxu0 %v2117
    %2143 = vmatprep.subr.bf16.mxu0 0
    %2144 = vmatpush1.bf16.msra.mxu0 %v2116
    %2145 = vmatprep.subr.bf16.mxu0 0
    %2146 = vmatpush1.bf16.msra.mxu0 %v2115
    %2147 = vmatprep.subr.bf16.mxu0 0
    %2148 = vmatpush2.bf16.msra.mxu0 0
    %2149 = vmatprep.subr.bf16.mxu0 0
    %2150 = vmatpush2.bf16.msra.mxu0 0
    %2151 = vmatprep.subr.bf16.mxu0 0
    %2152 = vmatpush2.bf16.msra.mxu0 0
    %2153 = vmatprep.subr.bf16.mxu0 0
    %2154 = vmatpush2.bf16.msra.mxu0 0
    %2155 = vmatprep.subr.bf16.mxu0 0
    %2156 = vmatpush2.bf16.msra.mxu0 0
    %2157 = vmatprep.subr.bf16.mxu0 0
    %2158 = vmatpush2.bf16.msra.mxu0 0
    %2159 = vmatprep.subr.bf16.mxu0 0
    %2160 = vmatpush2.bf16.msra.mxu0 0
    %2161 = vmatprep.subr.bf16.mxu0 0
    %2162 = vmatpush2.bf16.msra.mxu0 0
    %2163 = vmatprep.mubr.bf16.mxu0 0
    %2164 = vmatmul.mubr.bf16.gmra.mxu0 %v2061
    %v2165 = vpop.f32.mrf.mxu0
    %v2166 = vadd.f32 %v2081, %v2165
    %v2167 = vpop.f32.mrf.mxu0
    %v2168 = vpop.f32.mrf.mxu0
    %v2169 = vadd.f32 %v2081, %v2168
    %v2170 = vpop.f32.mrf.mxu0
    %2171 = vmatprep.mubr.bf16.mxu0 0
    %2172 = vmatmul.mubr.bf16.gmra.mxu0 %v2062
    %v2173 = vpop.f32.mrf.mxu0
    %v2174 = vadd.f32 %v2081, %v2173
    %v2175 = vpop.f32.mrf.mxu0
    %v2176 = vpop.f32.mrf.mxu0
    %v2177 = vadd.f32 %v2081, %v2176
    %v2178 = vpop.f32.mrf.mxu0
    %2179 = vmatprep.mubr.bf16.mxu0 0
    %2180 = vmatmul.mubr.bf16.gmra.mxu0 %v2063
    %v2181 = vpop.f32.mrf.mxu0
    %v2182 = vadd.f32 %v2081, %v2181
    %v2183 = vpop.f32.mrf.mxu0
    %v2184 = vpop.f32.mrf.mxu0
    %v2185 = vadd.f32 %v2081, %v2184
    %v2186 = vpop.f32.mrf.mxu0
    %2187 = vmatprep.mubr.bf16.mxu0 0
    %2188 = vmatmul.mubr.bf16.gmra.mxu0 %v2064
    %v2189 = vpop.f32.mrf.mxu0
    %v2190 = vadd.f32 %v2081, %v2189
    %v2191 = vpop.f32.mrf.mxu0
    %v2192 = vpop.f32.mrf.mxu0
    %v2193 = vadd.f32 %v2081, %v2192
    %v2194 = vpop.f32.mrf.mxu0
    %2195 = vmatprep.mubr.bf16.mxu0 0
    %2196 = vmatmul.mubr.bf16.gmra.mxu0 %v2065
    %v2197 = vpop.f32.mrf.mxu0
    %v2198 = vadd.f32 %v2081, %v2197
    %v2199 = vpop.f32.mrf.mxu0
    %v2200 = vpop.f32.mrf.mxu0
    %v2201 = vadd.f32 %v2081, %v2200
    %v2202 = vpop.f32.mrf.mxu0
    %2203 = vmatprep.mubr.bf16.mxu0 0
    %2204 = vmatmul.mubr.bf16.gmra.mxu0 %v2066
    %v2205 = vpop.f32.mrf.mxu0
    %v2206 = vadd.f32 %v2081, %v2205
    %v2207 = vpop.f32.mrf.mxu0
    %v2208 = vpop.f32.mrf.mxu0
    %v2209 = vadd.f32 %v2081, %v2208
    %v2210 = vpop.f32.mrf.mxu0
    %2211 = vmatprep.mubr.bf16.mxu0 0
    %2212 = vmatmul.mubr.bf16.gmra.mxu0 %v2067
    %v2213 = vpop.f32.mrf.mxu0
    %v2214 = vadd.f32 %v2081, %v2213
    %v2215 = vpop.f32.mrf.mxu0
    %v2216 = vpop.f32.mrf.mxu0
    %v2217 = vadd.f32 %v2081, %v2216
    %v2218 = vpop.f32.mrf.mxu0
    %2219 = vmatprep.mubr.bf16.mxu0 0
    %2220 = vmatmul.mubr.bf16.gmra.mxu0 %v2068
    %v2221 = vpop.f32.mrf.mxu0
    %v2222 = vadd.f32 %v2081, %v2221
    %v2223 = vpop.f32.mrf.mxu0
    %v2224 = vpop.f32.mrf.mxu0
    %v2225 = vadd.f32 %v2081, %v2224
    %v2226 = vpop.f32.mrf.mxu0
    %2227 = vmatprep.mubr.bf16.mxu0 0
    %2228 = vmatmul.mubr.bf16.gmra.mxu0 %v2069
    %v2229 = vpop.f32.mrf.mxu0
    %v2230 = vadd.f32 %v2081, %v2229
    %v2231 = vpop.f32.mrf.mxu0
    %v2232 = vpop.f32.mrf.mxu0
    %v2233 = vadd.f32 %v2081, %v2232
    %v2234 = vpop.f32.mrf.mxu0
    %2235 = vmatprep.mubr.bf16.mxu0 0
    %2236 = vmatmul.mubr.bf16.gmra.mxu0 %v2070
    %v2237 = vpop.f32.mrf.mxu0
    %v2238 = vadd.f32 %v2081, %v2237
    %v2239 = vpop.f32.mrf.mxu0
    %v2240 = vpop.f32.mrf.mxu0
    %v2241 = vadd.f32 %v2081, %v2240
    %v2242 = vpop.f32.mrf.mxu0
    %2243 = vmatprep.mubr.bf16.mxu0 0
    %2244 = vmatmul.mubr.bf16.gmra.mxu0 %v2071
    %v2245 = vpop.f32.mrf.mxu0
    %v2246 = vadd.f32 %v2081, %v2245
    %v2247 = vpop.f32.mrf.mxu0
    %v2248 = vpop.f32.mrf.mxu0
    %v2249 = vadd.f32 %v2081, %v2248
    %v2250 = vpop.f32.mrf.mxu0
    %2251 = vmatprep.mubr.bf16.mxu0 0
    %2252 = vmatmul.mubr.bf16.gmra.mxu0 %v2072
    %v2253 = vpop.f32.mrf.mxu0
    %v2254 = vadd.f32 %v2081, %v2253
    %v2255 = vpop.f32.mrf.mxu0
    %v2256 = vpop.f32.mrf.mxu0
    %v2257 = vadd.f32 %v2081, %v2256
    %v2258 = vpop.f32.mrf.mxu0
    %2259 = vmatprep.mubr.bf16.mxu0 0
    %2260 = vmatmul.mubr.bf16.gmra.mxu0 %v2073
    %v2261 = vpop.f32.mrf.mxu0
    %v2262 = vadd.f32 %v2081, %v2261
    %v2263 = vpop.f32.mrf.mxu0
    %v2264 = vpop.f32.mrf.mxu0
    %v2265 = vadd.f32 %v2081, %v2264
    %v2266 = vpop.f32.mrf.mxu0
    %2267 = vmatprep.mubr.bf16.mxu0 0
    %2268 = vmatmul.mubr.bf16.gmra.mxu0 %v2074
    %v2269 = vpop.f32.mrf.mxu0
    %v2270 = vadd.f32 %v2081, %v2269
    %v2271 = vpop.f32.mrf.mxu0
    %v2272 = vpop.f32.mrf.mxu0
    %v2273 = vadd.f32 %v2081, %v2272
    %v2274 = vpop.f32.mrf.mxu0
    %2275 = vmatprep.mubr.bf16.mxu0 0
    %2276 = vmatmul.mubr.bf16.gmra.mxu0 %v2075
    %v2277 = vpop.f32.mrf.mxu0
    %v2278 = vadd.f32 %v2081, %v2277
    %v2279 = vpop.f32.mrf.mxu0
    %v2280 = vpop.f32.mrf.mxu0
    %v2281 = vadd.f32 %v2081, %v2280
    %v2282 = vpop.f32.mrf.mxu0
    %2283 = vmatprep.mubr.bf16.mxu0 0
    %2284 = vmatmul.mubr.bf16.gmra.mxu0 %v2076
    %v2285 = vpop.f32.mrf.mxu0
    %v2286 = vadd.f32 %v2081, %v2285
    %v2287 = vpop.f32.mrf.mxu0
    %v2288 = vpop.f32.mrf.mxu0
    %v2289 = vadd.f32 %v2081, %v2288
    %v2290 = vpop.f32.mrf.mxu0
    %2291 = vdwg.mxu0
    %v2292 = vmax.f32 %v2166, 0.0
    %v2293 = vmax.f32 %v2169, 0.0
    %v2294 = vmax.f32 %v2174, 0.0
    %v2295 = vmax.f32 %v2177, 0.0
    %v2296 = vmax.f32 %v2182, 0.0
    %v2297 = vmax.f32 %v2185, 0.0
    %v2298 = vmax.f32 %v2190, 0.0
    %v2299 = vmax.f32 %v2193, 0.0
    %v2300 = vmax.f32 %v2198, 0.0
    %v2301 = vmax.f32 %v2201, 0.0
    %v2302 = vmax.f32 %v2206, 0.0
    %v2303 = vmax.f32 %v2209, 0.0
    %v2304 = vmax.f32 %v2214, 0.0
    %v2305 = vmax.f32 %v2217, 0.0
    %v2306 = vmax.f32 %v2222, 0.0
    %v2307 = vmax.f32 %v2225, 0.0
    %v2308 = vmax.f32 %v2230, 0.0
    %v2309 = vmax.f32 %v2233, 0.0
    %v2310 = vmax.f32 %v2238, 0.0
    %v2311 = vmax.f32 %v2241, 0.0
    %v2312 = vmax.f32 %v2246, 0.0
    %v2313 = vmax.f32 %v2249, 0.0
    %v2314 = vmax.f32 %v2254, 0.0
    %v2315 = vmax.f32 %v2257, 0.0
    %v2316 = vmax.f32 %v2262, 0.0
    %v2317 = vmax.f32 %v2265, 0.0
    %v2318 = vmax.f32 %v2270, 0.0
    %v2319 = vmax.f32 %v2273, 0.0
    %v2320 = vmax.f32 %v2278, 0.0
    %v2321 = vmax.f32 %v2281, 0.0
    %v2322 = vmax.f32 %v2286, 0.0
    %v2323 = vmax.f32 %v2289, 0.0
    %v2324 = vpack.c.bf16 %v2293, %v2292
    %v2325 = vpack.c.bf16 %v2295, %v2294
    %v2326 = vpack.c.bf16 %v2297, %v2296
    %v2327 = vpack.c.bf16 %v2299, %v2298
    %v2328 = vpack.c.bf16 %v2301, %v2300
    %v2329 = vpack.c.bf16 %v2303, %v2302
    %v2330 = vpack.c.bf16 %v2305, %v2304
    %v2331 = vpack.c.bf16 %v2307, %v2306
    %v2332 = vpack.c.bf16 %v2309, %v2308
    %v2333 = vpack.c.bf16 %v2311, %v2310
    %v2334 = vpack.c.bf16 %v2313, %v2312
    %v2335 = vpack.c.bf16 %v2315, %v2314
    %v2336 = vpack.c.bf16 %v2317, %v2316
    %v2337 = vpack.c.bf16 %v2319, %v2318
    %v2338 = vpack.c.bf16 %v2321, %v2320
    %v2339 = vpack.c.bf16 %v2323, %v2322
    %v2341 = vlaneseq
    %v2342 = vshrl.u32 %v2341, 7
    %v2343 = vsub.s32 0, %v2342
    %v2344 = vrot.slane %v1897, %v2343
    %v2362 = vunpack.c.l.b16 %v1881
    %v2363 = vunpack.c.l.b16 %v1882
    %v2364 = vunpack.c.l.b16 %v1883
    %v2365 = vunpack.c.l.b16 %v1884
    %v2366 = vunpack.c.l.b16 %v1885
    %v2367 = vunpack.c.l.b16 %v1886
    %v2368 = vunpack.c.l.b16 %v1887
    %v2369 = vunpack.c.l.b16 %v1888
    %v2370 = vunpack.c.l.b16 %v1889
    %v2371 = vunpack.c.l.b16 %v1890
    %v2372 = vunpack.c.l.b16 %v1891
    %v2373 = vunpack.c.l.b16 %v1892
    %v2374 = vunpack.c.l.b16 %v1893
    %v2375 = vunpack.c.l.b16 %v1894
    %v2376 = vunpack.c.l.b16 %v1895
    %v2377 = vunpack.c.l.b16 %v1896
    %v2378 = vpack.c.b16 %v2363, %v2362
    %v2379 = vpack.c.b16 %v2365, %v2364
    %v2380 = vpack.c.b16 %v2367, %v2366
    %v2381 = vpack.c.b16 %v2369, %v2368
    %v2382 = vpack.c.b16 %v2371, %v2370
    %v2383 = vpack.c.b16 %v2373, %v2372
    %v2384 = vpack.c.b16 %v2375, %v2374
    %v2385 = vpack.c.b16 %v2377, %v2376
    %2394 = vmatprep.subr.bf16.mxu0 0
    %2395 = vmatpush1.bf16.msra.mxu0 %v2385
    %2396 = vmatprep.subr.bf16.mxu0 0
    %2397 = vmatpush1.bf16.msra.mxu0 %v2384
    %2398 = vmatprep.subr.bf16.mxu0 0
    %2399 = vmatpush1.bf16.msra.mxu0 %v2383
    %2400 = vmatprep.subr.bf16.mxu0 0
    %2401 = vmatpush1.bf16.msra.mxu0 %v2382
    %2402 = vmatprep.subr.bf16.mxu0 0
    %2403 = vmatpush1.bf16.msra.mxu0 %v2381
    %2404 = vmatprep.subr.bf16.mxu0 0
    %2405 = vmatpush1.bf16.msra.mxu0 %v2380
    %2406 = vmatprep.subr.bf16.mxu0 0
    %2407 = vmatpush1.bf16.msra.mxu0 %v2379
    %2408 = vmatprep.subr.bf16.mxu0 0
    %2409 = vmatpush1.bf16.msra.mxu0 %v2378
    %2410 = vmatprep.subr.bf16.mxu0 0
    %2411 = vmatpush2.bf16.msra.mxu0 0
    %2412 = vmatprep.subr.bf16.mxu0 0
    %2413 = vmatpush2.bf16.msra.mxu0 0
    %2414 = vmatprep.subr.bf16.mxu0 0
    %2415 = vmatpush2.bf16.msra.mxu0 0
    %2416 = vmatprep.subr.bf16.mxu0 0
    %2417 = vmatpush2.bf16.msra.mxu0 0
    %2418 = vmatprep.subr.bf16.mxu0 0
    %2419 = vmatpush2.bf16.msra.mxu0 0
    %2420 = vmatprep.subr.bf16.mxu0 0
    %2421 = vmatpush2.bf16.msra.mxu0 0
    %2422 = vmatprep.subr.bf16.mxu0 0
    %2423 = vmatpush2.bf16.msra.mxu0 0
    %2424 = vmatprep.subr.bf16.mxu0 0
    %2425 = vmatpush2.bf16.msra.mxu0 0
    %2426 = vmatprep.mubr.bf16.mxu0 0
    %2427 = vmatmul.mubr.bf16.gmra.mxu0 %v2324
    %v2428 = vpop.f32.mrf.mxu0
    %v2429 = vadd.f32 %v2344, %v2428
    %v2430 = vpop.f32.mrf.mxu0
    %v2431 = vpop.f32.mrf.mxu0
    %v2432 = vadd.f32 %v2344, %v2431
    %v2433 = vpop.f32.mrf.mxu0
    %2434 = vmatprep.mubr.bf16.mxu0 0
    %2435 = vmatmul.mubr.bf16.gmra.mxu0 %v2325
    %v2436 = vpop.f32.mrf.mxu0
    %v2437 = vadd.f32 %v2344, %v2436
    %v2438 = vpop.f32.mrf.mxu0
    %v2439 = vpop.f32.mrf.mxu0
    %v2440 = vadd.f32 %v2344, %v2439
    %v2441 = vpop.f32.mrf.mxu0
    %2442 = vmatprep.mubr.bf16.mxu0 0
    %2443 = vmatmul.mubr.bf16.gmra.mxu0 %v2326
    %v2444 = vpop.f32.mrf.mxu0
    %v2445 = vadd.f32 %v2344, %v2444
    %v2446 = vpop.f32.mrf.mxu0
    %v2447 = vpop.f32.mrf.mxu0
    %v2448 = vadd.f32 %v2344, %v2447
    %v2449 = vpop.f32.mrf.mxu0
    %2450 = vmatprep.mubr.bf16.mxu0 0
    %2451 = vmatmul.mubr.bf16.gmra.mxu0 %v2327
    %v2452 = vpop.f32.mrf.mxu0
    %v2453 = vadd.f32 %v2344, %v2452
    %v2454 = vpop.f32.mrf.mxu0
    %v2455 = vpop.f32.mrf.mxu0
    %v2456 = vadd.f32 %v2344, %v2455
    %v2457 = vpop.f32.mrf.mxu0
    %2458 = vmatprep.mubr.bf16.mxu0 0
    %2459 = vmatmul.mubr.bf16.gmra.mxu0 %v2328
    %v2460 = vpop.f32.mrf.mxu0
    %v2461 = vadd.f32 %v2344, %v2460
    %v2462 = vpop.f32.mrf.mxu0
    %v2463 = vpop.f32.mrf.mxu0
    %v2464 = vadd.f32 %v2344, %v2463
    %v2465 = vpop.f32.mrf.mxu0
    %2466 = vmatprep.mubr.bf16.mxu0 0
    %2467 = vmatmul.mubr.bf16.gmra.mxu0 %v2329
    %v2468 = vpop.f32.mrf.mxu0
    %v2469 = vadd.f32 %v2344, %v2468
    %v2470 = vpop.f32.mrf.mxu0
    %v2471 = vpop.f32.mrf.mxu0
    %v2472 = vadd.f32 %v2344, %v2471
    %v2473 = vpop.f32.mrf.mxu0
    %2474 = vmatprep.mubr.bf16.mxu0 0
    %2475 = vmatmul.mubr.bf16.gmra.mxu0 %v2330
    %v2476 = vpop.f32.mrf.mxu0
    %v2477 = vadd.f32 %v2344, %v2476
    %v2478 = vpop.f32.mrf.mxu0
    %v2479 = vpop.f32.mrf.mxu0
    %v2480 = vadd.f32 %v2344, %v2479
    %v2481 = vpop.f32.mrf.mxu0
    %2482 = vmatprep.mubr.bf16.mxu0 0
    %2483 = vmatmul.mubr.bf16.gmra.mxu0 %v2331
    %v2484 = vpop.f32.mrf.mxu0
    %v2485 = vadd.f32 %v2344, %v2484
    %v2486 = vpop.f32.mrf.mxu0
    %v2487 = vpop.f32.mrf.mxu0
    %v2488 = vadd.f32 %v2344, %v2487
    %v2489 = vpop.f32.mrf.mxu0
    %2490 = vmatprep.mubr.bf16.mxu0 0
    %2491 = vmatmul.mubr.bf16.gmra.mxu0 %v2332
    %v2492 = vpop.f32.mrf.mxu0
    %v2493 = vadd.f32 %v2344, %v2492
    %v2494 = vpop.f32.mrf.mxu0
    %v2495 = vpop.f32.mrf.mxu0
    %v2496 = vadd.f32 %v2344, %v2495
    %v2497 = vpop.f32.mrf.mxu0
    %2498 = vmatprep.mubr.bf16.mxu0 0
    %2499 = vmatmul.mubr.bf16.gmra.mxu0 %v2333
    %v2500 = vpop.f32.mrf.mxu0
    %v2501 = vadd.f32 %v2344, %v2500
    %v2502 = vpop.f32.mrf.mxu0
    %v2503 = vpop.f32.mrf.mxu0
    %v2504 = vadd.f32 %v2344, %v2503
    %v2505 = vpop.f32.mrf.mxu0
    %2506 = vmatprep.mubr.bf16.mxu0 0
    %2507 = vmatmul.mubr.bf16.gmra.mxu0 %v2334
    %v2508 = vpop.f32.mrf.mxu0
    %v2509 = vadd.f32 %v2344, %v2508
    %v2510 = vpop.f32.mrf.mxu0
    %v2511 = vpop.f32.mrf.mxu0
    %v2512 = vadd.f32 %v2344, %v2511
    %v2513 = vpop.f32.mrf.mxu0
    %2514 = vmatprep.mubr.bf16.mxu0 0
    %2515 = vmatmul.mubr.bf16.gmra.mxu0 %v2335
    %v2516 = vpop.f32.mrf.mxu0
    %v2517 = vadd.f32 %v2344, %v2516
    %v2518 = vpop.f32.mrf.mxu0
    %v2519 = vpop.f32.mrf.mxu0
    %v2520 = vadd.f32 %v2344, %v2519
    %v2521 = vpop.f32.mrf.mxu0
    %2522 = vmatprep.mubr.bf16.mxu0 0
    %2523 = vmatmul.mubr.bf16.gmra.mxu0 %v2336
    %v2524 = vpop.f32.mrf.mxu0
    %v2525 = vadd.f32 %v2344, %v2524
    %v2526 = vpop.f32.mrf.mxu0
    %v2527 = vpop.f32.mrf.mxu0
    %v2528 = vadd.f32 %v2344, %v2527
    %v2529 = vpop.f32.mrf.mxu0
    %2530 = vmatprep.mubr.bf16.mxu0 0
    %2531 = vmatmul.mubr.bf16.gmra.mxu0 %v2337
    %v2532 = vpop.f32.mrf.mxu0
    %v2533 = vadd.f32 %v2344, %v2532
    %v2534 = vpop.f32.mrf.mxu0
    %v2535 = vpop.f32.mrf.mxu0
    %v2536 = vadd.f32 %v2344, %v2535
    %v2537 = vpop.f32.mrf.mxu0
    %2538 = vmatprep.mubr.bf16.mxu0 0
    %2539 = vmatmul.mubr.bf16.gmra.mxu0 %v2338
    %v2540 = vpop.f32.mrf.mxu0
    %v2541 = vadd.f32 %v2344, %v2540
    %v2542 = vpop.f32.mrf.mxu0
    %v2543 = vpop.f32.mrf.mxu0
    %v2544 = vadd.f32 %v2344, %v2543
    %v2545 = vpop.f32.mrf.mxu0
    %2546 = vmatprep.mubr.bf16.mxu0 0
    %2547 = vmatmul.mubr.bf16.gmra.mxu0 %v2339
    %v2548 = vpop.f32.mrf.mxu0
    %v2549 = vadd.f32 %v2344, %v2548
    %v2550 = vpop.f32.mrf.mxu0
    %v2551 = vpop.f32.mrf.mxu0
    %v2552 = vadd.f32 %v2344, %v2551
    %v2553 = vpop.f32.mrf.mxu0
    %2554 = vdwg.mxu0
    %v2555 = vmax.f32 %v2429, 0.0
    %v2556 = vmax.f32 %v2432, 0.0
    %v2557 = vmax.f32 %v2437, 0.0
    %v2558 = vmax.f32 %v2440, 0.0
    %v2559 = vmax.f32 %v2445, 0.0
    %v2560 = vmax.f32 %v2448, 0.0
    %v2561 = vmax.f32 %v2453, 0.0
    %v2562 = vmax.f32 %v2456, 0.0
    %v2563 = vmax.f32 %v2461, 0.0
    %v2564 = vmax.f32 %v2464, 0.0
    %v2565 = vmax.f32 %v2469, 0.0
    %v2566 = vmax.f32 %v2472, 0.0
    %v2567 = vmax.f32 %v2477, 0.0
    %v2568 = vmax.f32 %v2480, 0.0
    %v2569 = vmax.f32 %v2485, 0.0
    %v2570 = vmax.f32 %v2488, 0.0
    %v2571 = vmax.f32 %v2493, 0.0
    %v2572 = vmax.f32 %v2496, 0.0
    %v2573 = vmax.f32 %v2501, 0.0
    %v2574 = vmax.f32 %v2504, 0.0
    %v2575 = vmax.f32 %v2509, 0.0
    %v2576 = vmax.f32 %v2512, 0.0
    %v2577 = vmax.f32 %v2517, 0.0
    %v2578 = vmax.f32 %v2520, 0.0
    %v2579 = vmax.f32 %v2525, 0.0
    %v2580 = vmax.f32 %v2528, 0.0
    %v2581 = vmax.f32 %v2533, 0.0
    %v2582 = vmax.f32 %v2536, 0.0
    %v2583 = vmax.f32 %v2541, 0.0
    %v2584 = vmax.f32 %v2544, 0.0
    %v2585 = vmax.f32 %v2549, 0.0
    %v2586 = vmax.f32 %v2552, 0.0
    %v2587 = vmul.f32 %v2555, %v1155
    %v2588 = vmul.f32 %v2556, %v1160
    %v2589 = vmul.f32 %v2557, %v1165
    %v2590 = vmul.f32 %v2558, %v1170
    %v2591 = vmul.f32 %v2559, %v1175
    %v2592 = vmul.f32 %v2560, %v1180
    %v2593 = vmul.f32 %v2561, %v1185
    %v2594 = vmul.f32 %v2562, %v1190
    %v2595 = vmul.f32 %v2563, %v1195
    %v2596 = vmul.f32 %v2564, %v1200
    %v2597 = vmul.f32 %v2565, %v1205
    %v2598 = vmul.f32 %v2566, %v1210
    %v2599 = vmul.f32 %v2567, %v1215
    %v2600 = vmul.f32 %v2568, %v1220
    %v2601 = vmul.f32 %v2569, %v1225
    %v2602 = vmul.f32 %v2570, %v1230
    %v2603 = vmul.f32 %v2571, %v1235
    %v2604 = vmul.f32 %v2572, %v1240
    %v2605 = vmul.f32 %v2573, %v1245
    %v2606 = vmul.f32 %v2574, %v1250
    %v2607 = vmul.f32 %v2575, %v1255
    %v2608 = vmul.f32 %v2576, %v1260
    %v2609 = vmul.f32 %v2577, %v1265
    %v2610 = vmul.f32 %v2578, %v1270
    %v2611 = vmul.f32 %v2579, %v1275
    %v2612 = vmul.f32 %v2580, %v1280
    %v2613 = vmul.f32 %v2581, %v1285
    %v2614 = vmul.f32 %v2582, %v1290
    %v2615 = vmul.f32 %v2583, %v1295
    %v2616 = vmul.f32 %v2584, %v1300
    %v2617 = vmul.f32 %v2585, %v1305
    %v2618 = vmul.f32 %v2586, %v1310
    %v2619 = vadd.f32 %v2587, %v2588
    %v2620 = vadd.f32 %v2619, %v2589
    %v2621 = vadd.f32 %v2620, %v2590
    %v2622 = vadd.f32 %v2621, %v2591
    %v2623 = vadd.f32 %v2622, %v2592
    %v2624 = vadd.f32 %v2623, %v2593
    %v2625 = vadd.f32 %v2624, %v2594
    %v2626 = vadd.f32 %v2625, %v2595
    %v2627 = vadd.f32 %v2626, %v2596
    %v2628 = vadd.f32 %v2627, %v2597
    %v2629 = vadd.f32 %v2628, %v2598
    %v2630 = vadd.f32 %v2629, %v2599
    %v2631 = vadd.f32 %v2630, %v2600
    %v2632 = vadd.f32 %v2631, %v2601
    %v2633 = vadd.f32 %v2632, %v2602
    %v2634 = vadd.f32 %v2633, %v2603
    %v2635 = vadd.f32 %v2634, %v2604
    %v2636 = vadd.f32 %v2635, %v2605
    %v2637 = vadd.f32 %v2636, %v2606
    %v2638 = vadd.f32 %v2637, %v2607
    %v2639 = vadd.f32 %v2638, %v2608
    %v2640 = vadd.f32 %v2639, %v2609
    %v2641 = vadd.f32 %v2640, %v2610
    %v2642 = vadd.f32 %v2641, %v2611
    %v2643 = vadd.f32 %v2642, %v2612
    %v2644 = vadd.f32 %v2643, %v2613
    %v2645 = vadd.f32 %v2644, %v2614
    %v2646 = vadd.f32 %v2645, %v2615
    %v2647 = vadd.f32 %v2646, %v2616
    %v2648 = vadd.f32 %v2647, %v2617
    %v2649 = vadd.f32 %v2648, %v2618
    %v2650 = vrot.slane %v2649, 4
    %v2651 = vadd.f32 %v2649, %v2650
    %v2652 = vrot.slane %v2651, 2
    %v2653 = vadd.f32 %v2651, %v2652
    %v2654 = vrot.slane %v2653, 1
    %v2655 = vadd.f32 %v2653, %v2654
    %v2656 = vmul.f32 %v2587, %v2587
    %v2657 = vmul.f32 %v2588, %v2588
    %v2658 = vmul.f32 %v2589, %v2589
    %v2659 = vmul.f32 %v2590, %v2590
    %v2660 = vmul.f32 %v2591, %v2591
    %v2661 = vmul.f32 %v2592, %v2592
    %v2662 = vmul.f32 %v2593, %v2593
    %v2663 = vmul.f32 %v2594, %v2594
    %v2664 = vmul.f32 %v2595, %v2595
    %v2665 = vmul.f32 %v2596, %v2596
    %v2666 = vmul.f32 %v2597, %v2597
    %v2667 = vmul.f32 %v2598, %v2598
    %v2668 = vmul.f32 %v2599, %v2599
    %v2669 = vmul.f32 %v2600, %v2600
    %v2670 = vmul.f32 %v2601, %v2601
    %v2671 = vmul.f32 %v2602, %v2602
    %v2672 = vmul.f32 %v2603, %v2603
    %v2673 = vmul.f32 %v2604, %v2604
    %v2674 = vmul.f32 %v2605, %v2605
    %v2675 = vmul.f32 %v2606, %v2606
    %v2676 = vmul.f32 %v2607, %v2607
    %v2677 = vmul.f32 %v2608, %v2608
    %v2678 = vmul.f32 %v2609, %v2609
    %v2679 = vmul.f32 %v2610, %v2610
    %v2680 = vmul.f32 %v2611, %v2611
    %v2681 = vmul.f32 %v2612, %v2612
    %v2682 = vmul.f32 %v2613, %v2613
    %v2683 = vmul.f32 %v2614, %v2614
    %v2684 = vmul.f32 %v2615, %v2615
    %v2685 = vmul.f32 %v2616, %v2616
    %v2686 = vmul.f32 %v2617, %v2617
    %v2687 = vmul.f32 %v2618, %v2618
    %v2688 = vadd.f32 %v2656, %v2657
    %v2689 = vadd.f32 %v2688, %v2658
    %v2690 = vadd.f32 %v2689, %v2659
    %v2691 = vadd.f32 %v2690, %v2660
    %v2692 = vadd.f32 %v2691, %v2661
    %v2693 = vadd.f32 %v2692, %v2662
    %v2694 = vadd.f32 %v2693, %v2663
    %v2695 = vadd.f32 %v2694, %v2664
    %v2696 = vadd.f32 %v2695, %v2665
    %v2697 = vadd.f32 %v2696, %v2666
    %v2698 = vadd.f32 %v2697, %v2667
    %v2699 = vadd.f32 %v2698, %v2668
    %v2700 = vadd.f32 %v2699, %v2669
    %v2701 = vadd.f32 %v2700, %v2670
    %v2702 = vadd.f32 %v2701, %v2671
    %v2703 = vadd.f32 %v2702, %v2672
    %v2704 = vadd.f32 %v2703, %v2673
    %v2705 = vadd.f32 %v2704, %v2674
    %v2706 = vadd.f32 %v2705, %v2675
    %v2707 = vadd.f32 %v2706, %v2676
    %v2708 = vadd.f32 %v2707, %v2677
    %v2709 = vadd.f32 %v2708, %v2678
    %v2710 = vadd.f32 %v2709, %v2679
    %v2711 = vadd.f32 %v2710, %v2680
    %v2712 = vadd.f32 %v2711, %v2681
    %v2713 = vadd.f32 %v2712, %v2682
    %v2714 = vadd.f32 %v2713, %v2683
    %v2715 = vadd.f32 %v2714, %v2684
    %v2716 = vadd.f32 %v2715, %v2685
    %v2717 = vadd.f32 %v2716, %v2686
    %v2718 = vadd.f32 %v2717, %v2687
    %v2719 = vrot.slane %v2718, 4
    %v2720 = vadd.f32 %v2718, %v2719
    %v2721 = vrot.slane %v2720, 2
    %v2722 = vadd.f32 %v2720, %v2721
    %v2723 = vrot.slane %v2722, 1
    %v2724 = vadd.f32 %v2722, %v2723
    %v2725 = vmul.f32 %v2655, %v1450
    %v2726 = vmul.f32 %v2724, %v1450
    %v2727 = vmul.f32 %v2725, %v2725
    %v2728 = vsub.f32 %v2726, %v2727
    %v2729 = vmax.f32 %v2728, 0.0
    %v2730 = vsub.f32 %v2587, %v2725
    %v2731 = vsub.f32 %v2588, %v2725
    %v2732 = vsub.f32 %v2589, %v2725
    %v2733 = vsub.f32 %v2590, %v2725
    %v2734 = vsub.f32 %v2591, %v2725
    %v2735 = vsub.f32 %v2592, %v2725
    %v2736 = vsub.f32 %v2593, %v2725
    %v2737 = vsub.f32 %v2594, %v2725
    %v2738 = vsub.f32 %v2595, %v2725
    %v2739 = vsub.f32 %v2596, %v2725
    %v2740 = vsub.f32 %v2597, %v2725
    %v2741 = vsub.f32 %v2598, %v2725
    %v2742 = vsub.f32 %v2599, %v2725
    %v2743 = vsub.f32 %v2600, %v2725
    %v2744 = vsub.f32 %v2601, %v2725
    %v2745 = vsub.f32 %v2602, %v2725
    %v2746 = vsub.f32 %v2603, %v2725
    %v2747 = vsub.f32 %v2604, %v2725
    %v2748 = vsub.f32 %v2605, %v2725
    %v2749 = vsub.f32 %v2606, %v2725
    %v2750 = vsub.f32 %v2607, %v2725
    %v2751 = vsub.f32 %v2608, %v2725
    %v2752 = vsub.f32 %v2609, %v2725
    %v2753 = vsub.f32 %v2610, %v2725
    %v2754 = vsub.f32 %v2611, %v2725
    %v2755 = vsub.f32 %v2612, %v2725
    %v2756 = vsub.f32 %v2613, %v2725
    %v2757 = vsub.f32 %v2614, %v2725
    %v2758 = vsub.f32 %v2615, %v2725
    %v2759 = vsub.f32 %v2616, %v2725
    %v2760 = vsub.f32 %v2617, %v2725
    %v2761 = vsub.f32 %v2618, %v2725
    %v2762 = vadd.f32 %v2729, 1e-05
    %v2763 = vrsqrt.pop %v2762
    %v2764 = vmul.f32 %v2730, %v2763
    %v2765 = vmul.f32 %v2731, %v2763
    %v2766 = vmul.f32 %v2732, %v2763
    %v2767 = vmul.f32 %v2733, %v2763
    %v2768 = vmul.f32 %v2734, %v2763
    %v2769 = vmul.f32 %v2735, %v2763
    %v2770 = vmul.f32 %v2736, %v2763
    %v2771 = vmul.f32 %v2737, %v2763
    %v2772 = vmul.f32 %v2738, %v2763
    %v2773 = vmul.f32 %v2739, %v2763
    %v2774 = vmul.f32 %v2740, %v2763
    %v2775 = vmul.f32 %v2741, %v2763
    %v2776 = vmul.f32 %v2742, %v2763
    %v2777 = vmul.f32 %v2743, %v2763
    %v2778 = vmul.f32 %v2744, %v2763
    %v2779 = vmul.f32 %v2745, %v2763
    %v2780 = vmul.f32 %v2746, %v2763
    %v2781 = vmul.f32 %v2747, %v2763
    %v2782 = vmul.f32 %v2748, %v2763
    %v2783 = vmul.f32 %v2749, %v2763
    %v2784 = vmul.f32 %v2750, %v2763
    %v2785 = vmul.f32 %v2751, %v2763
    %v2786 = vmul.f32 %v2752, %v2763
    %v2787 = vmul.f32 %v2753, %v2763
    %v2788 = vmul.f32 %v2754, %v2763
    %v2789 = vmul.f32 %v2755, %v2763
    %v2790 = vmul.f32 %v2756, %v2763
    %v2791 = vmul.f32 %v2757, %v2763
    %v2792 = vmul.f32 %v2758, %v2763
    %v2793 = vmul.f32 %v2759, %v2763
    %v2794 = vmul.f32 %v2760, %v2763
    %v2795 = vmul.f32 %v2761, %v2763
    %v2797 = vlaneseq
    %v2798 = vshrl.u32 %v2797, 7
    %v2799 = vsub.s32 0, %v2798
    %v2800 = vrot.slane %v1898, %v2799
    %v2802 = vmul.f32 %v2764, %v2800
    %v2803 = vmul.f32 %v2765, %v2800
    %v2804 = vmul.f32 %v2766, %v2800
    %v2805 = vmul.f32 %v2767, %v2800
    %v2806 = vmul.f32 %v2768, %v2800
    %v2807 = vmul.f32 %v2769, %v2800
    %v2808 = vmul.f32 %v2770, %v2800
    %v2809 = vmul.f32 %v2771, %v2800
    %v2810 = vmul.f32 %v2772, %v2800
    %v2811 = vmul.f32 %v2773, %v2800
    %v2812 = vmul.f32 %v2774, %v2800
    %v2813 = vmul.f32 %v2775, %v2800
    %v2814 = vmul.f32 %v2776, %v2800
    %v2815 = vmul.f32 %v2777, %v2800
    %v2816 = vmul.f32 %v2778, %v2800
    %v2817 = vmul.f32 %v2779, %v2800
    %v2818 = vmul.f32 %v2780, %v2800
    %v2819 = vmul.f32 %v2781, %v2800
    %v2820 = vmul.f32 %v2782, %v2800
    %v2821 = vmul.f32 %v2783, %v2800
    %v2822 = vmul.f32 %v2784, %v2800
    %v2823 = vmul.f32 %v2785, %v2800
    %v2824 = vmul.f32 %v2786, %v2800
    %v2825 = vmul.f32 %v2787, %v2800
    %v2826 = vmul.f32 %v2788, %v2800
    %v2827 = vmul.f32 %v2789, %v2800
    %v2828 = vmul.f32 %v2790, %v2800
    %v2829 = vmul.f32 %v2791, %v2800
    %v2830 = vmul.f32 %v2792, %v2800
    %v2831 = vmul.f32 %v2793, %v2800
    %v2832 = vmul.f32 %v2794, %v2800
    %v2833 = vmul.f32 %v2795, %v2800
    %v2835 = vlaneseq
    %v2836 = vshrl.u32 %v2835, 7
    %v2837 = vsub.s32 0, %v2836
    %v2838 = vrot.slane %v1899, %v2837
    %v2840 = vadd.f32 %v2802, %v2838
    %v2841 = vadd.f32 %v2803, %v2838
    %v2842 = vadd.f32 %v2804, %v2838
    %v2843 = vadd.f32 %v2805, %v2838
    %v2844 = vadd.f32 %v2806, %v2838
    %v2845 = vadd.f32 %v2807, %v2838
    %v2846 = vadd.f32 %v2808, %v2838
    %v2847 = vadd.f32 %v2809, %v2838
    %v2848 = vadd.f32 %v2810, %v2838
    %v2849 = vadd.f32 %v2811, %v2838
    %v2850 = vadd.f32 %v2812, %v2838
    %v2851 = vadd.f32 %v2813, %v2838
    %v2852 = vadd.f32 %v2814, %v2838
    %v2853 = vadd.f32 %v2815, %v2838
    %v2854 = vadd.f32 %v2816, %v2838
    %v2855 = vadd.f32 %v2817, %v2838
    %v2856 = vadd.f32 %v2818, %v2838
    %v2857 = vadd.f32 %v2819, %v2838
    %v2858 = vadd.f32 %v2820, %v2838
    %v2859 = vadd.f32 %v2821, %v2838
    %v2860 = vadd.f32 %v2822, %v2838
    %v2861 = vadd.f32 %v2823, %v2838
    %v2862 = vadd.f32 %v2824, %v2838
    %v2863 = vadd.f32 %v2825, %v2838
    %v2864 = vadd.f32 %v2826, %v2838
    %v2865 = vadd.f32 %v2827, %v2838
    %v2866 = vadd.f32 %v2828, %v2838
    %v2867 = vadd.f32 %v2829, %v2838
    %v2868 = vadd.f32 %v2830, %v2838
    %v2869 = vadd.f32 %v2831, %v2838
    %v2870 = vadd.f32 %v2832, %v2838
    %v2871 = vadd.f32 %v2833, %v2838
    %v2872 = vsel %vm1726, %v2840, -1e+30
    %v2873 = vsel %vm1727, %v2841, -1e+30
    %v2874 = vsel %vm1728, %v2842, -1e+30
    %v2875 = vsel %vm1729, %v2843, -1e+30
    %v2876 = vsel %vm1730, %v2844, -1e+30
    %v2877 = vsel %vm1731, %v2845, -1e+30
    %v2878 = vsel %vm1732, %v2846, -1e+30
    %v2879 = vsel %vm1733, %v2847, -1e+30
    %v2880 = vsel %vm1734, %v2848, -1e+30
    %v2881 = vsel %vm1735, %v2849, -1e+30
    %v2882 = vsel %vm1736, %v2850, -1e+30
    %v2883 = vsel %vm1737, %v2851, -1e+30
    %v2884 = vsel %vm1738, %v2852, -1e+30
    %v2885 = vsel %vm1739, %v2853, -1e+30
    %v2886 = vsel %vm1740, %v2854, -1e+30
    %v2887 = vsel %vm1741, %v2855, -1e+30
    %v2888 = vsel %vm1742, %v2856, -1e+30
    %v2889 = vsel %vm1743, %v2857, -1e+30
    %v2890 = vsel %vm1744, %v2858, -1e+30
    %v2891 = vsel %vm1745, %v2859, -1e+30
    %v2892 = vsel %vm1746, %v2860, -1e+30
    %v2893 = vsel %vm1747, %v2861, -1e+30
    %v2894 = vsel %vm1748, %v2862, -1e+30
    %v2895 = vsel %vm1749, %v2863, -1e+30
    %v2896 = vsel %vm1750, %v2864, -1e+30
    %v2897 = vsel %vm1751, %v2865, -1e+30
    %v2898 = vsel %vm1752, %v2866, -1e+30
    %v2899 = vsel %vm1753, %v2867, -1e+30
    %v2900 = vsel %vm1754, %v2868, -1e+30
    %v2901 = vsel %vm1755, %v2869, -1e+30
    %v2902 = vsel %vm1756, %v2870, -1e+30
    %v2903 = vsel %vm1757, %v2871, -1e+30
    %v2904 = vmax.f32 %v2872, %v2876
    %v2905 = vmax.f32 %v2873, %v2877
    %v2906 = vmax.f32 %v2874, %v2878
    %v2907 = vmax.f32 %v2875, %v2879
    %v2908 = vmax.f32 %v2904, %v2905
    %v2909 = vmax.f32 %v2906, %v2907
    %v2910 = vmax.f32 %v2908, %v2909
    %v2911 = vrot.slane %v2910, 4
    %v2912 = vmax.f32 %v2910, %v2911
    %v2913 = vrot.slane %v2912, 2
    %v2914 = vmax.f32 %v2912, %v2913
    %v2915 = vrot.slane %v2914, 1
    %v2916 = vmax.f32 %v2914, %v2915
    %v2917 = vmax.f32 %v2880, %v2884
    %v2918 = vmax.f32 %v2881, %v2885
    %v2919 = vmax.f32 %v2882, %v2886
    %v2920 = vmax.f32 %v2883, %v2887
    %v2921 = vmax.f32 %v2917, %v2918
    %v2922 = vmax.f32 %v2919, %v2920
    %v2923 = vmax.f32 %v2921, %v2922
    %v2924 = vrot.slane %v2923, 4
    %v2925 = vmax.f32 %v2923, %v2924
    %v2926 = vrot.slane %v2925, 2
    %v2927 = vmax.f32 %v2925, %v2926
    %v2928 = vrot.slane %v2927, 1
    %v2929 = vmax.f32 %v2927, %v2928
    %v2930 = vmax.f32 %v2888, %v2892
    %v2931 = vmax.f32 %v2889, %v2893
    %v2932 = vmax.f32 %v2890, %v2894
    %v2933 = vmax.f32 %v2891, %v2895
    %v2934 = vmax.f32 %v2930, %v2931
    %v2935 = vmax.f32 %v2932, %v2933
    %v2936 = vmax.f32 %v2934, %v2935
    %v2937 = vrot.slane %v2936, 4
    %v2938 = vmax.f32 %v2936, %v2937
    %v2939 = vrot.slane %v2938, 2
    %v2940 = vmax.f32 %v2938, %v2939
    %v2941 = vrot.slane %v2940, 1
    %v2942 = vmax.f32 %v2940, %v2941
    %v2943 = vmax.f32 %v2896, %v2900
    %v2944 = vmax.f32 %v2897, %v2901
    %v2945 = vmax.f32 %v2898, %v2902
    %v2946 = vmax.f32 %v2899, %v2903
    %v2947 = vmax.f32 %v2943, %v2944
    %v2948 = vmax.f32 %v2945, %v2946
    %v2949 = vmax.f32 %v2947, %v2948
    %v2950 = vrot.slane %v2949, 4
    %v2951 = vmax.f32 %v2949, %v2950
    %v2952 = vrot.slane %v2951, 2
    %v2953 = vmax.f32 %v2951, %v2952
    %v2954 = vrot.slane %v2953, 1
    %v2955 = vmax.f32 %v2953, %v2954
    %v2956 = vsel %vm1842, %v2916, %v2929
    %v2957 = vsel %vm1844, %v2956, %v2942
    %v2958 = vsel %vm1846, %v2957, %v2955
    %v2959 = vpack.c.bf16 %v2841, %v2840
    %v2960 = vpack.c.bf16 %v2843, %v2842
    %v2961 = vpack.c.bf16 %v2845, %v2844
    %v2962 = vpack.c.bf16 %v2847, %v2846
    %v2963 = vpack.c.bf16 %v2849, %v2848
    %v2964 = vpack.c.bf16 %v2851, %v2850
    %v2965 = vpack.c.bf16 %v2853, %v2852
    %v2966 = vpack.c.bf16 %v2855, %v2854
    %v2967 = vpack.c.bf16 %v2857, %v2856
    %v2968 = vpack.c.bf16 %v2859, %v2858
    %v2969 = vpack.c.bf16 %v2861, %v2860
    %v2970 = vpack.c.bf16 %v2863, %v2862
    %v2971 = vpack.c.bf16 %v2865, %v2864
    %v2972 = vpack.c.bf16 %v2867, %v2866
    %v2973 = vpack.c.bf16 %v2869, %v2868
    %v2974 = vpack.c.bf16 %v2871, %v2870
    %s2975 = scalar_lea.vmem [#allocation9], 64
    %v2976 = vld [vmem:[%s2975] sm:$0xf]
    %v2977 = vld [vmem:[%s2975 + $0x4] sm:$0xf]
    %v2978 = vld [vmem:[%s2975 + $0x8] sm:$0xf]
    %v2979 = vld [vmem:[%s2975 + $0xc] sm:$0xf]
    %v2980 = vld [vmem:[%s2975 + $0x10] sm:$0xf]
    %v2981 = vld [vmem:[%s2975 + $0x14] sm:$0xf]
    %v2982 = vld [vmem:[%s2975 + $0x18] sm:$0xf]
    %v2983 = vld [vmem:[%s2975 + $0x1c] sm:$0xf]
    %v2984 = vld [vmem:[%s2975 + $0x20] sm:$0xf]
    %v2985 = vld [vmem:[%s2975 + $0x24] sm:$0xf]
    %v2986 = vld [vmem:[%s2975 + $0x28] sm:$0xf]
    %v2987 = vld [vmem:[%s2975 + $0x2c] sm:$0xf]
    %v2988 = vld [vmem:[%s2975 + $0x30] sm:$0xf]
    %v2989 = vld [vmem:[%s2975 + $0x34] sm:$0xf]
    %v2990 = vld [vmem:[%s2975 + $0x38] sm:$0xf]
    %v2991 = vld [vmem:[%s2975 + $0x3c] sm:$0xf]
    %s2992 = scalar_lea.vmem %s11, 1
    %v2993 = vld [vmem:[%s2992] sm:$0x1]
    %s2994 = scalar_lea.vmem [#allocation11], 64
    %v2995 = vld [vmem:[%s2994] sm:$0xf]
    %v2996 = vld [vmem:[%s2994 + $0x4] sm:$0xf]
    %v2997 = vld [vmem:[%s2994 + $0x8] sm:$0xf]
    %v2998 = vld [vmem:[%s2994 + $0xc] sm:$0xf]
    %v2999 = vld [vmem:[%s2994 + $0x10] sm:$0xf]
    %v3000 = vld [vmem:[%s2994 + $0x14] sm:$0xf]
    %v3001 = vld [vmem:[%s2994 + $0x18] sm:$0xf]
    %v3002 = vld [vmem:[%s2994 + $0x1c] sm:$0xf]
    %v3003 = vld [vmem:[%s2994 + $0x20] sm:$0xf]
    %v3004 = vld [vmem:[%s2994 + $0x24] sm:$0xf]
    %v3005 = vld [vmem:[%s2994 + $0x28] sm:$0xf]
    %v3006 = vld [vmem:[%s2994 + $0x2c] sm:$0xf]
    %v3007 = vld [vmem:[%s2994 + $0x30] sm:$0xf]
    %v3008 = vld [vmem:[%s2994 + $0x34] sm:$0xf]
    %v3009 = vld [vmem:[%s2994 + $0x38] sm:$0xf]
    %v3010 = vld [vmem:[%s2994 + $0x3c] sm:$0xf]
    %s3011 = scalar_lea.vmem %s13, 1
    %v3012 = vld [vmem:[%s3011] sm:$0x1]
    %s3013 = scalar_lea.vmem %s14, 1
    %v3014 = vld [vmem:[%s3013] sm:$0x1]
    %s3015 = scalar_lea.vmem %s15, 1
    %v3016 = vld [vmem:[%s3015] sm:$0x1]
    %3017 = vmatprep.subr.bf16.mxu0 0
    %3018 = vmatpush1.bf16.msra.mxu0 %v2966
    %3019 = vmatprep.subr.bf16.mxu0 0
    %3020 = vmatpush1.bf16.msra.mxu0 %v2965
    %3021 = vmatprep.subr.bf16.mxu0 0
    %3022 = vmatpush1.bf16.msra.mxu0 %v2964
    %3023 = vmatprep.subr.bf16.mxu0 0
    %3024 = vmatpush1.bf16.msra.mxu0 %v2963
    %3025 = vmatprep.subr.bf16.mxu0 0
    %3026 = vmatpush1.bf16.msra.mxu0 %v2962
    %3027 = vmatprep.subr.bf16.mxu0 0
    %3028 = vmatpush1.bf16.msra.mxu0 %v2961
    %3029 = vmatprep.subr.bf16.mxu0 0
    %3030 = vmatpush1.bf16.msra.mxu0 %v2960
    %3031 = vmatprep.subr.bf16.mxu0 0
    %3032 = vmatpush1.bf16.msra.mxu0 %v2959
    %3033 = vmatprep.subr.bf16.mxu0 0
    %3034 = vmatpush2.bf16.msra.mxu0 %v2974
    %3035 = vmatprep.subr.bf16.mxu0 0
    %3036 = vmatpush2.bf16.msra.mxu0 %v2973
    %3037 = vmatprep.subr.bf16.mxu0 0
    %3038 = vmatpush2.bf16.msra.mxu0 %v2972
    %3039 = vmatprep.subr.bf16.mxu0 0
    %3040 = vmatpush2.bf16.msra.mxu0 %v2971
    %3041 = vmatprep.subr.bf16.mxu0 0
    %3042 = vmatpush2.bf16.msra.mxu0 %v2970
    %3043 = vmatprep.subr.bf16.mxu0 0
    %3044 = vmatpush2.bf16.msra.mxu0 %v2969
    %3045 = vmatprep.subr.bf16.mxu0 0
    %3046 = vmatpush2.bf16.msra.mxu0 %v2968
    %3047 = vmatprep.subr.bf16.mxu0 0
    %3048 = vmatpush2.bf16.msra.mxu0 %v2967
    %3049 = vmatprep.mubr.bf16.mxu0 %v402
    %3050 = vmatmul.mubr.bf16.gmra.mxu0 %v401
    %v3051 = vpop.f32.mrf.mxu0
    %v3052 = vadd.f32 0.0, %v3051
    %v3053 = vpop.f32.mrf.mxu0
    %v3054 = vpop.f32.mrf.mxu0
    %v3055 = vadd.f32 0.0, %v3054
    %v3056 = vpop.f32.mrf.mxu0
    %3057 = vmatprep.mubr.bf16.mxu0 %v404
    %3058 = vmatmul.mubr.bf16.gmra.mxu0 %v403
    %v3059 = vpop.f32.mrf.mxu0
    %v3060 = vadd.f32 0.0, %v3059
    %v3061 = vpop.f32.mrf.mxu0
    %v3062 = vpop.f32.mrf.mxu0
    %v3063 = vadd.f32 0.0, %v3062
    %v3064 = vpop.f32.mrf.mxu0
    %3065 = vmatprep.mubr.bf16.mxu0 %v406
    %3066 = vmatmul.mubr.bf16.gmra.mxu0 %v405
    %v3067 = vpop.f32.mrf.mxu0
    %v3068 = vadd.f32 0.0, %v3067
    %v3069 = vpop.f32.mrf.mxu0
    %v3070 = vpop.f32.mrf.mxu0
    %v3071 = vadd.f32 0.0, %v3070
    %v3072 = vpop.f32.mrf.mxu0
    %3073 = vmatprep.mubr.bf16.mxu0 %v408
    %3074 = vmatmul.mubr.bf16.gmra.mxu0 %v407
    %v3075 = vpop.f32.mrf.mxu0
    %v3076 = vadd.f32 0.0, %v3075
    %v3077 = vpop.f32.mrf.mxu0
    %v3078 = vpop.f32.mrf.mxu0
    %v3079 = vadd.f32 0.0, %v3078
    %v3080 = vpop.f32.mrf.mxu0
    %3081 = vmatprep.mubr.bf16.mxu0 %v410
    %3082 = vmatmul.mubr.bf16.gmra.mxu0 %v409
    %v3083 = vpop.f32.mrf.mxu0
    %v3084 = vadd.f32 0.0, %v3083
    %v3085 = vpop.f32.mrf.mxu0
    %v3086 = vpop.f32.mrf.mxu0
    %v3087 = vadd.f32 0.0, %v3086
    %v3088 = vpop.f32.mrf.mxu0
    %3089 = vmatprep.mubr.bf16.mxu0 %v412
    %3090 = vmatmul.mubr.bf16.gmra.mxu0 %v411
    %v3091 = vpop.f32.mrf.mxu0
    %v3092 = vadd.f32 0.0, %v3091
    %v3093 = vpop.f32.mrf.mxu0
    %v3094 = vpop.f32.mrf.mxu0
    %v3095 = vadd.f32 0.0, %v3094
    %v3096 = vpop.f32.mrf.mxu0
    %3097 = vmatprep.mubr.bf16.mxu0 %v414
    %3098 = vmatmul.mubr.bf16.gmra.mxu0 %v413
    %v3099 = vpop.f32.mrf.mxu0
    %v3100 = vadd.f32 0.0, %v3099
    %v3101 = vpop.f32.mrf.mxu0
    %v3102 = vpop.f32.mrf.mxu0
    %v3103 = vadd.f32 0.0, %v3102
    %v3104 = vpop.f32.mrf.mxu0
    %3105 = vmatprep.mubr.bf16.mxu0 %v416
    %3106 = vmatmul.mubr.bf16.gmra.mxu0 %v415
    %v3107 = vpop.f32.mrf.mxu0
    %v3108 = vadd.f32 0.0, %v3107
    %v3109 = vpop.f32.mrf.mxu0
    %v3110 = vpop.f32.mrf.mxu0
    %v3111 = vadd.f32 0.0, %v3110
    %v3112 = vpop.f32.mrf.mxu0
    %3113 = vmatprep.mubr.bf16.mxu0 %v418
    %3114 = vmatmul.mubr.bf16.gmra.mxu0 %v417
    %v3115 = vpop.f32.mrf.mxu0
    %v3116 = vadd.f32 0.0, %v3115
    %v3117 = vpop.f32.mrf.mxu0
    %v3118 = vpop.f32.mrf.mxu0
    %v3119 = vadd.f32 0.0, %v3118
    %v3120 = vpop.f32.mrf.mxu0
    %3121 = vmatprep.mubr.bf16.mxu0 %v420
    %3122 = vmatmul.mubr.bf16.gmra.mxu0 %v419
    %v3123 = vpop.f32.mrf.mxu0
    %v3124 = vadd.f32 0.0, %v3123
    %v3125 = vpop.f32.mrf.mxu0
    %v3126 = vpop.f32.mrf.mxu0
    %v3127 = vadd.f32 0.0, %v3126
    %v3128 = vpop.f32.mrf.mxu0
    %3129 = vmatprep.mubr.bf16.mxu0 %v422
    %3130 = vmatmul.mubr.bf16.gmra.mxu0 %v421
    %v3131 = vpop.f32.mrf.mxu0
    %v3132 = vadd.f32 0.0, %v3131
    %v3133 = vpop.f32.mrf.mxu0
    %v3134 = vpop.f32.mrf.mxu0
    %v3135 = vadd.f32 0.0, %v3134
    %v3136 = vpop.f32.mrf.mxu0
    %3137 = vmatprep.mubr.bf16.mxu0 %v424
    %3138 = vmatmul.mubr.bf16.gmra.mxu0 %v423
    %v3139 = vpop.f32.mrf.mxu0
    %v3140 = vadd.f32 0.0, %v3139
    %v3141 = vpop.f32.mrf.mxu0
    %v3142 = vpop.f32.mrf.mxu0
    %v3143 = vadd.f32 0.0, %v3142
    %v3144 = vpop.f32.mrf.mxu0
    %3145 = vmatprep.mubr.bf16.mxu0 %v426
    %3146 = vmatmul.mubr.bf16.gmra.mxu0 %v425
    %v3147 = vpop.f32.mrf.mxu0
    %v3148 = vadd.f32 0.0, %v3147
    %v3149 = vpop.f32.mrf.mxu0
    %v3150 = vpop.f32.mrf.mxu0
    %v3151 = vadd.f32 0.0, %v3150
    %v3152 = vpop.f32.mrf.mxu0
    %3153 = vmatprep.mubr.bf16.mxu0 %v428
    %3154 = vmatmul.mubr.bf16.gmra.mxu0 %v427
    %v3155 = vpop.f32.mrf.mxu0
    %v3156 = vadd.f32 0.0, %v3155
    %v3157 = vpop.f32.mrf.mxu0
    %v3158 = vpop.f32.mrf.mxu0
    %v3159 = vadd.f32 0.0, %v3158
    %v3160 = vpop.f32.mrf.mxu0
    %3161 = vmatprep.mubr.bf16.mxu0 %v430
    %3162 = vmatmul.mubr.bf16.gmra.mxu0 %v429
    %v3163 = vpop.f32.mrf.mxu0
    %v3164 = vadd.f32 0.0, %v3163
    %v3165 = vpop.f32.mrf.mxu0
    %v3166 = vpop.f32.mrf.mxu0
    %v3167 = vadd.f32 0.0, %v3166
    %v3168 = vpop.f32.mrf.mxu0
    %3169 = vmatprep.mubr.bf16.mxu0 %v432
    %3170 = vmatmul.mubr.bf16.gmra.mxu0 %v431
    %v3171 = vpop.f32.mrf.mxu0
    %v3172 = vadd.f32 0.0, %v3171
    %v3173 = vpop.f32.mrf.mxu0
    %v3174 = vpop.f32.mrf.mxu0
    %v3175 = vadd.f32 0.0, %v3174
    %v3176 = vpop.f32.mrf.mxu0
    %3177 = vdwg.mxu0
    %v3178 = vpack.c.bf16 %v3055, %v3052
    %v3179 = vpack.c.bf16 %v3063, %v3060
    %v3180 = vpack.c.bf16 %v3071, %v3068
    %v3181 = vpack.c.bf16 %v3079, %v3076
    %v3182 = vpack.c.bf16 %v3087, %v3084
    %v3183 = vpack.c.bf16 %v3095, %v3092
    %v3184 = vpack.c.bf16 %v3103, %v3100
    %v3185 = vpack.c.bf16 %v3111, %v3108
    %v3186 = vpack.c.bf16 %v3119, %v3116
    %v3187 = vpack.c.bf16 %v3127, %v3124
    %v3188 = vpack.c.bf16 %v3135, %v3132
    %v3189 = vpack.c.bf16 %v3143, %v3140
    %v3190 = vpack.c.bf16 %v3151, %v3148
    %v3191 = vpack.c.bf16 %v3159, %v3156
    %v3192 = vpack.c.bf16 %v3167, %v3164
    %v3193 = vpack.c.bf16 %v3175, %v3172
    %v3195 = vlaneseq
    %v3196 = vshrl.u32 %v3195, 7
    %v3197 = vsub.s32 0, %v3196
    %v3198 = vrot.slane %v2993, %v3197
    %v3216 = vunpack.c.l.b16 %v2976
    %v3217 = vunpack.c.l.b16 %v2977
    %v3218 = vunpack.c.l.b16 %v2978
    %v3219 = vunpack.c.l.b16 %v2979
    %v3220 = vunpack.c.l.b16 %v2980
    %v3221 = vunpack.c.l.b16 %v2981
    %v3222 = vunpack.c.l.b16 %v2982
    %v3223 = vunpack.c.l.b16 %v2983
    %v3224 = vunpack.c.l.b16 %v2984
    %v3225 = vunpack.c.l.b16 %v2985
    %v3226 = vunpack.c.l.b16 %v2986
    %v3227 = vunpack.c.l.b16 %v2987
    %v3228 = vunpack.c.l.b16 %v2988
    %v3229 = vunpack.c.l.b16 %v2989
    %v3230 = vunpack.c.l.b16 %v2990
    %v3231 = vunpack.c.l.b16 %v2991
    %v3232 = vpack.c.b16 %v3217, %v3216
    %v3233 = vpack.c.b16 %v3219, %v3218
    %v3234 = vpack.c.b16 %v3221, %v3220
    %v3235 = vpack.c.b16 %v3223, %v3222
    %v3236 = vpack.c.b16 %v3225, %v3224
    %v3237 = vpack.c.b16 %v3227, %v3226
    %v3238 = vpack.c.b16 %v3229, %v3228
    %v3239 = vpack.c.b16 %v3231, %v3230
    %3248 = vmatprep.subr.bf16.mxu0 0
    %3249 = vmatpush1.bf16.msra.mxu0 %v3239
    %3250 = vmatprep.subr.bf16.mxu0 0
    %3251 = vmatpush1.bf16.msra.mxu0 %v3238
    %3252 = vmatprep.subr.bf16.mxu0 0
    %3253 = vmatpush1.bf16.msra.mxu0 %v3237
    %3254 = vmatprep.subr.bf16.mxu0 0
    %3255 = vmatpush1.bf16.msra.mxu0 %v3236
    %3256 = vmatprep.subr.bf16.mxu0 0
    %3257 = vmatpush1.bf16.msra.mxu0 %v3235
    %3258 = vmatprep.subr.bf16.mxu0 0
    %3259 = vmatpush1.bf16.msra.mxu0 %v3234
    %3260 = vmatprep.subr.bf16.mxu0 0
    %3261 = vmatpush1.bf16.msra.mxu0 %v3233
    %3262 = vmatprep.subr.bf16.mxu0 0
    %3263 = vmatpush1.bf16.msra.mxu0 %v3232
    %3264 = vmatprep.subr.bf16.mxu0 0
    %3265 = vmatpush2.bf16.msra.mxu0 0
    %3266 = vmatprep.subr.bf16.mxu0 0
    %3267 = vmatpush2.bf16.msra.mxu0 0
    %3268 = vmatprep.subr.bf16.mxu0 0
    %3269 = vmatpush2.bf16.msra.mxu0 0
    %3270 = vmatprep.subr.bf16.mxu0 0
    %3271 = vmatpush2.bf16.msra.mxu0 0
    %3272 = vmatprep.subr.bf16.mxu0 0
    %3273 = vmatpush2.bf16.msra.mxu0 0
    %3274 = vmatprep.subr.bf16.mxu0 0
    %3275 = vmatpush2.bf16.msra.mxu0 0
    %3276 = vmatprep.subr.bf16.mxu0 0
    %3277 = vmatpush2.bf16.msra.mxu0 0
    %3278 = vmatprep.subr.bf16.mxu0 0
    %3279 = vmatpush2.bf16.msra.mxu0 0
    %3280 = vmatprep.mubr.bf16.mxu0 0
    %3281 = vmatmul.mubr.bf16.gmra.mxu0 %v3178
    %v3282 = vpop.f32.mrf.mxu0
    %v3283 = vadd.f32 %v3198, %v3282
    %v3284 = vpop.f32.mrf.mxu0
    %v3285 = vpop.f32.mrf.mxu0
    %v3286 = vadd.f32 %v3198, %v3285
    %v3287 = vpop.f32.mrf.mxu0
    %3288 = vmatprep.mubr.bf16.mxu0 0
    %3289 = vmatmul.mubr.bf16.gmra.mxu0 %v3179
    %v3290 = vpop.f32.mrf.mxu0
    %v3291 = vadd.f32 %v3198, %v3290
    %v3292 = vpop.f32.mrf.mxu0
    %v3293 = vpop.f32.mrf.mxu0
    %v3294 = vadd.f32 %v3198, %v3293
    %v3295 = vpop.f32.mrf.mxu0
    %3296 = vmatprep.mubr.bf16.mxu0 0
    %3297 = vmatmul.mubr.bf16.gmra.mxu0 %v3180
    %v3298 = vpop.f32.mrf.mxu0
    %v3299 = vadd.f32 %v3198, %v3298
    %v3300 = vpop.f32.mrf.mxu0
    %v3301 = vpop.f32.mrf.mxu0
    %v3302 = vadd.f32 %v3198, %v3301
    %v3303 = vpop.f32.mrf.mxu0
    %3304 = vmatprep.mubr.bf16.mxu0 0
    %3305 = vmatmul.mubr.bf16.gmra.mxu0 %v3181
    %v3306 = vpop.f32.mrf.mxu0
    %v3307 = vadd.f32 %v3198, %v3306
    %v3308 = vpop.f32.mrf.mxu0
    %v3309 = vpop.f32.mrf.mxu0
    %v3310 = vadd.f32 %v3198, %v3309
    %v3311 = vpop.f32.mrf.mxu0
    %3312 = vmatprep.mubr.bf16.mxu0 0
    %3313 = vmatmul.mubr.bf16.gmra.mxu0 %v3182
    %v3314 = vpop.f32.mrf.mxu0
    %v3315 = vadd.f32 %v3198, %v3314
    %v3316 = vpop.f32.mrf.mxu0
    %v3317 = vpop.f32.mrf.mxu0
    %v3318 = vadd.f32 %v3198, %v3317
    %v3319 = vpop.f32.mrf.mxu0
    %3320 = vmatprep.mubr.bf16.mxu0 0
    %3321 = vmatmul.mubr.bf16.gmra.mxu0 %v3183
    %v3322 = vpop.f32.mrf.mxu0
    %v3323 = vadd.f32 %v3198, %v3322
    %v3324 = vpop.f32.mrf.mxu0
    %v3325 = vpop.f32.mrf.mxu0
    %v3326 = vadd.f32 %v3198, %v3325
    %v3327 = vpop.f32.mrf.mxu0
    %3328 = vmatprep.mubr.bf16.mxu0 0
    %3329 = vmatmul.mubr.bf16.gmra.mxu0 %v3184
    %v3330 = vpop.f32.mrf.mxu0
    %v3331 = vadd.f32 %v3198, %v3330
    %v3332 = vpop.f32.mrf.mxu0
    %v3333 = vpop.f32.mrf.mxu0
    %v3334 = vadd.f32 %v3198, %v3333
    %v3335 = vpop.f32.mrf.mxu0
    %3336 = vmatprep.mubr.bf16.mxu0 0
    %3337 = vmatmul.mubr.bf16.gmra.mxu0 %v3185
    %v3338 = vpop.f32.mrf.mxu0
    %v3339 = vadd.f32 %v3198, %v3338
    %v3340 = vpop.f32.mrf.mxu0
    %v3341 = vpop.f32.mrf.mxu0
    %v3342 = vadd.f32 %v3198, %v3341
    %v3343 = vpop.f32.mrf.mxu0
    %3344 = vmatprep.mubr.bf16.mxu0 0
    %3345 = vmatmul.mubr.bf16.gmra.mxu0 %v3186
    %v3346 = vpop.f32.mrf.mxu0
    %v3347 = vadd.f32 %v3198, %v3346
    %v3348 = vpop.f32.mrf.mxu0
    %v3349 = vpop.f32.mrf.mxu0
    %v3350 = vadd.f32 %v3198, %v3349
    %v3351 = vpop.f32.mrf.mxu0
    %3352 = vmatprep.mubr.bf16.mxu0 0
    %3353 = vmatmul.mubr.bf16.gmra.mxu0 %v3187
    %v3354 = vpop.f32.mrf.mxu0
    %v3355 = vadd.f32 %v3198, %v3354
    %v3356 = vpop.f32.mrf.mxu0
    %v3357 = vpop.f32.mrf.mxu0
    %v3358 = vadd.f32 %v3198, %v3357
    %v3359 = vpop.f32.mrf.mxu0
    %3360 = vmatprep.mubr.bf16.mxu0 0
    %3361 = vmatmul.mubr.bf16.gmra.mxu0 %v3188
    %v3362 = vpop.f32.mrf.mxu0
    %v3363 = vadd.f32 %v3198, %v3362
    %v3364 = vpop.f32.mrf.mxu0
    %v3365 = vpop.f32.mrf.mxu0
    %v3366 = vadd.f32 %v3198, %v3365
    %v3367 = vpop.f32.mrf.mxu0
    %3368 = vmatprep.mubr.bf16.mxu0 0
    %3369 = vmatmul.mubr.bf16.gmra.mxu0 %v3189
    %v3370 = vpop.f32.mrf.mxu0
    %v3371 = vadd.f32 %v3198, %v3370
    %v3372 = vpop.f32.mrf.mxu0
    %v3373 = vpop.f32.mrf.mxu0
    %v3374 = vadd.f32 %v3198, %v3373
    %v3375 = vpop.f32.mrf.mxu0
    %3376 = vmatprep.mubr.bf16.mxu0 0
    %3377 = vmatmul.mubr.bf16.gmra.mxu0 %v3190
    %v3378 = vpop.f32.mrf.mxu0
    %v3379 = vadd.f32 %v3198, %v3378
    %v3380 = vpop.f32.mrf.mxu0
    %v3381 = vpop.f32.mrf.mxu0
    %v3382 = vadd.f32 %v3198, %v3381
    %v3383 = vpop.f32.mrf.mxu0
    %3384 = vmatprep.mubr.bf16.mxu0 0
    %3385 = vmatmul.mubr.bf16.gmra.mxu0 %v3191
    %v3386 = vpop.f32.mrf.mxu0
    %v3387 = vadd.f32 %v3198, %v3386
    %v3388 = vpop.f32.mrf.mxu0
    %v3389 = vpop.f32.mrf.mxu0
    %v3390 = vadd.f32 %v3198, %v3389
    %v3391 = vpop.f32.mrf.mxu0
    %3392 = vmatprep.mubr.bf16.mxu0 0
    %3393 = vmatmul.mubr.bf16.gmra.mxu0 %v3192
    %v3394 = vpop.f32.mrf.mxu0
    %v3395 = vadd.f32 %v3198, %v3394
    %v3396 = vpop.f32.mrf.mxu0
    %v3397 = vpop.f32.mrf.mxu0
    %v3398 = vadd.f32 %v3198, %v3397
    %v3399 = vpop.f32.mrf.mxu0
    %3400 = vmatprep.mubr.bf16.mxu0 0
    %3401 = vmatmul.mubr.bf16.gmra.mxu0 %v3193
    %v3402 = vpop.f32.mrf.mxu0
    %v3403 = vadd.f32 %v3198, %v3402
    %v3404 = vpop.f32.mrf.mxu0
    %v3405 = vpop.f32.mrf.mxu0
    %v3406 = vadd.f32 %v3198, %v3405
    %v3407 = vpop.f32.mrf.mxu0
    %3408 = vdwg.mxu0
    %v3409 = vmax.f32 %v3283, 0.0
    %v3410 = vmax.f32 %v3286, 0.0
    %v3411 = vmax.f32 %v3291, 0.0
    %v3412 = vmax.f32 %v3294, 0.0
    %v3413 = vmax.f32 %v3299, 0.0
    %v3414 = vmax.f32 %v3302, 0.0
    %v3415 = vmax.f32 %v3307, 0.0
    %v3416 = vmax.f32 %v3310, 0.0
    %v3417 = vmax.f32 %v3315, 0.0
    %v3418 = vmax.f32 %v3318, 0.0
    %v3419 = vmax.f32 %v3323, 0.0
    %v3420 = vmax.f32 %v3326, 0.0
    %v3421 = vmax.f32 %v3331, 0.0
    %v3422 = vmax.f32 %v3334, 0.0
    %v3423 = vmax.f32 %v3339, 0.0
    %v3424 = vmax.f32 %v3342, 0.0
    %v3425 = vmax.f32 %v3347, 0.0
    %v3426 = vmax.f32 %v3350, 0.0
    %v3427 = vmax.f32 %v3355, 0.0
    %v3428 = vmax.f32 %v3358, 0.0
    %v3429 = vmax.f32 %v3363, 0.0
    %v3430 = vmax.f32 %v3366, 0.0
    %v3431 = vmax.f32 %v3371, 0.0
    %v3432 = vmax.f32 %v3374, 0.0
    %v3433 = vmax.f32 %v3379, 0.0
    %v3434 = vmax.f32 %v3382, 0.0
    %v3435 = vmax.f32 %v3387, 0.0
    %v3436 = vmax.f32 %v3390, 0.0
    %v3437 = vmax.f32 %v3395, 0.0
    %v3438 = vmax.f32 %v3398, 0.0
    %v3439 = vmax.f32 %v3403, 0.0
    %v3440 = vmax.f32 %v3406, 0.0
    %v3441 = vpack.c.bf16 %v3410, %v3409
    %v3442 = vpack.c.bf16 %v3412, %v3411
    %v3443 = vpack.c.bf16 %v3414, %v3413
    %v3444 = vpack.c.bf16 %v3416, %v3415
    %v3445 = vpack.c.bf16 %v3418, %v3417
    %v3446 = vpack.c.bf16 %v3420, %v3419
    %v3447 = vpack.c.bf16 %v3422, %v3421
    %v3448 = vpack.c.bf16 %v3424, %v3423
    %v3449 = vpack.c.bf16 %v3426, %v3425
    %v3450 = vpack.c.bf16 %v3428, %v3427
    %v3451 = vpack.c.bf16 %v3430, %v3429
    %v3452 = vpack.c.bf16 %v3432, %v3431
    %v3453 = vpack.c.bf16 %v3434, %v3433
    %v3454 = vpack.c.bf16 %v3436, %v3435
    %v3455 = vpack.c.bf16 %v3438, %v3437
    %v3456 = vpack.c.bf16 %v3440, %v3439
    %v3458 = vlaneseq
    %v3459 = vshrl.u32 %v3458, 7
    %v3460 = vsub.s32 0, %v3459
    %v3461 = vrot.slane %v3012, %v3460
    %v3479 = vunpack.c.l.b16 %v2995
    %v3480 = vunpack.c.l.b16 %v2996
    %v3481 = vunpack.c.l.b16 %v2997
    %v3482 = vunpack.c.l.b16 %v2998
    %v3483 = vunpack.c.l.b16 %v2999
    %v3484 = vunpack.c.l.b16 %v3000
    %v3485 = vunpack.c.l.b16 %v3001
    %v3486 = vunpack.c.l.b16 %v3002
    %v3487 = vunpack.c.l.b16 %v3003
    %v3488 = vunpack.c.l.b16 %v3004
    %v3489 = vunpack.c.l.b16 %v3005
    %v3490 = vunpack.c.l.b16 %v3006
    %v3491 = vunpack.c.l.b16 %v3007
    %v3492 = vunpack.c.l.b16 %v3008
    %v3493 = vunpack.c.l.b16 %v3009
    %v3494 = vunpack.c.l.b16 %v3010
    %v3495 = vpack.c.b16 %v3480, %v3479
    %v3496 = vpack.c.b16 %v3482, %v3481
    %v3497 = vpack.c.b16 %v3484, %v3483
    %v3498 = vpack.c.b16 %v3486, %v3485
    %v3499 = vpack.c.b16 %v3488, %v3487
    %v3500 = vpack.c.b16 %v3490, %v3489
    %v3501 = vpack.c.b16 %v3492, %v3491
    %v3502 = vpack.c.b16 %v3494, %v3493
    %3511 = vmatprep.subr.bf16.mxu0 0
    %3512 = vmatpush1.bf16.msra.mxu0 %v3502
    %3513 = vmatprep.subr.bf16.mxu0 0
    %3514 = vmatpush1.bf16.msra.mxu0 %v3501
    %3515 = vmatprep.subr.bf16.mxu0 0
    %3516 = vmatpush1.bf16.msra.mxu0 %v3500
    %3517 = vmatprep.subr.bf16.mxu0 0
    %3518 = vmatpush1.bf16.msra.mxu0 %v3499
    %3519 = vmatprep.subr.bf16.mxu0 0
    %3520 = vmatpush1.bf16.msra.mxu0 %v3498
    %3521 = vmatprep.subr.bf16.mxu0 0
    %3522 = vmatpush1.bf16.msra.mxu0 %v3497
    %3523 = vmatprep.subr.bf16.mxu0 0
    %3524 = vmatpush1.bf16.msra.mxu0 %v3496
    %3525 = vmatprep.subr.bf16.mxu0 0
    %3526 = vmatpush1.bf16.msra.mxu0 %v3495
    %3527 = vmatprep.subr.bf16.mxu0 0
    %3528 = vmatpush2.bf16.msra.mxu0 0
    %3529 = vmatprep.subr.bf16.mxu0 0
    %3530 = vmatpush2.bf16.msra.mxu0 0
    %3531 = vmatprep.subr.bf16.mxu0 0
    %3532 = vmatpush2.bf16.msra.mxu0 0
    %3533 = vmatprep.subr.bf16.mxu0 0
    %3534 = vmatpush2.bf16.msra.mxu0 0
    %3535 = vmatprep.subr.bf16.mxu0 0
    %3536 = vmatpush2.bf16.msra.mxu0 0
    %3537 = vmatprep.subr.bf16.mxu0 0
    %3538 = vmatpush2.bf16.msra.mxu0 0
    %3539 = vmatprep.subr.bf16.mxu0 0
    %3540 = vmatpush2.bf16.msra.mxu0 0
    %3541 = vmatprep.subr.bf16.mxu0 0
    %3542 = vmatpush2.bf16.msra.mxu0 0
    %3543 = vmatprep.mubr.bf16.mxu0 0
    %3544 = vmatmul.mubr.bf16.gmra.mxu0 %v3441
    %v3545 = vpop.f32.mrf.mxu0
    %v3546 = vadd.f32 %v3461, %v3545
    %v3547 = vpop.f32.mrf.mxu0
    %v3548 = vpop.f32.mrf.mxu0
    %v3549 = vadd.f32 %v3461, %v3548
    %v3550 = vpop.f32.mrf.mxu0
    %3551 = vmatprep.mubr.bf16.mxu0 0
    %3552 = vmatmul.mubr.bf16.gmra.mxu0 %v3442
    %v3553 = vpop.f32.mrf.mxu0
    %v3554 = vadd.f32 %v3461, %v3553
    %v3555 = vpop.f32.mrf.mxu0
    %v3556 = vpop.f32.mrf.mxu0
    %v3557 = vadd.f32 %v3461, %v3556
    %v3558 = vpop.f32.mrf.mxu0
    %3559 = vmatprep.mubr.bf16.mxu0 0
    %3560 = vmatmul.mubr.bf16.gmra.mxu0 %v3443
    %v3561 = vpop.f32.mrf.mxu0
    %v3562 = vadd.f32 %v3461, %v3561
    %v3563 = vpop.f32.mrf.mxu0
    %v3564 = vpop.f32.mrf.mxu0
    %v3565 = vadd.f32 %v3461, %v3564
    %v3566 = vpop.f32.mrf.mxu0
    %3567 = vmatprep.mubr.bf16.mxu0 0
    %3568 = vmatmul.mubr.bf16.gmra.mxu0 %v3444
    %v3569 = vpop.f32.mrf.mxu0
    %v3570 = vadd.f32 %v3461, %v3569
    %v3571 = vpop.f32.mrf.mxu0
    %v3572 = vpop.f32.mrf.mxu0
    %v3573 = vadd.f32 %v3461, %v3572
    %v3574 = vpop.f32.mrf.mxu0
    %3575 = vmatprep.mubr.bf16.mxu0 0
    %3576 = vmatmul.mubr.bf16.gmra.mxu0 %v3445
    %v3577 = vpop.f32.mrf.mxu0
    %v3578 = vadd.f32 %v3461, %v3577
    %v3579 = vpop.f32.mrf.mxu0
    %v3580 = vpop.f32.mrf.mxu0
    %v3581 = vadd.f32 %v3461, %v3580
    %v3582 = vpop.f32.mrf.mxu0
    %3583 = vmatprep.mubr.bf16.mxu0 0
    %3584 = vmatmul.mubr.bf16.gmra.mxu0 %v3446
    %v3585 = vpop.f32.mrf.mxu0
    %v3586 = vadd.f32 %v3461, %v3585
    %v3587 = vpop.f32.mrf.mxu0
    %v3588 = vpop.f32.mrf.mxu0
    %v3589 = vadd.f32 %v3461, %v3588
    %v3590 = vpop.f32.mrf.mxu0
    %3591 = vmatprep.mubr.bf16.mxu0 0
    %3592 = vmatmul.mubr.bf16.gmra.mxu0 %v3447
    %v3593 = vpop.f32.mrf.mxu0
    %v3594 = vadd.f32 %v3461, %v3593
    %v3595 = vpop.f32.mrf.mxu0
    %v3596 = vpop.f32.mrf.mxu0
    %v3597 = vadd.f32 %v3461, %v3596
    %v3598 = vpop.f32.mrf.mxu0
    %3599 = vmatprep.mubr.bf16.mxu0 0
    %3600 = vmatmul.mubr.bf16.gmra.mxu0 %v3448
    %v3601 = vpop.f32.mrf.mxu0
    %v3602 = vadd.f32 %v3461, %v3601
    %v3603 = vpop.f32.mrf.mxu0
    %v3604 = vpop.f32.mrf.mxu0
    %v3605 = vadd.f32 %v3461, %v3604
    %v3606 = vpop.f32.mrf.mxu0
    %3607 = vmatprep.mubr.bf16.mxu0 0
    %3608 = vmatmul.mubr.bf16.gmra.mxu0 %v3449
    %v3609 = vpop.f32.mrf.mxu0
    %v3610 = vadd.f32 %v3461, %v3609
    %v3611 = vpop.f32.mrf.mxu0
    %v3612 = vpop.f32.mrf.mxu0
    %v3613 = vadd.f32 %v3461, %v3612
    %v3614 = vpop.f32.mrf.mxu0
    %3615 = vmatprep.mubr.bf16.mxu0 0
    %3616 = vmatmul.mubr.bf16.gmra.mxu0 %v3450
    %v3617 = vpop.f32.mrf.mxu0
    %v3618 = vadd.f32 %v3461, %v3617
    %v3619 = vpop.f32.mrf.mxu0
    %v3620 = vpop.f32.mrf.mxu0
    %v3621 = vadd.f32 %v3461, %v3620
    %v3622 = vpop.f32.mrf.mxu0
    %3623 = vmatprep.mubr.bf16.mxu0 0
    %3624 = vmatmul.mubr.bf16.gmra.mxu0 %v3451
    %v3625 = vpop.f32.mrf.mxu0
    %v3626 = vadd.f32 %v3461, %v3625
    %v3627 = vpop.f32.mrf.mxu0
    %v3628 = vpop.f32.mrf.mxu0
    %v3629 = vadd.f32 %v3461, %v3628
    %v3630 = vpop.f32.mrf.mxu0
    %3631 = vmatprep.mubr.bf16.mxu0 0
    %3632 = vmatmul.mubr.bf16.gmra.mxu0 %v3452
    %v3633 = vpop.f32.mrf.mxu0
    %v3634 = vadd.f32 %v3461, %v3633
    %v3635 = vpop.f32.mrf.mxu0
    %v3636 = vpop.f32.mrf.mxu0
    %v3637 = vadd.f32 %v3461, %v3636
    %v3638 = vpop.f32.mrf.mxu0
    %3639 = vmatprep.mubr.bf16.mxu0 0
    %3640 = vmatmul.mubr.bf16.gmra.mxu0 %v3453
    %v3641 = vpop.f32.mrf.mxu0
    %v3642 = vadd.f32 %v3461, %v3641
    %v3643 = vpop.f32.mrf.mxu0
    %v3644 = vpop.f32.mrf.mxu0
    %v3645 = vadd.f32 %v3461, %v3644
    %v3646 = vpop.f32.mrf.mxu0
    %3647 = vmatprep.mubr.bf16.mxu0 0
    %3648 = vmatmul.mubr.bf16.gmra.mxu0 %v3454
    %v3649 = vpop.f32.mrf.mxu0
    %v3650 = vadd.f32 %v3461, %v3649
    %v3651 = vpop.f32.mrf.mxu0
    %v3652 = vpop.f32.mrf.mxu0
    %v3653 = vadd.f32 %v3461, %v3652
    %v3654 = vpop.f32.mrf.mxu0
    %3655 = vmatprep.mubr.bf16.mxu0 0
    %3656 = vmatmul.mubr.bf16.gmra.mxu0 %v3455
    %v3657 = vpop.f32.mrf.mxu0
    %v3658 = vadd.f32 %v3461, %v3657
    %v3659 = vpop.f32.mrf.mxu0
    %v3660 = vpop.f32.mrf.mxu0
    %v3661 = vadd.f32 %v3461, %v3660
    %v3662 = vpop.f32.mrf.mxu0
    %3663 = vmatprep.mubr.bf16.mxu0 0
    %3664 = vmatmul.mubr.bf16.gmra.mxu0 %v3456
    %v3665 = vpop.f32.mrf.mxu0
    %v3666 = vadd.f32 %v3461, %v3665
    %v3667 = vpop.f32.mrf.mxu0
    %v3668 = vpop.f32.mrf.mxu0
    %v3669 = vadd.f32 %v3461, %v3668
    %v3670 = vpop.f32.mrf.mxu0
    %3671 = vdwg.mxu0
    %v3672 = vmax.f32 %v3546, 0.0
    %v3673 = vmax.f32 %v3549, 0.0
    %v3674 = vmax.f32 %v3554, 0.0
    %v3675 = vmax.f32 %v3557, 0.0
    %v3676 = vmax.f32 %v3562, 0.0
    %v3677 = vmax.f32 %v3565, 0.0
    %v3678 = vmax.f32 %v3570, 0.0
    %v3679 = vmax.f32 %v3573, 0.0
    %v3680 = vmax.f32 %v3578, 0.0
    %v3681 = vmax.f32 %v3581, 0.0
    %v3682 = vmax.f32 %v3586, 0.0
    %v3683 = vmax.f32 %v3589, 0.0
    %v3684 = vmax.f32 %v3594, 0.0
    %v3685 = vmax.f32 %v3597, 0.0
    %v3686 = vmax.f32 %v3602, 0.0
    %v3687 = vmax.f32 %v3605, 0.0
    %v3688 = vmax.f32 %v3610, 0.0
    %v3689 = vmax.f32 %v3613, 0.0
    %v3690 = vmax.f32 %v3618, 0.0
    %v3691 = vmax.f32 %v3621, 0.0
    %v3692 = vmax.f32 %v3626, 0.0
    %v3693 = vmax.f32 %v3629, 0.0
    %v3694 = vmax.f32 %v3634, 0.0
    %v3695 = vmax.f32 %v3637, 0.0
    %v3696 = vmax.f32 %v3642, 0.0
    %v3697 = vmax.f32 %v3645, 0.0
    %v3698 = vmax.f32 %v3650, 0.0
    %v3699 = vmax.f32 %v3653, 0.0
    %v3700 = vmax.f32 %v3658, 0.0
    %v3701 = vmax.f32 %v3661, 0.0
    %v3702 = vmax.f32 %v3666, 0.0
    %v3703 = vmax.f32 %v3669, 0.0
    %v3704 = vmul.f32 %v3672, %v1155
    %v3705 = vmul.f32 %v3673, %v1160
    %v3706 = vmul.f32 %v3674, %v1165
    %v3707 = vmul.f32 %v3675, %v1170
    %v3708 = vmul.f32 %v3676, %v1175
    %v3709 = vmul.f32 %v3677, %v1180
    %v3710 = vmul.f32 %v3678, %v1185
    %v3711 = vmul.f32 %v3679, %v1190
    %v3712 = vmul.f32 %v3680, %v1195
    %v3713 = vmul.f32 %v3681, %v1200
    %v3714 = vmul.f32 %v3682, %v1205
    %v3715 = vmul.f32 %v3683, %v1210
    %v3716 = vmul.f32 %v3684, %v1215
    %v3717 = vmul.f32 %v3685, %v1220
    %v3718 = vmul.f32 %v3686, %v1225
    %v3719 = vmul.f32 %v3687, %v1230
    %v3720 = vmul.f32 %v3688, %v1235
    %v3721 = vmul.f32 %v3689, %v1240
    %v3722 = vmul.f32 %v3690, %v1245
    %v3723 = vmul.f32 %v3691, %v1250
    %v3724 = vmul.f32 %v3692, %v1255
    %v3725 = vmul.f32 %v3693, %v1260
    %v3726 = vmul.f32 %v3694, %v1265
    %v3727 = vmul.f32 %v3695, %v1270
    %v3728 = vmul.f32 %v3696, %v1275
    %v3729 = vmul.f32 %v3697, %v1280
    %v3730 = vmul.f32 %v3698, %v1285
    %v3731 = vmul.f32 %v3699, %v1290
    %v3732 = vmul.f32 %v3700, %v1295
    %v3733 = vmul.f32 %v3701, %v1300
    %v3734 = vmul.f32 %v3702, %v1305
    %v3735 = vmul.f32 %v3703, %v1310
    %v3736 = vadd.f32 %v3704, %v3705
    %v3737 = vadd.f32 %v3736, %v3706
    %v3738 = vadd.f32 %v3737, %v3707
    %v3739 = vadd.f32 %v3738, %v3708
    %v3740 = vadd.f32 %v3739, %v3709
    %v3741 = vadd.f32 %v3740, %v3710
    %v3742 = vadd.f32 %v3741, %v3711
    %v3743 = vadd.f32 %v3742, %v3712
    %v3744 = vadd.f32 %v3743, %v3713
    %v3745 = vadd.f32 %v3744, %v3714
    %v3746 = vadd.f32 %v3745, %v3715
    %v3747 = vadd.f32 %v3746, %v3716
    %v3748 = vadd.f32 %v3747, %v3717
    %v3749 = vadd.f32 %v3748, %v3718
    %v3750 = vadd.f32 %v3749, %v3719
    %v3751 = vadd.f32 %v3750, %v3720
    %v3752 = vadd.f32 %v3751, %v3721
    %v3753 = vadd.f32 %v3752, %v3722
    %v3754 = vadd.f32 %v3753, %v3723
    %v3755 = vadd.f32 %v3754, %v3724
    %v3756 = vadd.f32 %v3755, %v3725
    %v3757 = vadd.f32 %v3756, %v3726
    %v3758 = vadd.f32 %v3757, %v3727
    %v3759 = vadd.f32 %v3758, %v3728
    %v3760 = vadd.f32 %v3759, %v3729
    %v3761 = vadd.f32 %v3760, %v3730
    %v3762 = vadd.f32 %v3761, %v3731
    %v3763 = vadd.f32 %v3762, %v3732
    %v3764 = vadd.f32 %v3763, %v3733
    %v3765 = vadd.f32 %v3764, %v3734
    %v3766 = vadd.f32 %v3765, %v3735
    %v3767 = vrot.slane %v3766, 4
    %v3768 = vadd.f32 %v3766, %v3767
    %v3769 = vrot.slane %v3768, 2
    %v3770 = vadd.f32 %v3768, %v3769
    %v3771 = vrot.slane %v3770, 1
    %v3772 = vadd.f32 %v3770, %v3771
    %v3773 = vmul.f32 %v3704, %v3704
    %v3774 = vmul.f32 %v3705, %v3705
    %v3775 = vmul.f32 %v3706, %v3706
    %v3776 = vmul.f32 %v3707, %v3707
    %v3777 = vmul.f32 %v3708, %v3708
    %v3778 = vmul.f32 %v3709, %v3709
    %v3779 = vmul.f32 %v3710, %v3710
    %v3780 = vmul.f32 %v3711, %v3711
    %v3781 = vmul.f32 %v3712, %v3712
    %v3782 = vmul.f32 %v3713, %v3713
    %v3783 = vmul.f32 %v3714, %v3714
    %v3784 = vmul.f32 %v3715, %v3715
    %v3785 = vmul.f32 %v3716, %v3716
    %v3786 = vmul.f32 %v3717, %v3717
    %v3787 = vmul.f32 %v3718, %v3718
    %v3788 = vmul.f32 %v3719, %v3719
    %v3789 = vmul.f32 %v3720, %v3720
    %v3790 = vmul.f32 %v3721, %v3721
    %v3791 = vmul.f32 %v3722, %v3722
    %v3792 = vmul.f32 %v3723, %v3723
    %v3793 = vmul.f32 %v3724, %v3724
    %v3794 = vmul.f32 %v3725, %v3725
    %v3795 = vmul.f32 %v3726, %v3726
    %v3796 = vmul.f32 %v3727, %v3727
    %v3797 = vmul.f32 %v3728, %v3728
    %v3798 = vmul.f32 %v3729, %v3729
    %v3799 = vmul.f32 %v3730, %v3730
    %v3800 = vmul.f32 %v3731, %v3731
    %v3801 = vmul.f32 %v3732, %v3732
    %v3802 = vmul.f32 %v3733, %v3733
    %v3803 = vmul.f32 %v3734, %v3734
    %v3804 = vmul.f32 %v3735, %v3735
    %v3805 = vadd.f32 %v3773, %v3774
    %v3806 = vadd.f32 %v3805, %v3775
    %v3807 = vadd.f32 %v3806, %v3776
    %v3808 = vadd.f32 %v3807, %v3777
    %v3809 = vadd.f32 %v3808, %v3778
    %v3810 = vadd.f32 %v3809, %v3779
    %v3811 = vadd.f32 %v3810, %v3780
    %v3812 = vadd.f32 %v3811, %v3781
    %v3813 = vadd.f32 %v3812, %v3782
    %v3814 = vadd.f32 %v3813, %v3783
    %v3815 = vadd.f32 %v3814, %v3784
    %v3816 = vadd.f32 %v3815, %v3785
    %v3817 = vadd.f32 %v3816, %v3786
    %v3818 = vadd.f32 %v3817, %v3787
    %v3819 = vadd.f32 %v3818, %v3788
    %v3820 = vadd.f32 %v3819, %v3789
    %v3821 = vadd.f32 %v3820, %v3790
    %v3822 = vadd.f32 %v3821, %v3791
    %v3823 = vadd.f32 %v3822, %v3792
    %v3824 = vadd.f32 %v3823, %v3793
    %v3825 = vadd.f32 %v3824, %v3794
    %v3826 = vadd.f32 %v3825, %v3795
    %v3827 = vadd.f32 %v3826, %v3796
    %v3828 = vadd.f32 %v3827, %v3797
    %v3829 = vadd.f32 %v3828, %v3798
    %v3830 = vadd.f32 %v3829, %v3799
    %v3831 = vadd.f32 %v3830, %v3800
    %v3832 = vadd.f32 %v3831, %v3801
    %v3833 = vadd.f32 %v3832, %v3802
    %v3834 = vadd.f32 %v3833, %v3803
    %v3835 = vadd.f32 %v3834, %v3804
    %v3836 = vrot.slane %v3835, 4
    %v3837 = vadd.f32 %v3835, %v3836
    %v3838 = vrot.slane %v3837, 2
    %v3839 = vadd.f32 %v3837, %v3838
    %v3840 = vrot.slane %v3839, 1
    %v3841 = vadd.f32 %v3839, %v3840
    %v3842 = vmul.f32 %v3772, %v1450
    %v3843 = vmul.f32 %v3841, %v1450
    %v3844 = vmul.f32 %v3842, %v3842
    %v3845 = vsub.f32 %v3843, %v3844
    %v3846 = vmax.f32 %v3845, 0.0
    %v3847 = vsub.f32 %v3704, %v3842
    %v3848 = vsub.f32 %v3705, %v3842
    %v3849 = vsub.f32 %v3706, %v3842
    %v3850 = vsub.f32 %v3707, %v3842
    %v3851 = vsub.f32 %v3708, %v3842
    %v3852 = vsub.f32 %v3709, %v3842
    %v3853 = vsub.f32 %v3710, %v3842
    %v3854 = vsub.f32 %v3711, %v3842
    %v3855 = vsub.f32 %v3712, %v3842
    %v3856 = vsub.f32 %v3713, %v3842
    %v3857 = vsub.f32 %v3714, %v3842
    %v3858 = vsub.f32 %v3715, %v3842
    %v3859 = vsub.f32 %v3716, %v3842
    %v3860 = vsub.f32 %v3717, %v3842
    %v3861 = vsub.f32 %v3718, %v3842
    %v3862 = vsub.f32 %v3719, %v3842
    %v3863 = vsub.f32 %v3720, %v3842
    %v3864 = vsub.f32 %v3721, %v3842
    %v3865 = vsub.f32 %v3722, %v3842
    %v3866 = vsub.f32 %v3723, %v3842
    %v3867 = vsub.f32 %v3724, %v3842
    %v3868 = vsub.f32 %v3725, %v3842
    %v3869 = vsub.f32 %v3726, %v3842
    %v3870 = vsub.f32 %v3727, %v3842
    %v3871 = vsub.f32 %v3728, %v3842
    %v3872 = vsub.f32 %v3729, %v3842
    %v3873 = vsub.f32 %v3730, %v3842
    %v3874 = vsub.f32 %v3731, %v3842
    %v3875 = vsub.f32 %v3732, %v3842
    %v3876 = vsub.f32 %v3733, %v3842
    %v3877 = vsub.f32 %v3734, %v3842
    %v3878 = vsub.f32 %v3735, %v3842
    %v3879 = vadd.f32 %v3846, 1e-05
    %v3880 = vrsqrt.pop %v3879
    %v3881 = vmul.f32 %v3847, %v3880
    %v3882 = vmul.f32 %v3848, %v3880
    %v3883 = vmul.f32 %v3849, %v3880
    %v3884 = vmul.f32 %v3850, %v3880
    %v3885 = vmul.f32 %v3851, %v3880
    %v3886 = vmul.f32 %v3852, %v3880
    %v3887 = vmul.f32 %v3853, %v3880
    %v3888 = vmul.f32 %v3854, %v3880
    %v3889 = vmul.f32 %v3855, %v3880
    %v3890 = vmul.f32 %v3856, %v3880
    %v3891 = vmul.f32 %v3857, %v3880
    %v3892 = vmul.f32 %v3858, %v3880
    %v3893 = vmul.f32 %v3859, %v3880
    %v3894 = vmul.f32 %v3860, %v3880
    %v3895 = vmul.f32 %v3861, %v3880
    %v3896 = vmul.f32 %v3862, %v3880
    %v3897 = vmul.f32 %v3863, %v3880
    %v3898 = vmul.f32 %v3864, %v3880
    %v3899 = vmul.f32 %v3865, %v3880
    %v3900 = vmul.f32 %v3866, %v3880
    %v3901 = vmul.f32 %v3867, %v3880
    %v3902 = vmul.f32 %v3868, %v3880
    %v3903 = vmul.f32 %v3869, %v3880
    %v3904 = vmul.f32 %v3870, %v3880
    %v3905 = vmul.f32 %v3871, %v3880
    %v3906 = vmul.f32 %v3872, %v3880
    %v3907 = vmul.f32 %v3873, %v3880
    %v3908 = vmul.f32 %v3874, %v3880
    %v3909 = vmul.f32 %v3875, %v3880
    %v3910 = vmul.f32 %v3876, %v3880
    %v3911 = vmul.f32 %v3877, %v3880
    %v3912 = vmul.f32 %v3878, %v3880
    %v3914 = vlaneseq
    %v3915 = vshrl.u32 %v3914, 7
    %v3916 = vsub.s32 0, %v3915
    %v3917 = vrot.slane %v3014, %v3916
    %v3919 = vmul.f32 %v3881, %v3917
    %v3920 = vmul.f32 %v3882, %v3917
    %v3921 = vmul.f32 %v3883, %v3917
    %v3922 = vmul.f32 %v3884, %v3917
    %v3923 = vmul.f32 %v3885, %v3917
    %v3924 = vmul.f32 %v3886, %v3917
    %v3925 = vmul.f32 %v3887, %v3917
    %v3926 = vmul.f32 %v3888, %v3917
    %v3927 = vmul.f32 %v3889, %v3917
    %v3928 = vmul.f32 %v3890, %v3917
    %v3929 = vmul.f32 %v3891, %v3917
    %v3930 = vmul.f32 %v3892, %v3917
    %v3931 = vmul.f32 %v3893, %v3917
    %v3932 = vmul.f32 %v3894, %v3917
    %v3933 = vmul.f32 %v3895, %v3917
    %v3934 = vmul.f32 %v3896, %v3917
    %v3935 = vmul.f32 %v3897, %v3917
    %v3936 = vmul.f32 %v3898, %v3917
    %v3937 = vmul.f32 %v3899, %v3917
    %v3938 = vmul.f32 %v3900, %v3917
    %v3939 = vmul.f32 %v3901, %v3917
    %v3940 = vmul.f32 %v3902, %v3917
    %v3941 = vmul.f32 %v3903, %v3917
    %v3942 = vmul.f32 %v3904, %v3917
    %v3943 = vmul.f32 %v3905, %v3917
    %v3944 = vmul.f32 %v3906, %v3917
    %v3945 = vmul.f32 %v3907, %v3917
    %v3946 = vmul.f32 %v3908, %v3917
    %v3947 = vmul.f32 %v3909, %v3917
    %v3948 = vmul.f32 %v3910, %v3917
    %v3949 = vmul.f32 %v3911, %v3917
    %v3950 = vmul.f32 %v3912, %v3917
    %v3952 = vlaneseq
    %v3953 = vshrl.u32 %v3952, 7
    %v3954 = vsub.s32 0, %v3953
    %v3955 = vrot.slane %v3016, %v3954
    %v3957 = vadd.f32 %v3919, %v3955
    %v3958 = vadd.f32 %v3920, %v3955
    %v3959 = vadd.f32 %v3921, %v3955
    %v3960 = vadd.f32 %v3922, %v3955
    %v3961 = vadd.f32 %v3923, %v3955
    %v3962 = vadd.f32 %v3924, %v3955
    %v3963 = vadd.f32 %v3925, %v3955
    %v3964 = vadd.f32 %v3926, %v3955
    %v3965 = vadd.f32 %v3927, %v3955
    %v3966 = vadd.f32 %v3928, %v3955
    %v3967 = vadd.f32 %v3929, %v3955
    %v3968 = vadd.f32 %v3930, %v3955
    %v3969 = vadd.f32 %v3931, %v3955
    %v3970 = vadd.f32 %v3932, %v3955
    %v3971 = vadd.f32 %v3933, %v3955
    %v3972 = vadd.f32 %v3934, %v3955
    %v3973 = vadd.f32 %v3935, %v3955
    %v3974 = vadd.f32 %v3936, %v3955
    %v3975 = vadd.f32 %v3937, %v3955
    %v3976 = vadd.f32 %v3938, %v3955
    %v3977 = vadd.f32 %v3939, %v3955
    %v3978 = vadd.f32 %v3940, %v3955
    %v3979 = vadd.f32 %v3941, %v3955
    %v3980 = vadd.f32 %v3942, %v3955
    %v3981 = vadd.f32 %v3943, %v3955
    %v3982 = vadd.f32 %v3944, %v3955
    %v3983 = vadd.f32 %v3945, %v3955
    %v3984 = vadd.f32 %v3946, %v3955
    %v3985 = vadd.f32 %v3947, %v3955
    %v3986 = vadd.f32 %v3948, %v3955
    %v3987 = vadd.f32 %v3949, %v3955
    %v3988 = vadd.f32 %v3950, %v3955
    %v3989 = vsel %vm1726, %v3957, -1e+30
    %v3990 = vsel %vm1727, %v3958, -1e+30
    %v3991 = vsel %vm1728, %v3959, -1e+30
    %v3992 = vsel %vm1729, %v3960, -1e+30
    %v3993 = vsel %vm1730, %v3961, -1e+30
    %v3994 = vsel %vm1731, %v3962, -1e+30
    %v3995 = vsel %vm1732, %v3963, -1e+30
    %v3996 = vsel %vm1733, %v3964, -1e+30
    %v3997 = vsel %vm1734, %v3965, -1e+30
    %v3998 = vsel %vm1735, %v3966, -1e+30
    %v3999 = vsel %vm1736, %v3967, -1e+30
    %v4000 = vsel %vm1737, %v3968, -1e+30
    %v4001 = vsel %vm1738, %v3969, -1e+30
    %v4002 = vsel %vm1739, %v3970, -1e+30
    %v4003 = vsel %vm1740, %v3971, -1e+30
    %v4004 = vsel %vm1741, %v3972, -1e+30
    %v4005 = vsel %vm1742, %v3973, -1e+30
    %v4006 = vsel %vm1743, %v3974, -1e+30
    %v4007 = vsel %vm1744, %v3975, -1e+30
    %v4008 = vsel %vm1745, %v3976, -1e+30
    %v4009 = vsel %vm1746, %v3977, -1e+30
    %v4010 = vsel %vm1747, %v3978, -1e+30
    %v4011 = vsel %vm1748, %v3979, -1e+30
    %v4012 = vsel %vm1749, %v3980, -1e+30
    %v4013 = vsel %vm1750, %v3981, -1e+30
    %v4014 = vsel %vm1751, %v3982, -1e+30
    %v4015 = vsel %vm1752, %v3983, -1e+30
    %v4016 = vsel %vm1753, %v3984, -1e+30
    %v4017 = vsel %vm1754, %v3985, -1e+30
    %v4018 = vsel %vm1755, %v3986, -1e+30
    %v4019 = vsel %vm1756, %v3987, -1e+30
    %v4020 = vsel %vm1757, %v3988, -1e+30
    %v4021 = vmax.f32 %v3989, %v3993
    %v4022 = vmax.f32 %v3990, %v3994
    %v4023 = vmax.f32 %v3991, %v3995
    %v4024 = vmax.f32 %v3992, %v3996
    %v4025 = vmax.f32 %v4021, %v4022
    %v4026 = vmax.f32 %v4023, %v4024
    %v4027 = vmax.f32 %v4025, %v4026
    %v4028 = vrot.slane %v4027, 4
    %v4029 = vmax.f32 %v4027, %v4028
    %v4030 = vrot.slane %v4029, 2
    %v4031 = vmax.f32 %v4029, %v4030
    %v4032 = vrot.slane %v4031, 1
    %v4033 = vmax.f32 %v4031, %v4032
    %v4034 = vmax.f32 %v3997, %v4001
    %v4035 = vmax.f32 %v3998, %v4002
    %v4036 = vmax.f32 %v3999, %v4003
    %v4037 = vmax.f32 %v4000, %v4004
    %v4038 = vmax.f32 %v4034, %v4035
    %v4039 = vmax.f32 %v4036, %v4037
    %v4040 = vmax.f32 %v4038, %v4039
    %v4041 = vrot.slane %v4040, 4
    %v4042 = vmax.f32 %v4040, %v4041
    %v4043 = vrot.slane %v4042, 2
    %v4044 = vmax.f32 %v4042, %v4043
    %v4045 = vrot.slane %v4044, 1
    %v4046 = vmax.f32 %v4044, %v4045
    %v4047 = vmax.f32 %v4005, %v4009
    %v4048 = vmax.f32 %v4006, %v4010
    %v4049 = vmax.f32 %v4007, %v4011
    %v4050 = vmax.f32 %v4008, %v4012
    %v4051 = vmax.f32 %v4047, %v4048
    %v4052 = vmax.f32 %v4049, %v4050
    %v4053 = vmax.f32 %v4051, %v4052
    %v4054 = vrot.slane %v4053, 4
    %v4055 = vmax.f32 %v4053, %v4054
    %v4056 = vrot.slane %v4055, 2
    %v4057 = vmax.f32 %v4055, %v4056
    %v4058 = vrot.slane %v4057, 1
    %v4059 = vmax.f32 %v4057, %v4058
    %v4060 = vmax.f32 %v4013, %v4017
    %v4061 = vmax.f32 %v4014, %v4018
    %v4062 = vmax.f32 %v4015, %v4019
    %v4063 = vmax.f32 %v4016, %v4020
    %v4064 = vmax.f32 %v4060, %v4061
    %v4065 = vmax.f32 %v4062, %v4063
    %v4066 = vmax.f32 %v4064, %v4065
    %v4067 = vrot.slane %v4066, 4
    %v4068 = vmax.f32 %v4066, %v4067
    %v4069 = vrot.slane %v4068, 2
    %v4070 = vmax.f32 %v4068, %v4069
    %v4071 = vrot.slane %v4070, 1
    %v4072 = vmax.f32 %v4070, %v4071
    %v4073 = vsel %vm1842, %v4033, %v4046
    %v4074 = vsel %vm1844, %v4073, %v4059
    %v4075 = vsel %vm1846, %v4074, %v4072
    %vm4076 = vcmask 1043456
    %v4077 = vsel %vm4076, %v1847, 0.0
    %v4078 = vsel %vm4076, %v2958, 0.0
    %v4079 = vsel %vm4076, %v4075, 0.0
    %4080 = vst [vmem:[#allocation12] sm:$0xff] %v4077
    %4081 = vst [vmem:[#allocation12 + $0x8] sm:$0xff] %v4078
    %4082 = vst [vmem:[#allocation12 + $0x10] sm:$0xff] %v4079
    // Predicated region
    $region86: #{tpu_custom_call.1} parent=1 // pred_check
      _
    $region87: #{tpu_custom_call.1} parent=1 // pred_check_branch
      %4084 = sbr.rel (0) target = $region89
    $region88: #{tpu_custom_call.1} parent=1 // pred_region
      %s4086 = ssub.s32 384, 384
      %4087 = vsyncadd [#allocation5], %s4086
      %s4089 = sshll.u32 [#allocation12], 4
      %s4090 = int_to_ptr.vmem [resolvable:$true] %s4089
      %4092 = dma.vmem_to_hbm [thread:$0]  %s4090, 384, %s16, [#allocation5]
    $region89: #{tpu_custom_call.1} parent=1 // pred_fallthru
      _
    // Predicated region
    $region90: #{tpu_custom_call.1} parent=1 // pred_check
      _
    $region91: #{tpu_custom_call.1} parent=1 // pred_check_branch
      %4094 = sbr.rel (0) target = $region93
    $region92: #{tpu_custom_call.1} parent=1 // pred_region
      %4095 = dma.done [#allocation5], 384
    $region93: #{tpu_custom_call.1} parent=1 // pred_fallthru
      _
    %4096 = vsyncpa [#allocation4], 1
    %4097 = vsyncpa [#allocation7], 1
    %4098 = vsyncpa [#allocation10], 1
    %4099 = vsyncpa [#allocation5], 1

</llo_original>
